<compile_context>
chip_gen: v7x
topology: tpu7x:2x2x1
jax: 0.10.0
libtpu: 0.0.40
codegen_flags: <defaults>
</compile_context>

<pallas_src>
import jax
import jax.numpy as jnp
from jax.experimental import pallas as pl
from jax.experimental.pallas import tpu as pltpu


# ----------------------------- helpers --------------------------------------
def _round_up(x, m):
    return ((x + m - 1) // m) * m


def _pick_tile_v(v_pad):
    for t in (2048, 1024, 512, 256, 128):
        if v_pad % t == 0:
            return t
    return v_pad


# ------------------- fused decode-loop kernel (one pallas_call) --------------
def seq2seq_decode_kernel(
    # scalar prefetch (SMEM)
    tfm_ref,     # (trg_len,)            int32  teacher-forcing mask (0/1)
    # step-invariant inputs, constant index maps (DMA'd once for the sequence)
    trg_ref,     # (trg_len, BS_P, 1)    int32  target tokens (batch padded)
    h0_ref,      # (BS_P, HD_P)          f32    initial decoder hidden
    emb_ref,     # (V_P, E_P)            bf16   embedding table
    enc_ref,     # (BS_P, T, HE2_P)      bf16   encoder outputs
    encp_ref,    # (BS_P, T, HD_P)       f32    hoisted enc @ Wae^T
    wahh_ref,    # (HD_P, 4*HD_P)        bf16   fused [W_attn_h | W_hh(r,z,n)]^T
    ba_ref,      # (1, HD_P)             f32
    v_ref,       # (1, HD_P)             f32
    wih_ref,     # (E_P+HE2_P, 3*HD_P)   bf16   fused GRU weight_ih
    bi_ref,      # (1, 3*HD_P)           f32
    bh_ref,      # (1, 3*HD_P)           f32
    # streamed over V tiles
    wout_ref,    # (K_P, TILE_V)         bf16
    bo_ref,      # (1, TILE_V)           f32    (padded vocab columns = -1e30)
    # outputs
    pred_ref,    # block (1, BS_P, TILE_V) f32  logits
    hid_ref,     # (BS_P, HD_P)          f32    final hidden (resident accumulator)
    # VMEM scratch (persistent across the whole grid)
    h_scr,       # (BS_P, HD_P)  f32
    proj_scr,    # (BS_P, K_P)   bf16  [h_new ; weighted ; emb]
    best_val,    # (BS_P, 1)     f32   running max logit
    best_idx,    # (BS_P, 1)     i32   running argmax
    ntok,        # (BS_P, 1)     i32   token fed at the current step
):
    t = pl.program_id(0)
    j = pl.program_id(1)
    n_vtiles = pl.num_programs(1)

    BS_P, HD_P = h_scr.shape
    V_P = emb_ref.shape[0]
    TILE_V = wout_ref.shape[1]

    # ---- phase 1 (once per decode step): attention + one GRU step -----------
    @pl.when(j == 0)
    def _attn_gru():
        @pl.when(t == 0)
        def _init():
            h_scr[...] = h0_ref[...]
            ntok[...] = trg_ref[0]                         # <sos> tokens

        h = h_scr[...]
        h_bf = h.astype(jnp.bfloat16)

        # embedding lookup as a one-hot MXU matmul (vectorized in-kernel gather)
        lane_v = jax.lax.broadcasted_iota(jnp.int32, (BS_P, V_P), 1)
        onehot = (lane_v == ntok[...]).astype(jnp.bfloat16)
        emb = jnp.dot(onehot, emb_ref[...],
                      preferred_element_type=jnp.float32).astype(jnp.bfloat16)

        # single fused h-side matmul: [attention Wh | GRU W_hh (r,z,n)]
        hh = jnp.dot(h_bf, wahh_ref[...], preferred_element_type=jnp.float32)
        eh = hh[:, :HD_P]                                  # (BS_P, HD_P)
        gh = hh[:, HD_P:] + bh_ref[...]                    # (BS_P, 3*HD_P)

        # Bahdanau attention; encoder-side projection hoisted to host (per seq)
        # TODO(synk): on v6e/v7x this tanh/exp block could run in bf16 (EUP bf16
        #             path); kept f32 so the same kernel is also right on v5e.
        energy = jnp.tanh(encp_ref[...] + eh[:, None, :] + ba_ref[...])
        scores = jnp.sum(energy * v_ref[...], axis=-1)     # (BS_P, T)  VPU+lane reduce
        scores = scores - jnp.max(scores, axis=1, keepdims=True)
        p = jnp.exp(scores)
        a = p * pl.reciprocal(jnp.sum(p, axis=1, keepdims=True), approx=True)

        # context vector: bf16 multiply, f32 accumulation (no f32 copy of enc)
        weighted = jnp.sum(a.astype(jnp.bfloat16)[:, :, None] * enc_ref[...],
                           axis=1, dtype=jnp.float32)      # (BS_P, HE2_P)
        w_bf = weighted.astype(jnp.bfloat16)

        # one GRU step, fused input matmul (PyTorch gate order r, z, n)
        rnn_in = jnp.concatenate([emb, w_bf], axis=1)
        gi = jnp.dot(rnn_in, wih_ref[...],
                     preferred_element_type=jnp.float32) + bi_ref[...]
        r = jax.nn.sigmoid(gi[:, :HD_P] + gh[:, :HD_P])
        z = jax.nn.sigmoid(gi[:, HD_P:2 * HD_P] + gh[:, HD_P:2 * HD_P])
        n = jnp.tanh(gi[:, 2 * HD_P:] + r * gh[:, 2 * HD_P:])
        h_new = (1.0 - z) * n + z * h

        h_scr[...] = h_new
        hid_ref[...] = h_new
        proj_scr[...] = jnp.concatenate(
            [h_new.astype(jnp.bfloat16), w_bf, emb], axis=1)

        best_val[...] = jnp.full((BS_P, 1), -jnp.inf, jnp.float32)
        best_idx[...] = jnp.zeros((BS_P, 1), jnp.int32)

    # ---- phase 2 (every V tile): vocab projection + running argmax ----------
    logits = (jnp.dot(proj_scr[...], wout_ref[...],
                      preferred_element_type=jnp.float32) + bo_ref[...])
    pred_ref[0] = logits

    lane = jax.lax.broadcasted_iota(jnp.int32, logits.shape, 1)
    tmax = jnp.max(logits, axis=1, keepdims=True)
    targ = jnp.min(jnp.where(logits >= tmax, lane, TILE_V),
                   axis=1, keepdims=True) + j * TILE_V     # first-occurrence tie-break
    better = tmax > best_val[...]
    best_idx[...] = jnp.where(better, targ, best_idx[...])
    best_val[...] = jnp.where(better, tmax, best_val[...])

    # ---- phase 3 (last V tile): teacher forcing / argmax token feedback -----
    @pl.when(j == n_vtiles - 1)
    def _next_token():
        tnext = t + 1                        # always a valid row of trg / tf_mask
        tf = tfm_ref[tnext]                  # 1 -> trg[tnext], 0 -> argmax
        ntok[...] = trg_ref[tnext] * tf + best_idx[...] * (1 - tf)


# ----------------------------- one-time parameter preparation ----------------
def prepare_decoder_params(params):
    """Pre-transpose / fuse / zero-pad / bf16-cast all weights ONCE."""
    V, E = params["emb_table"].shape
    Hd = params["W_hh"].shape[1]
    He2 = params["W_attn"].shape[1] - Hd

    E_P = _round_up(E, 128)
    HE2_P = _round_up(He2, 128)
    HD_P = _round_up(Hd, 128)
    V_P = _round_up(V, 128)
    K_P = HD_P + HE2_P + E_P

    f32, bf16 = jnp.float32, jnp.bfloat16
    NEG = -1e30   # padded vocab columns can never win the fused argmax

    emb_table = jnp.zeros((V_P, E_P), bf16).at[:V, :E].set(params["emb_table"].astype(bf16))

    # fused h-side weight: [W_attn_h^T | W_hh_r^T | W_hh_z^T | W_hh_n^T]
    wahh = jnp.zeros((HD_P, 4 * HD_P), bf16)
    wahh = wahh.at[:Hd, :Hd].set(params["W_attn"][:, :Hd].T.astype(bf16))
    ba = jnp.zeros((1, HD_P), f32).at[0, :Hd].set(params["b_attn"])
    v = jnp.zeros((1, HD_P), f32).at[0, :Hd].set(params["v_w"])

    wih = jnp.zeros((E_P + HE2_P, 3 * HD_P), bf16)
    bi = jnp.zeros((1, 3 * HD_P), f32)
    bh = jnp.zeros((1, 3 * HD_P), f32)
    for g in range(3):                                     # r, z, n gates (PyTorch order)
        Wg = params["W_ih"][g * Hd:(g + 1) * Hd]           # (Hd, E+He2)
        c0 = g * HD_P
        wih = wih.at[:E, c0:c0 + Hd].set(Wg[:, :E].T.astype(bf16))
        wih = wih.at[E_P:E_P + He2, c0:c0 + Hd].set(Wg[:, E:].T.astype(bf16))
        wahh = wahh.at[:Hd, HD_P + c0:HD_P + c0 + Hd].set(
            params["W_hh"][g * Hd:(g + 1) * Hd].T.astype(bf16))
        bi = bi.at[0, c0:c0 + Hd].set(params["b_ih"][g * Hd:(g + 1) * Hd])
        bh = bh.at[0, c0:c0 + Hd].set(params["b_hh"][g * Hd:(g + 1) * Hd])

    Wout = params["W_out"]                                  # (V, Hd+He2+E)
    wout = jnp.zeros((K_P, V_P), bf16)
    wout = wout.at[:Hd, :V].set(Wout[:, :Hd].T.astype(bf16))
    wout = wout.at[HD_P:HD_P + He2, :V].set(Wout[:, Hd:Hd + He2].T.astype(bf16))
    wout = wout.at[HD_P + HE2_P:HD_P + HE2_P + E, :V].set(Wout[:, Hd + He2:].T.astype(bf16))
    bo = jnp.full((1, V_P), NEG, f32).at[0, :V].set(params["b_out"])

    return dict(emb_table=emb_table, wahh=wahh, ba=ba, v=v,
                wih=wih, bi=bi, bh=bh, wout=wout, bo=bo)


def prepare_encoder_inputs(enc_outs, W_attn, Hd, bs_p):
    """Once per sequence: batch-major padded enc (bf16) and the HOISTED
    encoder-side attention projection enc @ Wae^T (f32)."""
    T, bs, He2 = enc_outs.shape
    HE2_P = _round_up(He2, 128)
    HD_P = _round_up(Hd, 128)
    enc_b = jnp.transpose(enc_outs, (1, 0, 2))                             # (bs, T, He2)
    enc_p = jnp.zeros((bs_p, T, HE2_P), jnp.bfloat16).at[:bs, :, :He2].set(
        enc_b.astype(jnp.bfloat16))
    Wae = W_attn[:, Hd:]                                                   # (Hd, He2)
    encp = jnp.einsum("btc,hc->bth", enc_b, Wae)                           # (bs, T, Hd)
    encp_p = jnp.zeros((bs_p, T, HD_P), jnp.float32).at[:bs, :, :Hd].set(encp)
    return enc_p, encp_p


def pad_hidden(h, bs_p, hd_p):
    return jnp.zeros((bs_p, hd_p), jnp.float32).at[:h.shape[0], :h.shape[1]].set(h)


# ----------------------------- fused decode-loop wrapper ---------------------
@jax.jit
def decode_sequence(tfm, trg3, hid0_p, enc_p, encp_p, pp):
    """One pallas_call for the whole decode loop.
    tfm: (trg_len,) int32; trg3: (trg_len, BS_P, 1) int32;
    hid0_p: (BS_P, HD_P) f32; enc_p: (BS_P, T, HE2_P) bf16; encp_p: (BS_P, T, HD_P) f32."""
    Tm1 = trg3.shape[0] - 1
    BS_P, HD_P = hid0_p.shape
    V_P = pp["emb_table"].shape[0]
    K_P = pp["wout"].shape[0]
    TILE_V = _pick_tile_v(V_P)
    NT = V_P // TILE_V

    c2 = lambda t, j, s: (0, 0)          # step-invariant 2-D operands
    c3 = lambda t, j, s: (0, 0, 0)       # step-invariant 3-D operands

    grid_spec = pltpu.PrefetchScalarGridSpec(
        num_scalar_prefetch=1,
        grid=(Tm1, NT),
        in_specs=[
            pl.BlockSpec(trg3.shape, c3),
            pl.BlockSpec(hid0_p.shape, c2),
            pl.BlockSpec(pp["emb_table"].shape, c2),
            pl.BlockSpec(enc_p.shape, c3),
            pl.BlockSpec(encp_p.shape, c3),
            pl.BlockSpec(pp["wahh"].shape, c2),
            pl.BlockSpec(pp["ba"].shape, c2),
            pl.BlockSpec(pp["v"].shape, c2),
            pl.BlockSpec(pp["wih"].shape, c2),
            pl.BlockSpec(pp["bi"].shape, c2),
            pl.BlockSpec(pp["bh"].shape, c2),
            pl.BlockSpec((K_P, TILE_V), lambda t, j, s: (0, j)),   # streamed W_out
            pl.BlockSpec((1, TILE_V), lambda t, j, s: (0, j)),
        ],
        out_specs=(
            pl.BlockSpec((1, BS_P, TILE_V), lambda t, j, s: (t, 0, j)),
            pl.BlockSpec((BS_P, HD_P), c2),                        # resident hidden
        ),
        scratch_shapes=[
            pltpu.VMEM((BS_P, HD_P), jnp.float32),    # h_scr
            pltpu.VMEM((BS_P, K_P), jnp.bfloat16),    # proj_scr
            pltpu.VMEM((BS_P, 1), jnp.float32),       # best_val
            pltpu.VMEM((BS_P, 1), jnp.int32),         # best_idx
            pltpu.VMEM((BS_P, 1), jnp.int32),         # ntok (current input token)
        ],
    )

    pred, hid = pl.pallas_call(
        seq2seq_decode_kernel,
        out_shape=(jax.ShapeDtypeStruct((Tm1, BS_P, V_P), jnp.float32),
                   jax.ShapeDtypeStruct((BS_P, HD_P), jnp.float32)),
        grid_spec=grid_spec,
        compiler_params=pltpu.CompilerParams(
            dimension_semantics=("arbitrary", "arbitrary"),   # sequential recurrence
            vmem_limit_bytes=32 * 1024 * 1024),               # v7x-safe scoped budget
    )(tfm, trg3, hid0_p, pp["emb_table"], enc_p, encp_p,
      pp["wahh"], pp["ba"], pp["v"], pp["wih"], pp["bi"], pp["bh"],
      pp["wout"], pp["bo"])
    return pred, hid


# ----------------------------- Seq2Seq forward --------------------------------
def seq2seq_forward(trg, enc_outs, dec_hidden, params, prepped, tf_mask):
    """Mirrors Seq2Seq.forward's decode loop (teacher forcing decided by tf_mask)."""
    trg_len, bs = trg.shape
    V = params["b_out"].shape[0]
    Hd = dec_hidden.shape[1]
    BS_P = _round_up(max(bs, 1), 16)      # 16 sublanes: bf16 LHS packs (16,128)/vreg
    HD_P = _round_up(Hd, 128)

    enc_p, encp_p = prepare_encoder_inputs(enc_outs, params["W_attn"], Hd, BS_P)
    hid0_p = pad_hidden(dec_hidden, BS_P, HD_P)
    trg3 = jnp.zeros((trg_len, BS_P, 1), jnp.int32).at[:, :bs, 0].set(trg.astype(jnp.int32))
    tfm = tf_mask.astype(jnp.int32)

    pred_p, hid_p = decode_sequence(tfm, trg3, hid0_p, enc_p, encp_p, prepped)

    outputs = jnp.concatenate(
        [jnp.zeros((1, bs, V), jnp.float32), pred_p[:, :bs, :V]], axis=0)
    return outputs, hid_p[:bs, :Hd]


# ----------------------------- pure-JAX reference -----------------------------
def reference_decoder_step(tokens, dec_hidden, enc_outs, params):
    Hd = dec_hidden.shape[1]
    emb = jnp.take(params["emb_table"], tokens, axis=0)
    T = enc_outs.shape[0]
    enc_b = jnp.transpose(enc_outs, (1, 0, 2))
    hrep = jnp.broadcast_to(dec_hidden[:, None, :], (dec_hidden.shape[0], T, Hd))
    cat = jnp.concatenate([hrep, enc_b], axis=2)
    energy = jnp.tanh(cat @ params["W_attn"].T + params["b_attn"])
    scores = energy @ params["v_w"]
    a = jax.nn.softmax(scores, axis=1)
    weighted = jnp.einsum("bt,btc->bc", a, enc_b)
    rnn_in = jnp.concatenate([emb, weighted], axis=1)
    gi = rnn_in @ params["W_ih"].T + params["b_ih"]
    gh = dec_hidden @ params["W_hh"].T + params["b_hh"]
    r = jax.nn.sigmoid(gi[:, :Hd] + gh[:, :Hd])
    z = jax.nn.sigmoid(gi[:, Hd:2 * Hd] + gh[:, Hd:2 * Hd])
    n = jnp.tanh(gi[:, 2 * Hd:] + r * gh[:, 2 * Hd:])
    h_new = (1.0 - z) * n + z * dec_hidden
    pred = (jnp.concatenate([h_new, weighted, emb], axis=1) @ params["W_out"].T
            + params["b_out"])
    return pred, h_new


# ----------------------------------- main -------------------------------------
if __name__ == "__main__":
    bs, T_src, trg_len = 2, 8, 6
    E, He, Hd, V = 16, 16, 32, 64
    He2 = 2 * He
    I = E + He2

    key = jax.random.PRNGKey(0)
    ks = jax.random.split(key, 16)
    s = 0.1
    params = {
        "emb_table": jax.random.normal(ks[0], (V, E), jnp.float32) * s,
        "W_attn":    jax.random.normal(ks[1], (Hd, Hd + He2), jnp.float32) * s,
        "b_attn":    jax.random.normal(ks[2], (Hd,), jnp.float32) * s,
        "v_w":       jax.random.normal(ks[3], (Hd,), jnp.float32) * s,
        "W_ih":      jax.random.normal(ks[4], (3 * Hd, I), jnp.float32) * s,
        "b_ih":      jax.random.normal(ks[5], (3 * Hd,), jnp.float32) * s,
        "W_hh":      jax.random.normal(ks[6], (3 * Hd, Hd), jnp.float32) * s,
        "b_hh":      jax.random.normal(ks[7], (3 * Hd,), jnp.float32) * s,
        "W_out":     jax.random.normal(ks[8], (V, Hd + He2 + E), jnp.float32) * s,
        "b_out":     jax.random.normal(ks[9], (V,), jnp.float32) * s,
    }

    trg = jax.random.randint(ks[10], (trg_len, bs), 0, V, dtype=jnp.int32)
    dec_hidden0 = jax.random.normal(ks[11], (bs, Hd), jnp.float32)
    enc_outs = jax.random.normal(ks[12], (T_src, bs, He2), jnp.float32)
    # deterministic stand-in for "random.random() < teaching_forcing_ratio"
    tf_mask = jax.random.uniform(ks[13], (trg_len,)) < 0.5

    prepped = prepare_decoder_params(params)           # one-time weight prep (hoisted)

    # ---- full fused decode (teacher forcing + in-kernel argmax feedback) ------
    outputs_k, hid_k = seq2seq_forward(trg, enc_outs, dec_hidden0, params, prepped, tf_mask)
    jax.block_until_ready(outputs_k)
    assert outputs_k.shape == (trg_len, bs, V)
    assert hid_k.shape == (bs, Hd)

    # reference loop driven by the exact token sequence the kernel fed itself
    # (reconstructed from the kernel's own logits: in-kernel argmax == argmax of
    #  the written f32 logits by construction, incl. first-occurrence tie-break).
    hidden_r = dec_hidden0
    outs_r = [jnp.zeros((bs, V), jnp.float32)]
    inp = trg[0]
    for t in range(1, trg_len):
        pr, hidden_r = reference_decoder_step(inp, hidden_r, enc_outs, params)
        outs_r.append(pr)
        top1_k = jnp.argmax(outputs_k[t], axis=1).astype(trg.dtype)
        inp = jnp.where(tf_mask[t], trg[t], top1_k)
    outputs_r = jnp.stack(outs_r, axis=0)

    assert jnp.allclose(outputs_k, outputs_r, atol=3e-2, rtol=3e-2)
    assert jnp.allclose(hid_k, hidden_r, atol=3e-2, rtol=3e-2)

    print("KERNEL_OK")
</pallas_src>

<mosaic_0001>
module attributes {stable_mosaic.version = 11 : i64} {
  func.func @seq2seq_decode_kernel(%arg0: i32, %arg1: i32, %arg2: memref<6xi32, #tpu.memory_space<smem>>, %arg3: memref<6x16x1xi32, #tpu.memory_space<vmem>>, %arg4: memref<16x128xf32, #tpu.memory_space<vmem>>, %arg5: memref<128x128xbf16, #tpu.memory_space<vmem>>, %arg6: memref<16x8x128xbf16, #tpu.memory_space<vmem>>, %arg7: memref<16x8x128xf32, #tpu.memory_space<vmem>>, %arg8: memref<128x512xbf16, #tpu.memory_space<vmem>>, %arg9: memref<1x128xf32, #tpu.memory_space<vmem>>, %arg10: memref<1x128xf32, #tpu.memory_space<vmem>>, %arg11: memref<256x384xbf16, #tpu.memory_space<vmem>>, %arg12: memref<1x384xf32, #tpu.memory_space<vmem>>, %arg13: memref<1x384xf32, #tpu.memory_space<vmem>>, %arg14: memref<384x128xbf16, #tpu.memory_space<vmem>>, %arg15: memref<1x128xf32, #tpu.memory_space<vmem>>, %arg16: memref<1x16x128xf32, #tpu.memory_space<vmem>>, %arg17: memref<16x128xf32, #tpu.memory_space<vmem>>, %arg18: memref<16x128xf32, #tpu.memory_space<vmem>>, %arg19: memref<16x384xbf16, #tpu.memory_space<vmem>>, %arg20: memref<16x1xf32, #tpu.memory_space<vmem>>, %arg21: memref<16x1xi32, #tpu.memory_space<vmem>>, %arg22: memref<16x1xi32, #tpu.memory_space<vmem>>) attributes {dimension_semantics = [#tpu.dimension_semantics<arbitrary>, #tpu.dimension_semantics<arbitrary>], iteration_bounds = array<i64: 5, 1>, scalar_prefetch = 1 : i64, scratch_operands = 5 : i64, tpu.core_type = #tpu.core_type<tc>, window_params = [{pipeline_mode = #tpu.pipeline_mode<synchronous>, transform_indices = @transform_0, window_bounds = array<i64: 6, 16, 1>}, {pipeline_mode = #tpu.pipeline_mode<synchronous>, transform_indices = @transform_1, window_bounds = array<i64: 16, 128>}, {pipeline_mode = #tpu.pipeline_mode<synchronous>, transform_indices = @transform_2, window_bounds = array<i64: 128, 128>}, {pipeline_mode = #tpu.pipeline_mode<synchronous>, transform_indices = @transform_3, window_bounds = array<i64: 16, 8, 128>}, {pipeline_mode = #tpu.pipeline_mode<synchronous>, transform_indices = @transform_4, window_bounds = array<i64: 16, 8, 128>}, {pipeline_mode = #tpu.pipeline_mode<synchronous>, transform_indices = @transform_5, window_bounds = array<i64: 128, 512>}, {pipeline_mode = #tpu.pipeline_mode<synchronous>, transform_indices = @transform_6, window_bounds = array<i64: 1, 128>}, {pipeline_mode = #tpu.pipeline_mode<synchronous>, transform_indices = @transform_7, window_bounds = array<i64: 1, 128>}, {pipeline_mode = #tpu.pipeline_mode<synchronous>, transform_indices = @transform_8, window_bounds = array<i64: 256, 384>}, {pipeline_mode = #tpu.pipeline_mode<synchronous>, transform_indices = @transform_9, window_bounds = array<i64: 1, 384>}, {pipeline_mode = #tpu.pipeline_mode<synchronous>, transform_indices = @transform_10, window_bounds = array<i64: 1, 384>}, {transform_indices = @transform_11, window_bounds = array<i64: 384, 128>}, {transform_indices = @transform_12, window_bounds = array<i64: 1, 128>}, {transform_indices = @transform_13, window_bounds = array<i64: 1, 16, 128>}, {pipeline_mode = #tpu.pipeline_mode<synchronous>, transform_indices = @transform_14, window_bounds = array<i64: 16, 128>}]} {
    %c0_i32 = arith.constant 0 : i32
    %0 = arith.cmpi eq, %arg1, %c0_i32 : i32
    %1 = arith.extui %0 : i1 to i32
    %c0_i32_0 = arith.constant 0 : i32
    %2 = arith.cmpi ne, %1, %c0_i32_0 : i32
    scf.if %2 {
      %c0_i32_24 = arith.constant 0 : i32
      %35 = arith.cmpi eq, %arg0, %c0_i32_24 : i32
      %36 = arith.extui %35 : i1 to i32
      %c0_i32_25 = arith.constant 0 : i32
      %37 = arith.cmpi ne, %36, %c0_i32_25 : i32
      scf.if %37 {
        %c0_72 = arith.constant 0 : index
        %c0_73 = arith.constant 0 : index
        %130 = vector.load %arg4[%c0_72, %c0_73] : memref<16x128xf32, #tpu.memory_space<vmem>>, vector<16x128xf32>
        %c0_74 = arith.constant 0 : index
        %c0_75 = arith.constant 0 : index
        %131 = vector.load %arg18[%c0_74, %c0_75] : memref<16x128xf32, #tpu.memory_space<vmem>>, vector<16x128xf32>
        tpu.vector_store %arg18[%c0_74, %c0_75], %130 {strides = array<i32>} : memref<16x128xf32, #tpu.memory_space<vmem>>, vector<16x128xf32>,
        %c0_76 = arith.constant 0 : index
        %c0_77 = arith.constant 0 : index
        %c0_78 = arith.constant 0 : index
        %132 = vector.load %arg3[%c0_76, %c0_77, %c0_78] : memref<6x16x1xi32, #tpu.memory_space<vmem>>, vector<1x16x1xi32>
        %133 = vector.shape_cast %132 : vector<1x16x1xi32> to vector<16x1xi32>
        %c0_79 = arith.constant 0 : index
        %c0_80 = arith.constant 0 : index
        %134 = vector.load %arg22[%c0_79, %c0_80] : memref<16x1xi32, #tpu.memory_space<vmem>>, vector<16x1xi32>
        tpu.vector_store %arg22[%c0_79, %c0_80], %133 {strides = array<i32>} : memref<16x1xi32, #tpu.memory_space<vmem>>, vector<16x1xi32>,
      } else {
      }
      %c0_26 = arith.constant 0 : index
      %c0_27 = arith.constant 0 : index
      %38 = vector.load %arg18[%c0_26, %c0_27] : memref<16x128xf32, #tpu.memory_space<vmem>>, vector<16x128xf32>
      %39 = arith.truncf %38 : vector<16x128xf32> to vector<16x128xbf16>
      %40 = tpu.iota {dimensions = array<i32: 1>} : vector<16x128xi32>
      %c0_28 = arith.constant 0 : index
      %c0_29 = arith.constant 0 : index
      %41 = vector.load %arg22[%c0_28, %c0_29] : memref<16x1xi32, #tpu.memory_space<vmem>>, vector<16x1xi32>
      %42 = vector.broadcast %41 : vector<16x1xi32> to vector<16x128xi32>
      %43 = arith.cmpi eq, %40, %42 : vector<16x128xi32>
      %44 = arith.extui %43 : vector<16x128xi1> to vector<16x128xi32>
      %45 = arith.sitofp %44 : vector<16x128xi32> to vector<16x128xf32>
      %46 = arith.truncf %45 : vector<16x128xf32> to vector<16x128xbf16>
      %c0_30 = arith.constant 0 : index
      %c0_31 = arith.constant 0 : index
      %47 = vector.load %arg5[%c0_30, %c0_31] : memref<128x128xbf16, #tpu.memory_space<vmem>>, vector<128x128xbf16>
      %cst_32 = arith.constant dense<0.000000e+00> : vector<16x128xf32>
      %48 = tpu.matmul %46, %47, %cst_32 {dimension_numbers = #tpu.dot_dimension_numbers<[1], [0], [0], [1], [0, 0, 1, 1], [], []>} : vector<16x128xbf16>, vector<128x128xbf16>, vector<16x128xf32> -> vector<16x128xf32>
      %49 = arith.truncf %48 : vector<16x128xf32> to vector<16x128xbf16>
      %c0_33 = arith.constant 0 : index
      %c0_34 = arith.constant 0 : index
      %50 = vector.load %arg8[%c0_33, %c0_34] : memref<128x512xbf16, #tpu.memory_space<vmem>>, vector<128x512xbf16>
      %cst_35 = arith.constant dense<0.000000e+00> : vector<16x512xf32>
      %51 = tpu.matmul %39, %50, %cst_35 {dimension_numbers = #tpu.dot_dimension_numbers<[1], [0], [0], [1], [0, 0, 1, 1], [], []>} : vector<16x128xbf16>, vector<128x512xbf16>, vector<16x512xf32> -> vector<16x512xf32>
      %52 = vector.extract_strided_slice %51 {offsets = [0, 0], sizes = [16, 128], strides = [1, 1]} : vector<16x512xf32> to vector<16x128xf32>
      %53 = vector.extract_strided_slice %51 {offsets = [0, 128], sizes = [16, 384], strides = [1, 1]} : vector<16x512xf32> to vector<16x384xf32>
      %c0_36 = arith.constant 0 : index
      %c0_37 = arith.constant 0 : index
      %54 = vector.load %arg13[%c0_36, %c0_37] : memref<1x384xf32, #tpu.memory_space<vmem>>, vector<1x384xf32>
      %55 = vector.broadcast %54 : vector<1x384xf32> to vector<16x384xf32>
      %56 = arith.addf %53, %55 : vector<16x384xf32>
      %c0_38 = arith.constant 0 : index
      %c0_39 = arith.constant 0 : index
      %c0_40 = arith.constant 0 : index
      %57 = vector.load %arg7[%c0_38, %c0_39, %c0_40] : memref<16x8x128xf32, #tpu.memory_space<vmem>>, vector<16x8x128xf32>
      %58 = vector.shape_cast %52 : vector<16x128xf32> to vector<16x1x128xf32>
      %59 = vector.broadcast %58 : vector<16x1x128xf32> to vector<16x8x128xf32>
      %60 = arith.addf %57, %59 : vector<16x8x128xf32>
      %c0_41 = arith.constant 0 : index
      %c0_42 = arith.constant 0 : index
      %61 = vector.load %arg9[%c0_41, %c0_42] : memref<1x128xf32, #tpu.memory_space<vmem>>, vector<1x128xf32>
      %62 = vector.shape_cast %61 : vector<1x128xf32> to vector<1x1x128xf32>
      %63 = vector.broadcast %62 : vector<1x1x128xf32> to vector<16x8x128xf32>
      %64 = arith.addf %60, %63 : vector<16x8x128xf32>
      %65 = math.tanh %64 : vector<16x8x128xf32>
      %c0_43 = arith.constant 0 : index
      %c0_44 = arith.constant 0 : index
      %66 = vector.load %arg10[%c0_43, %c0_44] : memref<1x128xf32, #tpu.memory_space<vmem>>, vector<1x128xf32>
      %67 = vector.shape_cast %66 : vector<1x128xf32> to vector<1x1x128xf32>
      %68 = vector.broadcast %67 : vector<1x1x128xf32> to vector<16x8x128xf32>
      %69 = arith.mulf %65, %68 : vector<16x8x128xf32>
      %cst_45 = arith.constant dense<0.000000e+00> : vector<16x8xf32>
      %70 = vector.multi_reduction <add>, %69, %cst_45 [2] : vector<16x8x128xf32> to vector<16x8xf32>
      %cst_46 = arith.constant dense<0xFF800000> : vector<16xf32>
      %71 = vector.multi_reduction <maximumf>, %70, %cst_46 [1] : vector<16x8xf32> to vector<16xf32>
      %72 = vector.shape_cast %71 : vector<16xf32> to vector<16x1xf32>
      %73 = vector.broadcast %72 : vector<16x1xf32> to vector<16x8xf32>
      %74 = arith.subf %70, %73 : vector<16x8xf32>
      %75 = math.exp %74 : vector<16x8xf32>
      %cst_47 = arith.constant dense<0.000000e+00> : vector<16xf32>
      %76 = vector.multi_reduction <add>, %75, %cst_47 [1] : vector<16x8xf32> to vector<16xf32>
      %77 = vector.shape_cast %76 : vector<16xf32> to vector<16x1xf32>
      %78 = tpu.reciprocal %77 {approx = true} : vector<16x1xf32> -> vector<16x1xf32>
      %79 = vector.broadcast %78 : vector<16x1xf32> to vector<16x8xf32>
      %80 = arith.mulf %75, %79 : vector<16x8xf32>
      %81 = arith.truncf %80 : vector<16x8xf32> to vector<16x8xbf16>
      %82 = vector.shape_cast %81 : vector<16x8xbf16> to vector<16x8x1xbf16>
      %c0_48 = arith.constant 0 : index
      %c0_49 = arith.constant 0 : index
      %c0_50 = arith.constant 0 : index
      %83 = vector.load %arg6[%c0_48, %c0_49, %c0_50] : memref<16x8x128xbf16, #tpu.memory_space<vmem>>, vector<16x8x128xbf16>
      %84 = vector.broadcast %82 : vector<16x8x1xbf16> to vector<16x8x128xbf16>
      %85 = arith.mulf %84, %83 : vector<16x8x128xbf16>
      %86 = arith.extf %85 : vector<16x8x128xbf16> to vector<16x8x128xf32>
      %cst_51 = arith.constant dense<0.000000e+00> : vector<16x128xf32>
      %87 = vector.multi_reduction <add>, %86, %cst_51 [1] : vector<16x8x128xf32> to vector<16x128xf32>
      %88 = arith.truncf %87 : vector<16x128xf32> to vector<16x128xbf16>
      %89 = tpu.concatenate %49, %88 in 1 : vector<16x128xbf16>, vector<16x128xbf16> -> vector<16x256xbf16>
      %c0_52 = arith.constant 0 : index
      %c0_53 = arith.constant 0 : index
      %90 = vector.load %arg11[%c0_52, %c0_53] : memref<256x384xbf16, #tpu.memory_space<vmem>>, vector<256x384xbf16>
      %cst_54 = arith.constant dense<0.000000e+00> : vector<16x384xf32>
      %91 = tpu.matmul %89, %90, %cst_54 {dimension_numbers = #tpu.dot_dimension_numbers<[1], [0], [0], [1], [0, 0, 1, 1], [], []>} : vector<16x256xbf16>, vector<256x384xbf16>, vector<16x384xf32> -> vector<16x384xf32>
      %c0_55 = arith.constant 0 : index
      %c0_56 = arith.constant 0 : index
      %92 = vector.load %arg12[%c0_55, %c0_56] : memref<1x384xf32, #tpu.memory_space<vmem>>, vector<1x384xf32>
      %93 = vector.broadcast %92 : vector<1x384xf32> to vector<16x384xf32>
      %94 = arith.addf %91, %93 : vector<16x384xf32>
      %95 = vector.extract_strided_slice %94 {offsets = [0, 0], sizes = [16, 128], strides = [1, 1]} : vector<16x384xf32> to vector<16x128xf32>
      %96 = vector.extract_strided_slice %56 {offsets = [0, 0], sizes = [16, 128], strides = [1, 1]} : vector<16x384xf32> to vector<16x128xf32>
      %97 = arith.addf %95, %96 : vector<16x128xf32>
      %98 = arith.negf %97 : vector<16x128xf32>
      %99 = math.exp %98 : vector<16x128xf32>
      %cst_57 = arith.constant 1.000000e+00 : f32
      %100 = vector.broadcast %cst_57 : f32 to vector<16x128xf32>
      %101 = arith.addf %100, %99 : vector<16x128xf32>
      %102 = arith.divf %100, %101 : vector<16x128xf32>
      %103 = vector.extract_strided_slice %94 {offsets = [0, 128], sizes = [16, 128], strides = [1, 1]} : vector<16x384xf32> to vector<16x128xf32>
      %104 = vector.extract_strided_slice %56 {offsets = [0, 128], sizes = [16, 128], strides = [1, 1]} : vector<16x384xf32> to vector<16x128xf32>
      %105 = arith.addf %103, %104 : vector<16x128xf32>
      %106 = arith.negf %105 : vector<16x128xf32>
      %107 = math.exp %106 : vector<16x128xf32>
      %cst_58 = arith.constant 1.000000e+00 : f32
      %108 = vector.broadcast %cst_58 : f32 to vector<16x128xf32>
      %109 = arith.addf %108, %107 : vector<16x128xf32>
      %110 = arith.divf %108, %109 : vector<16x128xf32>
      %111 = vector.extract_strided_slice %94 {offsets = [0, 256], sizes = [16, 128], strides = [1, 1]} : vector<16x384xf32> to vector<16x128xf32>
      %112 = vector.extract_strided_slice %56 {offsets = [0, 256], sizes = [16, 128], strides = [1, 1]} : vector<16x384xf32> to vector<16x128xf32>
      %113 = arith.mulf %102, %112 : vector<16x128xf32>
      %114 = arith.addf %111, %113 : vector<16x128xf32>
      %115 = math.tanh %114 : vector<16x128xf32>
      %cst_59 = arith.constant 1.000000e+00 : f32
      %116 = vector.broadcast %cst_59 : f32 to vector<16x128xf32>
      %117 = arith.subf %116, %110 : vector<16x128xf32>
      %118 = arith.mulf %117, %115 : vector<16x128xf32>
      %119 = arith.mulf %110, %38 : vector<16x128xf32>
      %120 = arith.addf %118, %119 : vector<16x128xf32>
      %c0_60 = arith.constant 0 : index
      %c0_61 = arith.constant 0 : index
      %121 = vector.load %arg18[%c0_60, %c0_61] : memref<16x128xf32, #tpu.memory_space<vmem>>, vector<16x128xf32>
      tpu.vector_store %arg18[%c0_60, %c0_61], %120 {strides = array<i32>} : memref<16x128xf32, #tpu.memory_space<vmem>>, vector<16x128xf32>,
      %c0_62 = arith.constant 0 : index
      %c0_63 = arith.constant 0 : index
      %122 = vector.load %arg17[%c0_62, %c0_63] : memref<16x128xf32, #tpu.memory_space<vmem>>, vector<16x128xf32>
      tpu.vector_store %arg17[%c0_62, %c0_63], %120 {strides = array<i32>} : memref<16x128xf32, #tpu.memory_space<vmem>>, vector<16x128xf32>,
      %123 = arith.truncf %120 : vector<16x128xf32> to vector<16x128xbf16>
      %124 = tpu.concatenate %123, %88, %49 in 1 : vector<16x128xbf16>, vector<16x128xbf16>, vector<16x128xbf16> -> vector<16x384xbf16>
      %c0_64 = arith.constant 0 : index
      %c0_65 = arith.constant 0 : index
      %125 = vector.load %arg19[%c0_64, %c0_65] : memref<16x384xbf16, #tpu.memory_space<vmem>>, vector<16x384xbf16>
      tpu.vector_store %arg19[%c0_64, %c0_65], %124 {strides = array<i32>} : memref<16x384xbf16, #tpu.memory_space<vmem>>, vector<16x384xbf16>,
      %cst_66 = arith.constant 0xFF800000 : f32
      %126 = vector.broadcast %cst_66 : f32 to vector<16x1xf32>
      %c0_67 = arith.constant 0 : index
      %c0_68 = arith.constant 0 : index
      %127 = vector.load %arg20[%c0_67, %c0_68] : memref<16x1xf32, #tpu.memory_space<vmem>>, vector<16x1xf32>
      tpu.vector_store %arg20[%c0_67, %c0_68], %126 {strides = array<i32>} : memref<16x1xf32, #tpu.memory_space<vmem>>, vector<16x1xf32>,
      %c0_i32_69 = arith.constant 0 : i32
      %128 = vector.broadcast %c0_i32_69 : i32 to vector<16x1xi32>
      %c0_70 = arith.constant 0 : index
      %c0_71 = arith.constant 0 : index
      %129 = vector.load %arg21[%c0_70, %c0_71] : memref<16x1xi32, #tpu.memory_space<vmem>>, vector<16x1xi32>
      tpu.vector_store %arg21[%c0_70, %c0_71], %128 {strides = array<i32>} : memref<16x1xi32, #tpu.memory_space<vmem>>, vector<16x1xi32>,
    } else {
    }
    %c0 = arith.constant 0 : index
    %c0_1 = arith.constant 0 : index
    %3 = vector.load %arg19[%c0, %c0_1] : memref<16x384xbf16, #tpu.memory_space<vmem>>, vector<16x384xbf16>
    %c0_2 = arith.constant 0 : index
    %c0_3 = arith.constant 0 : index
    %4 = vector.load %arg14[%c0_2, %c0_3] : memref<384x128xbf16, #tpu.memory_space<vmem>>, vector<384x128xbf16>
    %cst = arith.constant dense<0.000000e+00> : vector<16x128xf32>
    %5 = tpu.matmul %3, %4, %cst {dimension_numbers = #tpu.dot_dimension_numbers<[1], [0], [0], [1], [0, 0, 1, 1], [], []>} : vector<16x384xbf16>, vector<384x128xbf16>, vector<16x128xf32> -> vector<16x128xf32>
    %c0_4 = arith.constant 0 : index
    %c0_5 = arith.constant 0 : index
    %6 = vector.load %arg15[%c0_4, %c0_5] : memref<1x128xf32, #tpu.memory_space<vmem>>, vector<1x128xf32>
    %7 = vector.broadcast %6 : vector<1x128xf32> to vector<16x128xf32>
    %8 = arith.addf %5, %7 : vector<16x128xf32>
    %c0_6 = arith.constant 0 : index
    %c0_7 = arith.constant 0 : index
    %c0_8 = arith.constant 0 : index
    %9 = vector.load %arg16[%c0_6, %c0_7, %c0_8] : memref<1x16x128xf32, #tpu.memory_space<vmem>>, vector<1x16x128xf32>
    %10 = vector.shape_cast %9 : vector<1x16x128xf32> to vector<16x128xf32>
    %11 = vector.shape_cast %8 : vector<16x128xf32> to vector<1x16x128xf32>
    tpu.vector_store %arg16[%c0_6, %c0_7, %c0_8], %11 {strides = array<i32>} : memref<1x16x128xf32, #tpu.memory_space<vmem>>, vector<1x16x128xf32>,
    %12 = tpu.iota {dimensions = array<i32: 1>} : vector<16x128xi32>
    %cst_9 = arith.constant dense<0xFF800000> : vector<16xf32>
    %13 = vector.multi_reduction <maximumf>, %8, %cst_9 [1] : vector<16x128xf32> to vector<16xf32>
    %14 = vector.shape_cast %13 : vector<16xf32> to vector<16x1xf32>
    %15 = vector.broadcast %14 : vector<16x1xf32> to vector<16x128xf32>
    %16 = arith.cmpf oge, %8, %15 : vector<16x128xf32>
    %c128_i32 = arith.constant 128 : i32
    %17 = vector.broadcast %c128_i32 : i32 to vector<16x128xi32>
    %18 = arith.select %16, %12, %17 : vector<16x128xi1>, vector<16x128xi32>
    %cst_10 = arith.constant dense<2147483647> : vector<16xi32>
    %19 = vector.multi_reduction <minsi>, %18, %cst_10 [1] : vector<16x128xi32> to vector<16xi32>
    %20 = vector.shape_cast %19 : vector<16xi32> to vector<16x1xi32>
    %c128_i32_11 = arith.constant 128 : i32
    %21 = arith.muli %arg1, %c128_i32_11 : i32
    %22 = vector.broadcast %21 : i32 to vector<16x1xi32>
    %23 = arith.addi %20, %22 : vector<16x1xi32>
    %c0_12 = arith.constant 0 : index
    %c0_13 = arith.constant 0 : index
    %24 = vector.load %arg20[%c0_12, %c0_13] : memref<16x1xf32, #tpu.memory_space<vmem>>, vector<16x1xf32>
    %25 = arith.cmpf ogt, %14, %24 : vector<16x1xf32>
    %c0_14 = arith.constant 0 : index
    %c0_15 = arith.constant 0 : index
    %26 = vector.load %arg21[%c0_14, %c0_15] : memref<16x1xi32, #tpu.memory_space<vmem>>, vector<16x1xi32>
    %27 = arith.select %25, %23, %26 : vector<16x1xi1>, vector<16x1xi32>
    %c0_16 = arith.constant 0 : index
    %c0_17 = arith.constant 0 : index
    %28 = vector.load %arg21[%c0_16, %c0_17] : memref<16x1xi32, #tpu.memory_space<vmem>>, vector<16x1xi32>
    tpu.vector_store %arg21[%c0_16, %c0_17], %27 {strides = array<i32>} : memref<16x1xi32, #tpu.memory_space<vmem>>, vector<16x1xi32>,
    %c0_18 = arith.constant 0 : index
    %c0_19 = arith.constant 0 : index
    %29 = vector.load %arg20[%c0_18, %c0_19] : memref<16x1xf32, #tpu.memory_space<vmem>>, vector<16x1xf32>
    %30 = arith.select %25, %14, %29 : vector<16x1xi1>, vector<16x1xf32>
    %c0_20 = arith.constant 0 : index
    %c0_21 = arith.constant 0 : index
    %31 = vector.load %arg20[%c0_20, %c0_21] : memref<16x1xf32, #tpu.memory_space<vmem>>, vector<16x1xf32>
    tpu.vector_store %arg20[%c0_20, %c0_21], %30 {strides = array<i32>} : memref<16x1xf32, #tpu.memory_space<vmem>>, vector<16x1xf32>,
    %c0_i32_22 = arith.constant 0 : i32
    %32 = arith.cmpi eq, %arg1, %c0_i32_22 : i32
    %33 = arith.extui %32 : i1 to i32
    %c0_i32_23 = arith.constant 0 : i32
    %34 = arith.cmpi ne, %33, %c0_i32_23 : i32
    scf.if %34 {
      %c1_i32 = arith.constant 1 : i32
      %35 = arith.addi %arg0, %c1_i32 : i32
      %36 = arith.index_cast %35 : i32 to index
      %37 = memref.load %arg2[%36] : memref<6xi32, #tpu.memory_space<smem>>
      %38 = arith.index_cast %35 : i32 to index
      %c0_24 = arith.constant 0 : index
      %c0_25 = arith.constant 0 : index
      %39 = vector.load %arg3[%38, %c0_24, %c0_25] : memref<6x16x1xi32, #tpu.memory_space<vmem>>, vector<1x16x1xi32>
      %40 = vector.shape_cast %39 : vector<1x16x1xi32> to vector<16x1xi32>
      %41 = vector.broadcast %37 : i32 to vector<16x1xi32>
      %42 = arith.muli %40, %41 : vector<16x1xi32>
      %c0_26 = arith.constant 0 : index
      %c0_27 = arith.constant 0 : index
      %43 = vector.load %arg21[%c0_26, %c0_27] : memref<16x1xi32, #tpu.memory_space<vmem>>, vector<16x1xi32>
      %c1_i32_28 = arith.constant 1 : i32
      %44 = arith.subi %c1_i32_28, %37 : i32
      %45 = vector.broadcast %44 : i32 to vector<16x1xi32>
      %46 = arith.muli %43, %45 : vector<16x1xi32>
      %47 = arith.addi %42, %46 : vector<16x1xi32>
      %c0_29 = arith.constant 0 : index
      %c0_30 = arith.constant 0 : index
      %48 = vector.load %arg22[%c0_29, %c0_30] : memref<16x1xi32, #tpu.memory_space<vmem>>, vector<16x1xi32>
      tpu.vector_store %arg22[%c0_29, %c0_30], %47 {strides = array<i32>} : memref<16x1xi32, #tpu.memory_space<vmem>>, vector<16x1xi32>,
    } else {
    }
    return
  }
  func.func @transform_0(%arg0: i32, %arg1: i32, %arg2: memref<6xi32, #tpu.memory_space<smem>>) -> (i32, i32, i32) {
    %c0_i32 = arith.constant 0 : i32
    %c0_i32_0 = arith.constant 0 : i32
    %c0_i32_1 = arith.constant 0 : i32
    %c0_i32_2 = arith.constant 0 : i32
    return %c0_i32, %c0_i32_0, %c0_i32_1 : i32, i32, i32
  }
  func.func @transform_1(%arg0: i32, %arg1: i32, %arg2: memref<6xi32, #tpu.memory_space<smem>>) -> (i32, i32) {
    %c0_i32 = arith.constant 0 : i32
    %c0_i32_0 = arith.constant 0 : i32
    %c0_i32_1 = arith.constant 0 : i32
    return %c0_i32, %c0_i32_0 : i32, i32
  }
  func.func @transform_2(%arg0: i32, %arg1: i32, %arg2: memref<6xi32, #tpu.memory_space<smem>>) -> (i32, i32) {
    %c0_i32 = arith.constant 0 : i32
    %c0_i32_0 = arith.constant 0 : i32
    %c0_i32_1 = arith.constant 0 : i32
    return %c0_i32, %c0_i32_0 : i32, i32
  }
  func.func @transform_3(%arg0: i32, %arg1: i32, %arg2: memref<6xi32, #tpu.memory_space<smem>>) -> (i32, i32, i32) {
    %c0_i32 = arith.constant 0 : i32
    %c0_i32_0 = arith.constant 0 : i32
    %c0_i32_1 = arith.constant 0 : i32
    %c0_i32_2 = arith.constant 0 : i32
    return %c0_i32, %c0_i32_0, %c0_i32_1 : i32, i32, i32
  }
  func.func @transform_4(%arg0: i32, %arg1: i32, %arg2: memref<6xi32, #tpu.memory_space<smem>>) -> (i32, i32, i32) {
    %c0_i32 = arith.constant 0 : i32
    %c0_i32_0 = arith.constant 0 : i32
    %c0_i32_1 = arith.constant 0 : i32
    %c0_i32_2 = arith.constant 0 : i32
    return %c0_i32, %c0_i32_0, %c0_i32_1 : i32, i32, i32
  }
  func.func @transform_5(%arg0: i32, %arg1: i32, %arg2: memref<6xi32, #tpu.memory_space<smem>>) -> (i32, i32) {
    %c0_i32 = arith.constant 0 : i32
    %c0_i32_0 = arith.constant 0 : i32
    %c0_i32_1 = arith.constant 0 : i32
    return %c0_i32, %c0_i32_0 : i32, i32
  }
  func.func @transform_6(%arg0: i32, %arg1: i32, %arg2: memref<6xi32, #tpu.memory_space<smem>>) -> (i32, i32) {
    %c0_i32 = arith.constant 0 : i32
    %c0_i32_0 = arith.constant 0 : i32
    %c0_i32_1 = arith.constant 0 : i32
    return %c0_i32, %c0_i32_0 : i32, i32
  }
  func.func @transform_7(%arg0: i32, %arg1: i32, %arg2: memref<6xi32, #tpu.memory_space<smem>>) -> (i32, i32) {
    %c0_i32 = arith.constant 0 : i32
    %c0_i32_0 = arith.constant 0 : i32
    %c0_i32_1 = arith.constant 0 : i32
    return %c0_i32, %c0_i32_0 : i32, i32
  }
  func.func @transform_8(%arg0: i32, %arg1: i32, %arg2: memref<6xi32, #tpu.memory_space<smem>>) -> (i32, i32) {
    %c0_i32 = arith.constant 0 : i32
    %c0_i32_0 = arith.constant 0 : i32
    %c0_i32_1 = arith.constant 0 : i32
    return %c0_i32, %c0_i32_0 : i32, i32
  }
  func.func @transform_9(%arg0: i32, %arg1: i32, %arg2: memref<6xi32, #tpu.memory_space<smem>>) -> (i32, i32) {
    %c0_i32 = arith.constant 0 : i32
    %c0_i32_0 = arith.constant 0 : i32
    %c0_i32_1 = arith.constant 0 : i32
    return %c0_i32, %c0_i32_0 : i32, i32
  }
  func.func @transform_10(%arg0: i32, %arg1: i32, %arg2: memref<6xi32, #tpu.memory_space<smem>>) -> (i32, i32) {
    %c0_i32 = arith.constant 0 : i32
    %c0_i32_0 = arith.constant 0 : i32
    %c0_i32_1 = arith.constant 0 : i32
    return %c0_i32, %c0_i32_0 : i32, i32
  }
  func.func @transform_11(%arg0: i32, %arg1: i32, %arg2: memref<6xi32, #tpu.memory_space<smem>>) -> (i32, i32) {
    %c0_i32 = arith.constant 0 : i32
    %c0_i32_0 = arith.constant 0 : i32
    return %c0_i32, %arg1 : i32, i32
  }
  func.func @transform_12(%arg0: i32, %arg1: i32, %arg2: memref<6xi32, #tpu.memory_space<smem>>) -> (i32, i32) {
    %c0_i32 = arith.constant 0 : i32
    %c0_i32_0 = arith.constant 0 : i32
    return %c0_i32, %arg1 : i32, i32
  }
  func.func @transform_13(%arg0: i32, %arg1: i32, %arg2: memref<6xi32, #tpu.memory_space<smem>>) -> (i32, i32, i32) {
    %c0_i32 = arith.constant 0 : i32
    %c0_i32_0 = arith.constant 0 : i32
    return %arg0, %c0_i32, %arg1 : i32, i32, i32
  }
  func.func @transform_14(%arg0: i32, %arg1: i32, %arg2: memref<6xi32, #tpu.memory_space<smem>>) -> (i32, i32) {
    %c0_i32 = arith.constant 0 : i32
    %c0_i32_0 = arith.constant 0 : i32
    %c0_i32_1 = arith.constant 0 : i32
    return %c0_i32, %c0_i32_0 : i32, i32
  }
}

</mosaic_0001>

<llo_original>
// kernel: decode_sequence.1
$region0: #{decode_sequence.1}
  #allocation0 [shape = 'u32[]', space=smem, size = 0x4, offset = 0x4, fixed_abs, tag = 'smem constant byte address 0x4 - core index']
  #allocation1 [shape = 'u32[144,128]{1,0:T(1,128)}', space=vmem, size = 0x12000, scoped, tag = 'internal scratch']
  #allocation2 [shape = 'f32[16,128]{1,0:T(8,128)}', space=vmem, size = 0x2000, scoped, tag = 'scratch operand']
  #allocation3 [shape = 'bf16[16,384]{1,0:T(16,128)(2,1)}', space=vmem, size = 0x3000, scoped, tag = 'scratch operand']
  #allocation4 [shape = 'f32[16,1]{1,0:T(8,128)}', space=vmem, size = 0x2000, scoped, tag = 'scratch operand']
  #allocation5 [shape = 's32[16,1]{1,0:T(8,128)}', space=vmem, size = 0x2000, scoped, tag = 'scratch operand']
  #allocation6 [shape = 's32[16,1]{1,0:T(8,128)}', space=vmem, size = 0x2000, scoped, tag = 'scratch operand']
  #allocation7 [shape = 's32[1]{0}', space=sflag, size = 0x4, scoped, tag = 'scoped memory for decode_sequence.1']
  #allocation8 [shape = 'u8[512]{0}', space=smem, size = 0x200, scoped, tag = 'prefetched SMEM operand 0']
  %s0 = inlined_call_operand.hbm [shape: s32[6], index: 0, kind: input, shape index: {}]
  %s1 = inlined_call_operand.vmem [shape: s32[6,16,1], index: 1, kind: input, shape index: {}]
  %s2 = inlined_call_operand.hbm [shape: f32[16,128], index: 2, kind: input, shape index: {}]
  %s3 = inlined_call_operand.vmem [shape: bf16[128,128], index: 3, kind: input, shape index: {}]
  %s4 = inlined_call_operand.vmem [shape: bf16[16,8,128], index: 4, kind: input, shape index: {}]
  %s5 = inlined_call_operand.hbm [shape: f32[16,8,128], index: 5, kind: input, shape index: {}]
  %s6 = inlined_call_operand.hbm [shape: bf16[128,512], index: 6, kind: input, shape index: {}]
  %s7 = inlined_call_operand.hbm [shape: f32[1,128], index: 7, kind: input, shape index: {}]
  %s8 = inlined_call_operand.vmem [shape: f32[1,128], index: 8, kind: input, shape index: {}]
  %s9 = inlined_call_operand.hbm [shape: bf16[256,384], index: 9, kind: input, shape index: {}]
  %s10 = inlined_call_operand.hbm [shape: f32[1,384], index: 10, kind: input, shape index: {}]
  %s11 = inlined_call_operand.hbm [shape: f32[1,384], index: 11, kind: input, shape index: {}]
  %s12 = inlined_call_operand.hbm [shape: bf16[384,128], index: 12, kind: input, shape index: {}]
  %s13 = inlined_call_operand.vmem [shape: f32[1,128], index: 13, kind: input, shape index: {}]
  %s14 = inlined_call_operand.hbm [shape: f32[5,16,128], index: 14, kind: output, shape index: {0}]
  %s15 = inlined_call_operand.hbm [shape: f32[16,128], index: 15, kind: output, shape index: {1}]
  %16 = xla_tuple %s14, %s15
  %s17 = sld [smem:[#allocation0]]
  $region137: #{decode_sequence.1} parent=0
    _
  %s19 = ssub.s32 1, %s17
  %s20 = scalar_select 0, %s19, %s17
  %22 = dma.hbm_to_smem %s0, 16, [#allocation8], [#allocation7]
  %23 = dma.done [#allocation7], 16
  %24 = sfence
  $region1: #{decode_sequence.1} parent=0
    #allocation9 [shape = 'u8[8192]{0}', space=vmem, size = 0x2000, scoped, tag = 'input window, operand 2, single buffered']
    #allocation10 [shape = 's32[2]{0}', space=sflag, size = 0x8, scoped, tag = 'scoped memory for decode_sequence.1']
    #allocation11 [shape = 's32[2]{0}', space=sflag, size = 0x8, scoped, tag = 'scoped memory for decode_sequence.1']
    #allocation12 [shape = 'u8[65536]{0}', space=vmem, size = 0x10000, scoped, tag = 'input window, operand 5, single buffered']
    #allocation13 [shape = 's32[1]{0}', space=sflag, size = 0x4, scoped, tag = 'scoped memory for decode_sequence.1']
    #allocation14 [shape = 'u8[131072]{0}', space=vmem, size = 0x20000, scoped, tag = 'input window, operand 6, single buffered']
    #allocation15 [shape = 'u8[512]{0}', space=vmem, size = 0x400, scoped, tag = 'input window, operand 7, single buffered']
    #allocation16 [shape = 's32[1]{0}', space=sflag, size = 0x4, scoped, tag = 'scoped memory for decode_sequence.1']
    #allocation17 [shape = 'u8[196608]{0}', space=vmem, size = 0x30000, scoped, tag = 'input window, operand 9, single buffered']
    #allocation18 [shape = 'u8[1536]{0}', space=vmem, size = 0x800, scoped, tag = 'input window, operand 10, single buffered']
    #allocation19 [shape = 's32[1]{0}', space=sflag, size = 0x4, scoped, tag = 'scoped memory for decode_sequence.1']
    #allocation20 [shape = 'u8[1536]{0}', space=vmem, size = 0x800, scoped, tag = 'input window, operand 11, single buffered']
    #allocation21 [shape = 'u8[98304]{0}', space=vmem, size = 0x18000, scoped, tag = 'input window, operand 12, single buffered']
    #allocation22 [shape = 's32[1]{0}', space=sflag, size = 0x4, scoped, tag = 'scoped memory for decode_sequence.1']
    #allocation23 [shape = 'u8[16384]{0}', space=vmem, size = 0x4000, scoped, tag = 'output window, operand 0']
    #allocation24 [shape = 'u8[8192]{0}', space=vmem, size = 0x2000, scoped, tag = 'output window, operand 1, single buffered']
    #allocation25 [shape = 's32[1]{0}', space=sflag, size = 0x4, scoped, tag = 'scoped memory for decode_sequence.1']
    %25 = vsyncpa [#allocation10], 0
    %26 = vsyncpa [#allocation13], 0
    %27 = vsyncpa [#allocation16], 0
    %28 = vsyncpa [#allocation19], 0
    %29 = vsyncpa [#allocation22], 0
    %30 = vsyncpa [#allocation11], 0
    %s31 = scalar_lea.sflag [#allocation11], 1
    %32 = vsyncpa %s31, 0
    %33 = vsyncpa [#allocation25], 0
    loop: start=0, step=1, limit=7
    $region2: #{decode_sequence.1} parent=1 // loop_pre_header
      _
    $region3: #{decode_sequence.1} parent=1 // loop_header
      %s35 = sphi 0, %s39
      %p36 = scmp.ge.s32.totalorder %s35, 7
      %s42 = sphi 0, %s54
      %s43 = sphi 0, %s50
      %s44 = sphi 0, %s42
      %s45 = sphi 0, %s43
      %s46 = sphi 0, %s44
      %s47 = sphi 0, %s45
      %s55 = sphi 0, %s55
      %s57 = sphi 0, %s55
      %s58 = sphi 0, %s57
      %s72 = sphi 0, %s58
      %s76 = sphi 0, %s76
      %s78 = sphi 0, %s76
      %s79 = sphi 0, %s78
      %s93 = sphi 0, %s79
      %s97 = sphi 0, %s97
      %s99 = sphi 0, %s97
      %s100 = sphi 0, %s99
      %s114 = sphi 0, %s100
      %s118 = sphi 0, %s118
      %s120 = sphi 0, %s118
      %s121 = sphi 0, %s120
      %s135 = sphi 0, %s121
      %s139 = sphi 0, %s139
      %s141 = sphi 0, %s139
      %s142 = sphi 0, %s141
      %s156 = sphi 0, %s142
      %s160 = sphi 0, %s160
      %s162 = sphi 0, %s160
      %s163 = sphi 0, %s162
      %s177 = sphi 0, %s163
      %s181 = sphi 0, %s181
      %s183 = sphi 0, %s181
      %s184 = sphi 0, %s183
      %s198 = sphi 0, %s184
      %s202 = sphi 0, %s202
      %s204 = sphi 0, %s202
      %s205 = sphi 0, %s204
      %s219 = sphi 0, %s205
      %s223 = sphi 0, %s223
      %s225 = sphi 0, %s223
      %s226 = sphi 0, %s225
      %s240 = sphi 0, %s226
      %s244 = sphi 0, %s244
      %s246 = sphi 0, %s244
      %s247 = sphi 0, %s246
      %s261 = sphi 0, %s247
      %s265 = sphi 0, %s265
      %s267 = sphi 0, %s265
      %s268 = sphi 0, %s267
      %s282 = sphi 0, %s268
      %s288 = sphi 0, %s290
      %s291 = sphi 0, %s288
      %s292 = sphi 0, %s291
      %s308 = sphi 0, %s292
      %s314 = sphi 0, %s316
      %s317 = sphi 0, %s314
      %s318 = sphi 0, %s317
      %s334 = sphi 0, %s318
      %s342 = sphi 0, %s344
      %s345 = sphi 0, %s342
      %s346 = sphi 0, %s345
      %s362 = sphi 0, %s346
      %s366 = sphi 0, %s366
      %s368 = sphi 0, %s366
      %s369 = sphi 0, %s368
      %s383 = sphi 0, %s369
    $region4: #{decode_sequence.1} parent=1 // loop_header_branch
      %38 = sbr.rel (%p36) target = $region8
    $region5: #{decode_sequence.1} parent=1 // loop_body
      %s40 = ssub.s32 %s35, 1
      %s41 = ssub.s32 %s35, 2
      %s48 = sadd.s32 1, %s43
      %p49 = scmp.ge.s32.totalorder %s48, 1
      %s50 = scalar_select %p49, 0, %s48
      %s51 = sadd.s32 1, %s42
      %s52 = scalar_select %p49, %s51, %s42
      %p53 = scmp.ge.s32.totalorder %s52, 5
      %s54 = scalar_select %p53, 0, %s52
      %s56 = sadd.s32 %s55, 1
      %p59 = scmp.eq.s32.totalorder %s35, 4
      %p60 = scmp.ne.s32.totalorder %s55, %s57
      %p61 = scmp.eq.s32.totalorder %s35, 0
      %p62 = por %p60, %p61
      %p63 = scmp.ne.s32.totalorder %s55, %s57
      %p64 = scmp.eq.s32.totalorder %s40, 4
      %p65 = por %p63, %p64
      %p66 = scmp.ne.s32.totalorder %s57, %s58
      %p67 = scmp.eq.s32.totalorder %s40, 0
      %p68 = por %p66, %p67
      %p69 = scmp.ne.s32.totalorder %s57, %s58
      %p70 = scmp.eq.s32.totalorder %s41, 4
      %p71 = por %p69, %p70
      %p73 = scmp.ne.s32.totalorder %s58, %s72
      %p74 = scmp.eq.s32.totalorder %s41, 0
      %p75 = por %p73, %p74
      %s77 = sadd.s32 %s76, 1
      %p80 = scmp.eq.s32.totalorder %s35, 4
      %p81 = scmp.ne.s32.totalorder %s76, %s78
      %p82 = scmp.eq.s32.totalorder %s35, 0
      %p83 = por %p81, %p82
      %p84 = scmp.ne.s32.totalorder %s76, %s78
      %p85 = scmp.eq.s32.totalorder %s40, 4
      %p86 = por %p84, %p85
      %p87 = scmp.ne.s32.totalorder %s78, %s79
      %p88 = scmp.eq.s32.totalorder %s40, 0
      %p89 = por %p87, %p88
      %p90 = scmp.ne.s32.totalorder %s78, %s79
      %p91 = scmp.eq.s32.totalorder %s41, 4
      %p92 = por %p90, %p91
      %p94 = scmp.ne.s32.totalorder %s79, %s93
      %p95 = scmp.eq.s32.totalorder %s41, 0
      %p96 = por %p94, %p95
      %s98 = sadd.s32 %s97, 1
      %p101 = scmp.eq.s32.totalorder %s35, 4
      %p102 = scmp.ne.s32.totalorder %s97, %s99
      %p103 = scmp.eq.s32.totalorder %s35, 0
      %p104 = por %p102, %p103
      %p105 = scmp.ne.s32.totalorder %s97, %s99
      %p106 = scmp.eq.s32.totalorder %s40, 4
      %p107 = por %p105, %p106
      %p108 = scmp.ne.s32.totalorder %s99, %s100
      %p109 = scmp.eq.s32.totalorder %s40, 0
      %p110 = por %p108, %p109
      %p111 = scmp.ne.s32.totalorder %s99, %s100
      %p112 = scmp.eq.s32.totalorder %s41, 4
      %p113 = por %p111, %p112
      %p115 = scmp.ne.s32.totalorder %s100, %s114
      %p116 = scmp.eq.s32.totalorder %s41, 0
      %p117 = por %p115, %p116
      %s119 = sadd.s32 %s118, 1
      %p122 = scmp.eq.s32.totalorder %s35, 4
      %p123 = scmp.ne.s32.totalorder %s118, %s120
      %p124 = scmp.eq.s32.totalorder %s35, 0
      %p125 = por %p123, %p124
      %p126 = scmp.ne.s32.totalorder %s118, %s120
      %p127 = scmp.eq.s32.totalorder %s40, 4
      %p128 = por %p126, %p127
      %p129 = scmp.ne.s32.totalorder %s120, %s121
      %p130 = scmp.eq.s32.totalorder %s40, 0
      %p131 = por %p129, %p130
      %p132 = scmp.ne.s32.totalorder %s120, %s121
      %p133 = scmp.eq.s32.totalorder %s41, 4
      %p134 = por %p132, %p133
      %p136 = scmp.ne.s32.totalorder %s121, %s135
      %p137 = scmp.eq.s32.totalorder %s41, 0
      %p138 = por %p136, %p137
      %s140 = sadd.s32 %s139, 1
      %p143 = scmp.eq.s32.totalorder %s35, 4
      %p144 = scmp.ne.s32.totalorder %s139, %s141
      %p145 = scmp.eq.s32.totalorder %s35, 0
      %p146 = por %p144, %p145
      %p147 = scmp.ne.s32.totalorder %s139, %s141
      %p148 = scmp.eq.s32.totalorder %s40, 4
      %p149 = por %p147, %p148
      %p150 = scmp.ne.s32.totalorder %s141, %s142
      %p151 = scmp.eq.s32.totalorder %s40, 0
      %p152 = por %p150, %p151
      %p153 = scmp.ne.s32.totalorder %s141, %s142
      %p154 = scmp.eq.s32.totalorder %s41, 4
      %p155 = por %p153, %p154
      %p157 = scmp.ne.s32.totalorder %s142, %s156
      %p158 = scmp.eq.s32.totalorder %s41, 0
      %p159 = por %p157, %p158
      %s161 = sadd.s32 %s160, 1
      %p164 = scmp.eq.s32.totalorder %s35, 4
      %p165 = scmp.ne.s32.totalorder %s160, %s162
      %p166 = scmp.eq.s32.totalorder %s35, 0
      %p167 = por %p165, %p166
      %p168 = scmp.ne.s32.totalorder %s160, %s162
      %p169 = scmp.eq.s32.totalorder %s40, 4
      %p170 = por %p168, %p169
      %p171 = scmp.ne.s32.totalorder %s162, %s163
      %p172 = scmp.eq.s32.totalorder %s40, 0
      %p173 = por %p171, %p172
      %p174 = scmp.ne.s32.totalorder %s162, %s163
      %p175 = scmp.eq.s32.totalorder %s41, 4
      %p176 = por %p174, %p175
      %p178 = scmp.ne.s32.totalorder %s163, %s177
      %p179 = scmp.eq.s32.totalorder %s41, 0
      %p180 = por %p178, %p179
      %s182 = sadd.s32 %s181, 1
      %p185 = scmp.eq.s32.totalorder %s35, 4
      %p186 = scmp.ne.s32.totalorder %s181, %s183
      %p187 = scmp.eq.s32.totalorder %s35, 0
      %p188 = por %p186, %p187
      %p189 = scmp.ne.s32.totalorder %s181, %s183
      %p190 = scmp.eq.s32.totalorder %s40, 4
      %p191 = por %p189, %p190
      %p192 = scmp.ne.s32.totalorder %s183, %s184
      %p193 = scmp.eq.s32.totalorder %s40, 0
      %p194 = por %p192, %p193
      %p195 = scmp.ne.s32.totalorder %s183, %s184
      %p196 = scmp.eq.s32.totalorder %s41, 4
      %p197 = por %p195, %p196
      %p199 = scmp.ne.s32.totalorder %s184, %s198
      %p200 = scmp.eq.s32.totalorder %s41, 0
      %p201 = por %p199, %p200
      %s203 = sadd.s32 %s202, 1
      %p206 = scmp.eq.s32.totalorder %s35, 4
      %p207 = scmp.ne.s32.totalorder %s202, %s204
      %p208 = scmp.eq.s32.totalorder %s35, 0
      %p209 = por %p207, %p208
      %p210 = scmp.ne.s32.totalorder %s202, %s204
      %p211 = scmp.eq.s32.totalorder %s40, 4
      %p212 = por %p210, %p211
      %p213 = scmp.ne.s32.totalorder %s204, %s205
      %p214 = scmp.eq.s32.totalorder %s40, 0
      %p215 = por %p213, %p214
      %p216 = scmp.ne.s32.totalorder %s204, %s205
      %p217 = scmp.eq.s32.totalorder %s41, 4
      %p218 = por %p216, %p217
      %p220 = scmp.ne.s32.totalorder %s205, %s219
      %p221 = scmp.eq.s32.totalorder %s41, 0
      %p222 = por %p220, %p221
      %s224 = sadd.s32 %s223, 1
      %p227 = scmp.eq.s32.totalorder %s35, 4
      %p228 = scmp.ne.s32.totalorder %s223, %s225
      %p229 = scmp.eq.s32.totalorder %s35, 0
      %p230 = por %p228, %p229
      %p231 = scmp.ne.s32.totalorder %s223, %s225
      %p232 = scmp.eq.s32.totalorder %s40, 4
      %p233 = por %p231, %p232
      %p234 = scmp.ne.s32.totalorder %s225, %s226
      %p235 = scmp.eq.s32.totalorder %s40, 0
      %p236 = por %p234, %p235
      %p237 = scmp.ne.s32.totalorder %s225, %s226
      %p238 = scmp.eq.s32.totalorder %s41, 4
      %p239 = por %p237, %p238
      %p241 = scmp.ne.s32.totalorder %s226, %s240
      %p242 = scmp.eq.s32.totalorder %s41, 0
      %p243 = por %p241, %p242
      %s245 = sadd.s32 %s244, 1
      %p248 = scmp.eq.s32.totalorder %s35, 4
      %p249 = scmp.ne.s32.totalorder %s244, %s246
      %p250 = scmp.eq.s32.totalorder %s35, 0
      %p251 = por %p249, %p250
      %p252 = scmp.ne.s32.totalorder %s244, %s246
      %p253 = scmp.eq.s32.totalorder %s40, 4
      %p254 = por %p252, %p253
      %p255 = scmp.ne.s32.totalorder %s246, %s247
      %p256 = scmp.eq.s32.totalorder %s40, 0
      %p257 = por %p255, %p256
      %p258 = scmp.ne.s32.totalorder %s246, %s247
      %p259 = scmp.eq.s32.totalorder %s41, 4
      %p260 = por %p258, %p259
      %p262 = scmp.ne.s32.totalorder %s247, %s261
      %p263 = scmp.eq.s32.totalorder %s41, 0
      %p264 = por %p262, %p263
      %s266 = sadd.s32 %s265, 1
      %p269 = scmp.eq.s32.totalorder %s35, 4
      %p270 = scmp.ne.s32.totalorder %s265, %s267
      %p271 = scmp.eq.s32.totalorder %s35, 0
      %p272 = por %p270, %p271
      %p273 = scmp.ne.s32.totalorder %s265, %s267
      %p274 = scmp.eq.s32.totalorder %s40, 4
      %p275 = por %p273, %p274
      %p276 = scmp.ne.s32.totalorder %s267, %s268
      %p277 = scmp.eq.s32.totalorder %s40, 0
      %p278 = por %p276, %p277
      %p279 = scmp.ne.s32.totalorder %s267, %s268
      %p280 = scmp.eq.s32.totalorder %s41, 4
      %p281 = por %p279, %p280
      %p283 = scmp.ne.s32.totalorder %s268, %s282
      %p284 = scmp.eq.s32.totalorder %s41, 0
      %p285 = por %p283, %p284
      %s286 = ssub.s32 %s43, %s50
      %p287 = scmp.eq.s32.totalorder %s286, 0
      %s289 = sadd.s32 %s288, 1
      %s290 = scalar_select %p287, %s288, %s289
      %p293 = pneg %p287
      %p294 = scmp.eq.s32.totalorder %s35, 4
      %p295 = por %p293, %p294
      %p296 = scmp.ne.s32.totalorder %s288, %s291
      %p297 = scmp.eq.s32.totalorder %s35, 0
      %p298 = por %p296, %p297
      %p299 = scmp.ne.s32.totalorder %s288, %s291
      %p300 = scmp.eq.s32.totalorder %s40, 4
      %p301 = por %p299, %p300
      %p302 = scmp.ne.s32.totalorder %s291, %s292
      %p303 = scmp.eq.s32.totalorder %s40, 0
      %p304 = por %p302, %p303
      %p305 = scmp.ne.s32.totalorder %s291, %s292
      %p306 = scmp.eq.s32.totalorder %s41, 4
      %p307 = por %p305, %p306
      %p309 = scmp.ne.s32.totalorder %s292, %s308
      %p310 = scmp.eq.s32.totalorder %s41, 0
      %p311 = por %p309, %p310
      %s312 = ssub.s32 %s43, %s50
      %p313 = scmp.eq.s32.totalorder %s312, 0
      %s315 = sadd.s32 %s314, 1
      %s316 = scalar_select %p313, %s314, %s315
      %p319 = pneg %p313
      %p320 = scmp.eq.s32.totalorder %s35, 4
      %p321 = por %p319, %p320
      %p322 = scmp.ne.s32.totalorder %s314, %s317
      %p323 = scmp.eq.s32.totalorder %s35, 0
      %p324 = por %p322, %p323
      %p325 = scmp.ne.s32.totalorder %s314, %s317
      %p326 = scmp.eq.s32.totalorder %s40, 4
      %p327 = por %p325, %p326
      %p328 = scmp.ne.s32.totalorder %s317, %s318
      %p329 = scmp.eq.s32.totalorder %s40, 0
      %p330 = por %p328, %p329
      %p331 = scmp.ne.s32.totalorder %s317, %s318
      %p332 = scmp.eq.s32.totalorder %s41, 4
      %p333 = por %p331, %p332
      %p335 = scmp.ne.s32.totalorder %s318, %s334
      %p336 = scmp.eq.s32.totalorder %s41, 0
      %p337 = por %p335, %p336
      %s338 = ssub.s32 %s42, %s54
      %s339 = ssub.s32 %s43, %s50
      %s340 = sor.u32 %s338, %s339
      %p341 = scmp.eq.s32.totalorder %s340, 0
      %s343 = sadd.s32 %s342, 1
      %s344 = scalar_select %p341, %s342, %s343
      %p347 = pneg %p341
      %p348 = scmp.eq.s32.totalorder %s35, 4
      %p349 = por %p347, %p348
      %p350 = scmp.ne.s32.totalorder %s342, %s345
      %p351 = scmp.eq.s32.totalorder %s35, 0
      %p352 = por %p350, %p351
      %p353 = scmp.ne.s32.totalorder %s342, %s345
      %p354 = scmp.eq.s32.totalorder %s40, 4
      %p355 = por %p353, %p354
      %p356 = scmp.ne.s32.totalorder %s345, %s346
      %p357 = scmp.eq.s32.totalorder %s40, 0
      %p358 = por %p356, %p357
      %p359 = scmp.ne.s32.totalorder %s345, %s346
      %p360 = scmp.eq.s32.totalorder %s41, 4
      %p361 = por %p359, %p360
      %p363 = scmp.ne.s32.totalorder %s346, %s362
      %p364 = scmp.eq.s32.totalorder %s41, 0
      %p365 = por %p363, %p364
      %s367 = sadd.s32 %s366, 1
      %p370 = scmp.eq.s32.totalorder %s35, 4
      %p371 = scmp.ne.s32.totalorder %s366, %s368
      %p372 = scmp.eq.s32.totalorder %s35, 0
      %p373 = por %p371, %p372
      %p374 = scmp.ne.s32.totalorder %s366, %s368
      %p375 = scmp.eq.s32.totalorder %s40, 4
      %p376 = por %p374, %p375
      %p377 = scmp.ne.s32.totalorder %s368, %s369
      %p378 = scmp.eq.s32.totalorder %s40, 0
      %p379 = por %p377, %p378
      %p380 = scmp.ne.s32.totalorder %s368, %s369
      %p381 = scmp.eq.s32.totalorder %s41, 4
      %p382 = por %p380, %p381
      %p384 = scmp.ne.s32.totalorder %s369, %s383
      %p385 = scmp.eq.s32.totalorder %s41, 0
      %p386 = por %p384, %p385
      %p387 = scmp.le.s32.totalorder 1, %s35
      %p388 = scmp.lt.s32.totalorder %s35, 6
      %p389 = pnand %p387, %p388
      %p390 = pneg %p389
      // Predicated region
      $region9: #{decode_sequence.1} parent=5 // pred_check
        _
      $region10: #{decode_sequence.1} parent=5 // pred_check_branch
        %392 = sbr.rel (%p389) target = $region12
      $region11: #{decode_sequence.1} parent=5 // pred_region
        %s393 = ssub.s32 %s35, 1
        // Predicated region
        $region13: #{decode_sequence.1} parent=11 // pred_check
          %p394 = pneg %p68
        $region14: #{decode_sequence.1} parent=11 // pred_check_branch
          %396 = sbr.rel (%p394) target = $region16
        $region15: #{decode_sequence.1} parent=11 // pred_region
          _
        $region16: #{decode_sequence.1} parent=11 // pred_fallthru
          _
        // Predicated region
        $region17: #{decode_sequence.1} parent=11 // pred_check
          %p397 = pneg %p89
        $region18: #{decode_sequence.1} parent=11 // pred_check_branch
          %399 = sbr.rel (%p397) target = $region20
        $region19: #{decode_sequence.1} parent=11 // pred_region
          %s401 = ssub.s32 256, 256
          %402 = vsyncadd [#allocation10], %s401
          %s403 = sshll.u32 [#allocation9], 4
          %s404 = int_to_ptr.vmem [resolvable:$true] %s403
          %409 = dma.hbm_to_vmem [thread:$0]  %s2, 256, %s404, [#allocation10], 128, 128, 8
        $region20: #{decode_sequence.1} parent=11 // pred_fallthru
          _
        // Predicated region
        $region21: #{decode_sequence.1} parent=11 // pred_check
          %p410 = pneg %p110
        $region22: #{decode_sequence.1} parent=11 // pred_check_branch
          %412 = sbr.rel (%p410) target = $region24
        $region23: #{decode_sequence.1} parent=11 // pred_region
          _
        $region24: #{decode_sequence.1} parent=11 // pred_fallthru
          _
        // Predicated region
        $region25: #{decode_sequence.1} parent=11 // pred_check
          %p413 = pneg %p131
        $region26: #{decode_sequence.1} parent=11 // pred_check_branch
          %415 = sbr.rel (%p413) target = $region28
        $region27: #{decode_sequence.1} parent=11 // pred_region
          _
        $region28: #{decode_sequence.1} parent=11 // pred_fallthru
          _
        // Predicated region
        $region29: #{decode_sequence.1} parent=11 // pred_check
          %p416 = pneg %p152
        $region30: #{decode_sequence.1} parent=11 // pred_check_branch
          %418 = sbr.rel (%p416) target = $region32
        $region31: #{decode_sequence.1} parent=11 // pred_region
          %s420 = ssub.s32 2048, 2048
          %421 = vsyncadd [#allocation13], %s420
          %s422 = sshll.u32 [#allocation12], 4
          %s423 = int_to_ptr.vmem [resolvable:$true] %s422
          %428 = dma.hbm_to_vmem [thread:$0]  %s5, 2048, %s423, [#allocation13], 128, 128, 8
        $region32: #{decode_sequence.1} parent=11 // pred_fallthru
          _
        // Predicated region
        $region33: #{decode_sequence.1} parent=11 // pred_check
          %p429 = pneg %p173
        $region34: #{decode_sequence.1} parent=11 // pred_check_branch
          %431 = sbr.rel (%p429) target = $region36
        $region35: #{decode_sequence.1} parent=11 // pred_region
          %s433 = ssub.s32 4096, 4096
          %434 = vsyncadd [#allocation13], %s433
          %s435 = sshll.u32 [#allocation14], 4
          %s436 = int_to_ptr.vmem [resolvable:$true] %s435
          %441 = dma.hbm_to_vmem [thread:$0]  %s6, 4096, %s436, [#allocation13], 256, 256, 16
        $region36: #{decode_sequence.1} parent=11 // pred_fallthru
          _
        // Predicated region
        $region37: #{decode_sequence.1} parent=11 // pred_check
          %p442 = pneg %p194
        $region38: #{decode_sequence.1} parent=11 // pred_check_branch
          %444 = sbr.rel (%p442) target = $region40
        $region39: #{decode_sequence.1} parent=11 // pred_region
          %s446 = ssub.s32 16, 16
          %447 = vsyncadd [#allocation16], %s446
          %s449 = sshll.u32 [#allocation15], 4
          %s450 = int_to_ptr.vmem [resolvable:$true] %s449
          %452 = dma.hbm_to_vmem [thread:$0]  %s7, 16, %s450, [#allocation16]
        $region40: #{decode_sequence.1} parent=11 // pred_fallthru
          _
        // Predicated region
        $region41: #{decode_sequence.1} parent=11 // pred_check
          %p453 = pneg %p215
        $region42: #{decode_sequence.1} parent=11 // pred_check_branch
          %455 = sbr.rel (%p453) target = $region44
        $region43: #{decode_sequence.1} parent=11 // pred_region
          _
        $region44: #{decode_sequence.1} parent=11 // pred_fallthru
          _
        // Predicated region
        $region45: #{decode_sequence.1} parent=11 // pred_check
          %p456 = pneg %p236
        $region46: #{decode_sequence.1} parent=11 // pred_check_branch
          %458 = sbr.rel (%p456) target = $region48
        $region47: #{decode_sequence.1} parent=11 // pred_region
          %s460 = ssub.s32 6144, 6144
          %461 = vsyncadd [#allocation16], %s460
          %s462 = sshll.u32 [#allocation17], 4
          %s463 = int_to_ptr.vmem [resolvable:$true] %s462
          %468 = dma.hbm_to_vmem [thread:$0]  %s9, 6144, %s463, [#allocation16], 192, 192, 12
        $region48: #{decode_sequence.1} parent=11 // pred_fallthru
          _
        // Predicated region
        $region49: #{decode_sequence.1} parent=11 // pred_check
          %p469 = pneg %p257
        $region50: #{decode_sequence.1} parent=11 // pred_check_branch
          %471 = sbr.rel (%p469) target = $region52
        $region51: #{decode_sequence.1} parent=11 // pred_region
          %s473 = ssub.s32 48, 48
          %474 = vsyncadd [#allocation19], %s473
          %s476 = sshll.u32 [#allocation18], 4
          %s477 = int_to_ptr.vmem [resolvable:$true] %s476
          %479 = dma.hbm_to_vmem [thread:$0]  %s10, 48, %s477, [#allocation19]
        $region52: #{decode_sequence.1} parent=11 // pred_fallthru
          _
        // Predicated region
        $region53: #{decode_sequence.1} parent=11 // pred_check
          %p480 = pneg %p278
        $region54: #{decode_sequence.1} parent=11 // pred_check_branch
          %482 = sbr.rel (%p480) target = $region56
        $region55: #{decode_sequence.1} parent=11 // pred_region
          %s484 = ssub.s32 48, 48
          %485 = vsyncadd [#allocation19], %s484
          %s487 = sshll.u32 [#allocation20], 4
          %s488 = int_to_ptr.vmem [resolvable:$true] %s487
          %490 = dma.hbm_to_vmem [thread:$0]  %s11, 48, %s488, [#allocation19]
        $region56: #{decode_sequence.1} parent=11 // pred_fallthru
          _
        // Predicated region
        $region57: #{decode_sequence.1} parent=11 // pred_check
          %p491 = pneg %p304
        $region58: #{decode_sequence.1} parent=11 // pred_check_branch
          %493 = sbr.rel (%p491) target = $region60
        $region59: #{decode_sequence.1} parent=11 // pred_region
          %s495 = ssub.s32 3072, 3072
          %496 = vsyncadd [#allocation22], %s495
          %s497 = smul.addr %s45, 64
          %s498 = scalar_lea.hbm %s12, %s497
          %s499 = sshll.u32 [#allocation21], 4
          %s500 = int_to_ptr.vmem [resolvable:$true] %s499
          %505 = dma.hbm_to_vmem [thread:$0]  %s498, 3072, %s500, [#allocation22], 64, 64, 4
        $region60: #{decode_sequence.1} parent=11 // pred_fallthru
          _
        // Predicated region
        $region61: #{decode_sequence.1} parent=11 // pred_check
          %p506 = pneg %p330
        $region62: #{decode_sequence.1} parent=11 // pred_check_branch
          %508 = sbr.rel (%p506) target = $region64
        $region63: #{decode_sequence.1} parent=11 // pred_region
          %p509 = scmp.lt.s32.totalorder %s45, 0
          %s510 = scalar_select %p509, %s45, 0
          %s511 = scalar_lea.vmem %s13, %s510
        $region64: #{decode_sequence.1} parent=11 // pred_fallthru
          _
      $region12: #{decode_sequence.1} parent=5 // pred_fallthru
        _
      %p512 = scmp.lt.s32.totalorder %s35, 5
      // Predicated region
      $region65: #{decode_sequence.1} parent=5 // pred_check
        %p513 = pneg %p512
      $region66: #{decode_sequence.1} parent=5 // pred_check_branch
        %515 = sbr.rel (%p513) target = $region68
      $region67: #{decode_sequence.1} parent=5 // pred_region
        _
      $region68: #{decode_sequence.1} parent=5 // pred_fallthru
        _
      %p516 = scmp.le.s32.totalorder 1, %s35
      %p517 = scmp.lt.s32.totalorder %s35, 6
      %p518 = pnand %p516, %p517
      %p519 = pneg %p518
      // Predicated region
      $region69: #{decode_sequence.1} parent=5 // pred_check
        _
      $region70: #{decode_sequence.1} parent=5 // pred_check_branch
        %521 = sbr.rel (%p518) target = $region72
      $region71: #{decode_sequence.1} parent=5 // pred_region
        %s522 = ssub.s32 %s35, 1
        // Predicated region
        $region73: #{decode_sequence.1} parent=71 // pred_check
          %p523 = pneg %p89
        $region74: #{decode_sequence.1} parent=71 // pred_check_branch
          %525 = sbr.rel (%p523) target = $region76
        $region75: #{decode_sequence.1} parent=71 // pred_region
          %526 = dma.done [#allocation10], 256
        $region76: #{decode_sequence.1} parent=71 // pred_fallthru
          _
        // Predicated region
        $region77: #{decode_sequence.1} parent=71 // pred_check
          %p527 = pneg %p152
        $region78: #{decode_sequence.1} parent=71 // pred_check_branch
          %529 = sbr.rel (%p527) target = $region80
        $region79: #{decode_sequence.1} parent=71 // pred_region
          %530 = dma.done [#allocation13], 2048
        $region80: #{decode_sequence.1} parent=71 // pred_fallthru
          _
        // Predicated region
        $region81: #{decode_sequence.1} parent=71 // pred_check
          %p531 = pneg %p173
        $region82: #{decode_sequence.1} parent=71 // pred_check_branch
          %533 = sbr.rel (%p531) target = $region84
        $region83: #{decode_sequence.1} parent=71 // pred_region
          %534 = dma.done [#allocation13], 4096
        $region84: #{decode_sequence.1} parent=71 // pred_fallthru
          _
        // Predicated region
        $region85: #{decode_sequence.1} parent=71 // pred_check
          %p535 = pneg %p194
        $region86: #{decode_sequence.1} parent=71 // pred_check_branch
          %537 = sbr.rel (%p535) target = $region88
        $region87: #{decode_sequence.1} parent=71 // pred_region
          %538 = dma.done [#allocation16], 16
        $region88: #{decode_sequence.1} parent=71 // pred_fallthru
          _
        // Predicated region
        $region89: #{decode_sequence.1} parent=71 // pred_check
          %p539 = pneg %p236
        $region90: #{decode_sequence.1} parent=71 // pred_check_branch
          %541 = sbr.rel (%p539) target = $region92
        $region91: #{decode_sequence.1} parent=71 // pred_region
          %542 = dma.done [#allocation16], 6144
        $region92: #{decode_sequence.1} parent=71 // pred_fallthru
          _
        // Predicated region
        $region93: #{decode_sequence.1} parent=71 // pred_check
          %p543 = pneg %p257
        $region94: #{decode_sequence.1} parent=71 // pred_check_branch
          %545 = sbr.rel (%p543) target = $region96
        $region95: #{decode_sequence.1} parent=71 // pred_region
          %546 = dma.done [#allocation19], 48
        $region96: #{decode_sequence.1} parent=71 // pred_fallthru
          _
        // Predicated region
        $region97: #{decode_sequence.1} parent=71 // pred_check
          %p547 = pneg %p278
        $region98: #{decode_sequence.1} parent=71 // pred_check_branch
          %549 = sbr.rel (%p547) target = $region100
        $region99: #{decode_sequence.1} parent=71 // pred_region
          %550 = dma.done [#allocation19], 48
        $region100: #{decode_sequence.1} parent=71 // pred_fallthru
          _
        // Predicated region
        $region101: #{decode_sequence.1} parent=71 // pred_check
          %p551 = pneg %p304
        $region102: #{decode_sequence.1} parent=71 // pred_check_branch
          %553 = sbr.rel (%p551) target = $region104
        $region103: #{decode_sequence.1} parent=71 // pred_region
          %554 = dma.done [#allocation22], 3072
        $region104: #{decode_sequence.1} parent=71 // pred_fallthru
          _
        %p555 = pneg %p68
        %p556 = pneg %p65
        %p557 = pneg %p89
        %p558 = pneg %p86
        %p559 = pneg %p110
        %p560 = pneg %p107
        %p561 = pneg %p131
        %p562 = pneg %p128
        %p563 = pneg %p152
        %p564 = pneg %p149
        %p565 = pneg %p173
        %p566 = pneg %p170
        %p567 = pneg %p194
        %p568 = pneg %p191
        %p569 = pneg %p215
        %p570 = pneg %p212
        %p571 = pneg %p236
        %p572 = pneg %p233
        %p573 = pneg %p257
        %p574 = pneg %p254
        %p575 = pneg %p278
        %p576 = pneg %p275
        %p577 = pneg %p304
        %p578 = pneg %p301
        %p579 = scmp.lt.s32.totalorder %s45, 0
        %s580 = scalar_select %p579, %s45, 0
        %s581 = scalar_lea.vmem %s13, %s580
        %p582 = pneg %p330
        %p583 = pneg %p327
        %p584 = pneg %p358
        %p585 = pneg %p355
        %s586 = sand.u32 %s345, 1
        %s587 = scalar_lea.sflag [#allocation11], %s586
        %s588 = sand.u32 %s345, 1
        %s589 = smul.addr %s588, 16
        %s590 = scalar_lea.vmem [#allocation23], %s589
        %p591 = pneg %p379
        %p592 = pneg %p376
        %p593 = scmp.lt.s32.totalorder %s45, 0
        %s594 = scalar_select %p593, %s45, 0
        %s595 = scalar_lea.vmem %s13, %s594
        %p597 = scmp.eq.s32.totalorder %s45, 0
        // Predicated region
        $region105: #{decode_sequence.1} parent=71 // pred_check
          %p598 = pneg %p597
        $region106: #{decode_sequence.1} parent=71 // pred_check_branch
          %600 = sbr.rel (%p598) target = $region108
        $region107: #{decode_sequence.1} parent=71 // pred_region
          %p601 = scmp.eq.s32.totalorder %s44, 0
          // Predicated region
          $region109: #{decode_sequence.1} parent=107 // pred_check
            %p602 = pneg %p601
          $region110: #{decode_sequence.1} parent=107 // pred_check_branch
            %604 = sbr.rel (%p602) target = $region112
          $region111: #{decode_sequence.1} parent=107 // pred_region
            %v605 = vld [vmem:[#allocation9] sm:$0xff]
            %v606 = vld [vmem:[#allocation9 + $0x8] sm:$0xff]
            %607 = vst [vmem:[#allocation2] sm:$0xff] %v605
            %608 = vst [vmem:[#allocation2 + $0x8] sm:$0xff] %v606
            %v609 = vld [vmem:[%s1] sm:$0xff]
            %v610 = vld [vmem:[%s1 + $0x8] sm:$0xff]
            %vm611 = vcmask 7168
            %612 = vst.msk [vmem:[#allocation6] sm:$0xff] %vm611, %v609
            %613 = vst.msk [vmem:[#allocation6 + $0x8] sm:$0xff] %vm611, %v610
          $region112: #{decode_sequence.1} parent=107 // pred_fallthru
            _
          %v614 = vld [vmem:[#allocation2] sm:$0xff]
          %v615 = vld [vmem:[#allocation2 + $0x8] sm:$0xff]
          %v616 = vpack.c.bf16 %v615, %v614
          %v617 = vlaneseq
          %v618 = vand.u32 %v617, 127
          %v619 = vld [vmem:[#allocation6] sm:$0xff]
          %v620 = vld [vmem:[#allocation6 + $0x8] sm:$0xff]
          %621 = vset.pattern.permute.xlu0 0
          %622 = vperm.xlu0 %621, %v619
          %v623 = vpop.permute.xlu0 %622
          %624 = vset.pattern.permute.xlu0 0
          %625 = vperm.xlu0 %624, %v620
          %v626 = vpop.permute.xlu0 %625
          %vm627 = vcmp.eq.s32.totalorder %v618, %v623
          %vm628 = vcmp.eq.s32.totalorder %v618, %v626
          %v629 = vsel %vm627, 1, 0
          %v630 = vsel %vm628, 1, 0
          %v631 = vcvt.s32.f32 %v629
          %v632 = vcvt.s32.f32 %v630
          %v633 = vpack.c.bf16 %v632, %v631
          %v634 = vld [vmem:[%s3] sm:$0xf]
          %v635 = vld [vmem:[%s3 + $0x4] sm:$0xf]
          %v636 = vld [vmem:[%s3 + $0x8] sm:$0xf]
          %v637 = vld [vmem:[%s3 + $0xc] sm:$0xf]
          %v638 = vld [vmem:[%s3 + $0x10] sm:$0xf]
          %v639 = vld [vmem:[%s3 + $0x14] sm:$0xf]
          %v640 = vld [vmem:[%s3 + $0x18] sm:$0xf]
          %v641 = vld [vmem:[%s3 + $0x1c] sm:$0xf]
          %v642 = vld [vmem:[%s3 + $0x20] sm:$0xf]
          %v643 = vld [vmem:[%s3 + $0x24] sm:$0xf]
          %v644 = vld [vmem:[%s3 + $0x28] sm:$0xf]
          %v645 = vld [vmem:[%s3 + $0x2c] sm:$0xf]
          %v646 = vld [vmem:[%s3 + $0x30] sm:$0xf]
          %v647 = vld [vmem:[%s3 + $0x34] sm:$0xf]
          %v648 = vld [vmem:[%s3 + $0x38] sm:$0xf]
          %v649 = vld [vmem:[%s3 + $0x3c] sm:$0xf]
          %v666 = vunpack.c.l.b16 %v634
          %v667 = vunpack.c.l.b16 %v635
          %v668 = vunpack.c.l.b16 %v636
          %v669 = vunpack.c.l.b16 %v637
          %v670 = vunpack.c.l.b16 %v638
          %v671 = vunpack.c.l.b16 %v639
          %v672 = vunpack.c.l.b16 %v640
          %v673 = vunpack.c.l.b16 %v641
          %v674 = vunpack.c.l.b16 %v642
          %v675 = vunpack.c.l.b16 %v643
          %v676 = vunpack.c.l.b16 %v644
          %v677 = vunpack.c.l.b16 %v645
          %v678 = vunpack.c.l.b16 %v646
          %v679 = vunpack.c.l.b16 %v647
          %v680 = vunpack.c.l.b16 %v648
          %v681 = vunpack.c.l.b16 %v649
          %v682 = vpack.c.b16 %v667, %v666
          %v683 = vpack.c.b16 %v669, %v668
          %v684 = vpack.c.b16 %v671, %v670
          %v685 = vpack.c.b16 %v673, %v672
          %v686 = vpack.c.b16 %v675, %v674
          %v687 = vpack.c.b16 %v677, %v676
          %v688 = vpack.c.b16 %v679, %v678
          %v689 = vpack.c.b16 %v681, %v680
          %698 = vmatprep.subr.bf16.mxu0 0
          %699 = vmatpush1.bf16.msra.mxu0 %v682
          %700 = vmatprep.subr.bf16.mxu0 0
          %701 = vmatpush1.bf16.msra.mxu0 %v683
          %702 = vmatprep.subr.bf16.mxu0 0
          %703 = vmatpush1.bf16.msra.mxu0 %v684
          %704 = vmatprep.subr.bf16.mxu0 0
          %705 = vmatpush1.bf16.msra.mxu0 %v685
          %706 = vmatprep.subr.bf16.mxu0 0
          %707 = vmatpush1.bf16.msra.mxu0 %v686
          %708 = vmatprep.subr.bf16.mxu0 0
          %709 = vmatpush1.bf16.msra.mxu0 %v687
          %710 = vmatprep.subr.bf16.mxu0 0
          %711 = vmatpush1.bf16.msra.mxu0 %v688
          %712 = vmatprep.subr.bf16.mxu0 0
          %713 = vmatpush1.bf16.msra.mxu0 %v689
          %714 = vmatprep.subr.bf16.mxu0 0
          %715 = vmatpush1.bf16.msra.mxu0 0
          %716 = vmatprep.subr.bf16.mxu0 0
          %717 = vmatpush1.bf16.msra.mxu0 0
          %718 = vmatprep.subr.bf16.mxu0 0
          %719 = vmatpush1.bf16.msra.mxu0 0
          %720 = vmatprep.subr.bf16.mxu0 0
          %721 = vmatpush1.bf16.msra.mxu0 0
          %722 = vmatprep.subr.bf16.mxu0 0
          %723 = vmatpush1.bf16.msra.mxu0 0
          %724 = vmatprep.subr.bf16.mxu0 0
          %725 = vmatpush1.bf16.msra.mxu0 0
          %726 = vmatprep.subr.bf16.mxu0 0
          %727 = vmatpush1.bf16.msra.mxu0 0
          %728 = vmatprep.subr.bf16.mxu0 0
          %729 = vmatpush1.bf16.msra.mxu0 0
          %730 = vmatprep.mubr.bf16.mxu0 0
          %731 = vmatmul.mubr.bf16.gmra.mrb[0].mxu0 %v633
          %v732 = vpop.f32.mrb[0].mxu0
          %v733 = vadd.f32 0.0, %v732
          %v734 = vpop.f32.mrb[0].mxu0
          %v735 = vpop.f32.mrb[0].mxu0
          %v736 = vadd.f32 0.0, %v735
          %v737 = vpop.f32.mrb[0].mxu0
          %738 = vdwg.mxu0
          %v739 = vpack.c.bf16 %v736, %v733
          %v740 = vld [vmem:[#allocation14] sm:$0xff]
          %v741 = vld [vmem:[#allocation14 + $0x8] sm:$0xff]
          %v742 = vld [vmem:[#allocation14 + $0x10] sm:$0xff]
          %v743 = vld [vmem:[#allocation14 + $0x18] sm:$0xff]
          %v744 = vld [vmem:[#allocation14 + $0x20] sm:$0xff]
          %v745 = vld [vmem:[#allocation14 + $0x28] sm:$0xff]
          %v746 = vld [vmem:[#allocation14 + $0x30] sm:$0xff]
          %v747 = vld [vmem:[#allocation14 + $0x38] sm:$0xff]
          %v748 = vld [vmem:[#allocation14 + $0x40] sm:$0xff]
          %v749 = vld [vmem:[#allocation14 + $0x48] sm:$0xff]
          %v750 = vld [vmem:[#allocation14 + $0x50] sm:$0xff]
          %v751 = vld [vmem:[#allocation14 + $0x58] sm:$0xff]
          %v752 = vld [vmem:[#allocation14 + $0x60] sm:$0xff]
          %v753 = vld [vmem:[#allocation14 + $0x68] sm:$0xff]
          %v754 = vld [vmem:[#allocation14 + $0x70] sm:$0xff]
          %v755 = vld [vmem:[#allocation14 + $0x78] sm:$0xff]
          %v756 = vld [vmem:[#allocation14 + $0x80] sm:$0xff]
          %v757 = vld [vmem:[#allocation14 + $0x88] sm:$0xff]
          %v758 = vld [vmem:[#allocation14 + $0x90] sm:$0xff]
          %v759 = vld [vmem:[#allocation14 + $0x98] sm:$0xff]
          %v760 = vld [vmem:[#allocation14 + $0xa0] sm:$0xff]
          %v761 = vld [vmem:[#allocation14 + $0xa8] sm:$0xff]
          %v762 = vld [vmem:[#allocation14 + $0xb0] sm:$0xff]
          %v763 = vld [vmem:[#allocation14 + $0xb8] sm:$0xff]
          %v764 = vld [vmem:[#allocation14 + $0xc0] sm:$0xff]
          %v765 = vld [vmem:[#allocation14 + $0xc8] sm:$0xff]
          %v766 = vld [vmem:[#allocation14 + $0xd0] sm:$0xff]
          %v767 = vld [vmem:[#allocation14 + $0xd8] sm:$0xff]
          %v768 = vld [vmem:[#allocation14 + $0xe0] sm:$0xff]
          %v769 = vld [vmem:[#allocation14 + $0xe8] sm:$0xff]
          %v770 = vld [vmem:[#allocation14 + $0xf0] sm:$0xff]
          %v771 = vld [vmem:[#allocation14 + $0xf8] sm:$0xff]
          %v804 = vunpack.c.l.b16 %v740
          %v805 = vunpack.c.h.b16 %v740
          %v806 = vunpack.c.l.b16 %v741
          %v807 = vunpack.c.h.b16 %v741
          %v808 = vunpack.c.l.b16 %v742
          %v809 = vunpack.c.h.b16 %v742
          %v810 = vunpack.c.l.b16 %v743
          %v811 = vunpack.c.h.b16 %v743
          %v812 = vunpack.c.l.b16 %v744
          %v813 = vunpack.c.h.b16 %v744
          %v814 = vunpack.c.l.b16 %v745
          %v815 = vunpack.c.h.b16 %v745
          %v816 = vunpack.c.l.b16 %v746
          %v817 = vunpack.c.h.b16 %v746
          %v818 = vunpack.c.l.b16 %v747
          %v819 = vunpack.c.h.b16 %v747
          %v820 = vunpack.c.l.b16 %v748
          %v821 = vunpack.c.h.b16 %v748
          %v822 = vunpack.c.l.b16 %v749
          %v823 = vunpack.c.h.b16 %v749
          %v824 = vunpack.c.l.b16 %v750
          %v825 = vunpack.c.h.b16 %v750
          %v826 = vunpack.c.l.b16 %v751
          %v827 = vunpack.c.h.b16 %v751
          %v828 = vunpack.c.l.b16 %v752
          %v829 = vunpack.c.h.b16 %v752
          %v830 = vunpack.c.l.b16 %v753
          %v831 = vunpack.c.h.b16 %v753
          %v832 = vunpack.c.l.b16 %v754
          %v833 = vunpack.c.h.b16 %v754
          %v834 = vunpack.c.l.b16 %v755
          %v835 = vunpack.c.h.b16 %v755
          %v836 = vunpack.c.l.b16 %v756
          %v837 = vunpack.c.h.b16 %v756
          %v838 = vunpack.c.l.b16 %v757
          %v839 = vunpack.c.h.b16 %v757
          %v840 = vunpack.c.l.b16 %v758
          %v841 = vunpack.c.h.b16 %v758
          %v842 = vunpack.c.l.b16 %v759
          %v843 = vunpack.c.h.b16 %v759
          %v844 = vunpack.c.l.b16 %v760
          %v845 = vunpack.c.h.b16 %v760
          %v846 = vunpack.c.l.b16 %v761
          %v847 = vunpack.c.h.b16 %v761
          %v848 = vunpack.c.l.b16 %v762
          %v849 = vunpack.c.h.b16 %v762
          %v850 = vunpack.c.l.b16 %v763
          %v851 = vunpack.c.h.b16 %v763
          %v852 = vunpack.c.l.b16 %v764
          %v853 = vunpack.c.h.b16 %v764
          %v854 = vunpack.c.l.b16 %v765
          %v855 = vunpack.c.h.b16 %v765
          %v856 = vunpack.c.l.b16 %v766
          %v857 = vunpack.c.h.b16 %v766
          %v858 = vunpack.c.l.b16 %v767
          %v859 = vunpack.c.h.b16 %v767
          %v860 = vunpack.c.l.b16 %v768
          %v861 = vunpack.c.h.b16 %v768
          %v862 = vunpack.c.l.b16 %v769
          %v863 = vunpack.c.h.b16 %v769
          %v864 = vunpack.c.l.b16 %v770
          %v865 = vunpack.c.h.b16 %v770
          %v866 = vunpack.c.l.b16 %v771
          %v867 = vunpack.c.h.b16 %v771
          %v868 = vpack.c.b16 %v808, %v804
          %v869 = vpack.c.b16 %v809, %v805
          %v870 = vpack.c.b16 %v810, %v806
          %v871 = vpack.c.b16 %v811, %v807
          %v872 = vpack.c.b16 %v816, %v812
          %v873 = vpack.c.b16 %v817, %v813
          %v874 = vpack.c.b16 %v818, %v814
          %v875 = vpack.c.b16 %v819, %v815
          %v876 = vpack.c.b16 %v824, %v820
          %v877 = vpack.c.b16 %v825, %v821
          %v878 = vpack.c.b16 %v826, %v822
          %v879 = vpack.c.b16 %v827, %v823
          %v880 = vpack.c.b16 %v832, %v828
          %v881 = vpack.c.b16 %v833, %v829
          %v882 = vpack.c.b16 %v834, %v830
          %v883 = vpack.c.b16 %v835, %v831
          %v884 = vpack.c.b16 %v840, %v836
          %v885 = vpack.c.b16 %v841, %v837
          %v886 = vpack.c.b16 %v842, %v838
          %v887 = vpack.c.b16 %v843, %v839
          %v888 = vpack.c.b16 %v848, %v844
          %v889 = vpack.c.b16 %v849, %v845
          %v890 = vpack.c.b16 %v850, %v846
          %v891 = vpack.c.b16 %v851, %v847
          %v892 = vpack.c.b16 %v856, %v852
          %v893 = vpack.c.b16 %v857, %v853
          %v894 = vpack.c.b16 %v858, %v854
          %v895 = vpack.c.b16 %v859, %v855
          %v896 = vpack.c.b16 %v864, %v860
          %v897 = vpack.c.b16 %v865, %v861
          %v898 = vpack.c.b16 %v866, %v862
          %v899 = vpack.c.b16 %v867, %v863
          %932 = vmatprep.subr.bf16.mxu0 %v869
          %933 = vmatpush1.bf16.msra.mxu0 %v868
          %934 = vmatprep.subr.bf16.mxu0 %v873
          %935 = vmatpush1.bf16.msra.mxu0 %v872
          %936 = vmatprep.subr.bf16.mxu0 %v877
          %937 = vmatpush1.bf16.msra.mxu0 %v876
          %938 = vmatprep.subr.bf16.mxu0 %v881
          %939 = vmatpush1.bf16.msra.mxu0 %v880
          %940 = vmatprep.subr.bf16.mxu0 %v885
          %941 = vmatpush1.bf16.msra.mxu0 %v884
          %942 = vmatprep.subr.bf16.mxu0 %v889
          %943 = vmatpush1.bf16.msra.mxu0 %v888
          %944 = vmatprep.subr.bf16.mxu0 %v893
          %945 = vmatpush1.bf16.msra.mxu0 %v892
          %946 = vmatprep.subr.bf16.mxu0 %v897
          %947 = vmatpush1.bf16.msra.mxu0 %v896
          %948 = vmatprep.subr.bf16.mxu0 0
          %949 = vmatpush1.bf16.msra.mxu0 0
          %950 = vmatprep.subr.bf16.mxu0 0
          %951 = vmatpush1.bf16.msra.mxu0 0
          %952 = vmatprep.subr.bf16.mxu0 0
          %953 = vmatpush1.bf16.msra.mxu0 0
          %954 = vmatprep.subr.bf16.mxu0 0
          %955 = vmatpush1.bf16.msra.mxu0 0
          %956 = vmatprep.subr.bf16.mxu0 0
          %957 = vmatpush1.bf16.msra.mxu0 0
          %958 = vmatprep.subr.bf16.mxu0 0
          %959 = vmatpush1.bf16.msra.mxu0 0
          %960 = vmatprep.subr.bf16.mxu0 0
          %961 = vmatpush1.bf16.msra.mxu0 0
          %962 = vmatprep.subr.bf16.mxu0 0
          %963 = vmatpush1.bf16.msra.mxu0 0
          %964 = vmatprep.mubr.bf16.mxu0 0
          %965 = vmatmul.mubr.bf16.gmra.mrb[0].mxu0 %v616
          %v966 = vpop.f32.mrb[0].mxu0
          %v967 = vadd.f32 0.0, %v966
          %v968 = vpop.f32.mrb[0].mxu0
          %v969 = vadd.f32 0.0, %v968
          %v970 = vpop.f32.mrb[0].mxu0
          %v971 = vadd.f32 0.0, %v970
          %v972 = vpop.f32.mrb[0].mxu0
          %v973 = vadd.f32 0.0, %v972
          %974 = vdwg.mxu0
          %975 = vmatprep.subr.bf16.mxu0 %v871
          %976 = vmatpush1.bf16.msra.mxu0 %v870
          %977 = vmatprep.subr.bf16.mxu0 %v875
          %978 = vmatpush1.bf16.msra.mxu0 %v874
          %979 = vmatprep.subr.bf16.mxu0 %v879
          %980 = vmatpush1.bf16.msra.mxu0 %v878
          %981 = vmatprep.subr.bf16.mxu0 %v883
          %982 = vmatpush1.bf16.msra.mxu0 %v882
          %983 = vmatprep.subr.bf16.mxu0 %v887
          %984 = vmatpush1.bf16.msra.mxu0 %v886
          %985 = vmatprep.subr.bf16.mxu0 %v891
          %986 = vmatpush1.bf16.msra.mxu0 %v890
          %987 = vmatprep.subr.bf16.mxu0 %v895
          %988 = vmatpush1.bf16.msra.mxu0 %v894
          %989 = vmatprep.subr.bf16.mxu0 %v899
          %990 = vmatpush1.bf16.msra.mxu0 %v898
          %991 = vmatprep.subr.bf16.mxu0 0
          %992 = vmatpush1.bf16.msra.mxu0 0
          %993 = vmatprep.subr.bf16.mxu0 0
          %994 = vmatpush1.bf16.msra.mxu0 0
          %995 = vmatprep.subr.bf16.mxu0 0
          %996 = vmatpush1.bf16.msra.mxu0 0
          %997 = vmatprep.subr.bf16.mxu0 0
          %998 = vmatpush1.bf16.msra.mxu0 0
          %999 = vmatprep.subr.bf16.mxu0 0
          %1000 = vmatpush1.bf16.msra.mxu0 0
          %1001 = vmatprep.subr.bf16.mxu0 0
          %1002 = vmatpush1.bf16.msra.mxu0 0
          %1003 = vmatprep.subr.bf16.mxu0 0
          %1004 = vmatpush1.bf16.msra.mxu0 0
          %1005 = vmatprep.subr.bf16.mxu0 0
          %1006 = vmatpush1.bf16.msra.mxu0 0
          %1007 = vmatprep.mubr.bf16.mxu0 0
          %1008 = vmatmul.mubr.bf16.gmra.mrb[0].mxu0 %v616
          %v1009 = vpop.f32.mrb[0].mxu0
          %v1010 = vadd.f32 0.0, %v1009
          %v1011 = vpop.f32.mrb[0].mxu0
          %v1012 = vadd.f32 0.0, %v1011
          %v1013 = vpop.f32.mrb[0].mxu0
          %v1014 = vadd.f32 0.0, %v1013
          %v1015 = vpop.f32.mrb[0].mxu0
          %v1016 = vadd.f32 0.0, %v1015
          %1017 = vdwg.mxu0
          %v1018 = vld [vmem:[#allocation20] sm:$0x7]
          %v1020 = vlaneseq
          %v1021 = vshrl.u32 %v1020, 7
          %v1022 = vsub.s32 0, %v1021
          %v1023 = vrot.slane %v1018, %v1022
          %v1024 = vlaneseq
          %v1025 = vshrl.u32 %v1024, 7
          %v1026 = vsub.s32 1, %v1025
          %v1027 = vrot.slane %v1018, %v1026
          %v1028 = vlaneseq
          %v1029 = vshrl.u32 %v1028, 7
          %v1030 = vsub.s32 2, %v1029
          %v1031 = vrot.slane %v1018, %v1030
          %v1035 = vadd.f32 %v969, %v1023
          %v1036 = vadd.f32 %v1010, %v1027
          %v1037 = vadd.f32 %v1012, %v1031
          %v1038 = vadd.f32 %v973, %v1023
          %v1039 = vadd.f32 %v1014, %v1027
          %v1040 = vadd.f32 %v1016, %v1031
          %v1041 = vld [vmem:[#allocation12] sm:$0xff]
          %v1042 = vld [vmem:[#allocation12 + $0x8] sm:$0xff]
          %v1043 = vld [vmem:[#allocation12 + $0x10] sm:$0xff]
          %v1044 = vld [vmem:[#allocation12 + $0x18] sm:$0xff]
          %v1045 = vld [vmem:[#allocation12 + $0x20] sm:$0xff]
          %v1046 = vld [vmem:[#allocation12 + $0x28] sm:$0xff]
          %v1047 = vld [vmem:[#allocation12 + $0x30] sm:$0xff]
          %v1048 = vld [vmem:[#allocation12 + $0x38] sm:$0xff]
          %v1049 = vld [vmem:[#allocation12 + $0x40] sm:$0xff]
          %v1050 = vld [vmem:[#allocation12 + $0x48] sm:$0xff]
          %v1051 = vld [vmem:[#allocation12 + $0x50] sm:$0xff]
          %v1052 = vld [vmem:[#allocation12 + $0x58] sm:$0xff]
          %v1053 = vld [vmem:[#allocation12 + $0x60] sm:$0xff]
          %v1054 = vld [vmem:[#allocation12 + $0x68] sm:$0xff]
          %v1055 = vld [vmem:[#allocation12 + $0x70] sm:$0xff]
          %v1056 = vld [vmem:[#allocation12 + $0x78] sm:$0xff]
          %v1059 = vcombine.high %v967, %v967
          %v1061 = vunpack.c.l.s4 1966171168
          %v1062 = vunpack.c.0.s8 %v1061
          %v1063 = vlaneseq
          %v1064 = vshrl.u32 %v1063, 7
          %v1065 = vsub.s32 %v1062, %v1064
          %v1066 = vrot.slane %v967, %v1065
          %v1068 = vunpack.c.l.s4 1966171168
          %v1069 = vunpack.c.0.s8 %v1068
          %v1070 = vlaneseq
          %v1071 = vshrl.u32 %v1070, 7
          %v1072 = vsub.s32 %v1069, %v1071
          %v1073 = vrot.slane %v1059, %v1072
          %v1074 = vcombine.high %v1066, %v1066
          %v1075 = vcombine.high %v1073, %v1073
          %v1077 = vunpack.c.l.s4 1966171168
          %v1078 = vunpack.c.0.s8 %v1077
          %v1079 = vlaneseq
          %v1080 = vshrl.u32 %v1079, 7
          %v1081 = vsub.s32 %v1078, %v1080
          %v1082 = vrot.slane %v1066, %v1081
          %v1084 = vunpack.c.l.s4 1966171168
          %v1085 = vunpack.c.0.s8 %v1084
          %v1086 = vlaneseq
          %v1087 = vshrl.u32 %v1086, 7
          %v1088 = vsub.s32 %v1085, %v1087
          %v1089 = vrot.slane %v1073, %v1088
          %v1091 = vunpack.c.l.s4 1966171168
          %v1092 = vunpack.c.0.s8 %v1091
          %v1093 = vlaneseq
          %v1094 = vshrl.u32 %v1093, 7
          %v1095 = vsub.s32 %v1092, %v1094
          %v1096 = vrot.slane %v1074, %v1095
          %v1098 = vunpack.c.l.s4 1966171168
          %v1099 = vunpack.c.0.s8 %v1098
          %v1100 = vlaneseq
          %v1101 = vshrl.u32 %v1100, 7
          %v1102 = vsub.s32 %v1099, %v1101
          %v1103 = vrot.slane %v1075, %v1102
          %v1104 = vcombine.high %v1082, %v1082
          %v1105 = vcombine.high %v1089, %v1089
          %v1106 = vcombine.high %v1096, %v1096
          %v1107 = vcombine.high %v1103, %v1103
          %v1108 = vcombine.high %v971, %v971
          %v1110 = vunpack.c.l.s4 1966171168
          %v1111 = vunpack.c.0.s8 %v1110
          %v1112 = vlaneseq
          %v1113 = vshrl.u32 %v1112, 7
          %v1114 = vsub.s32 %v1111, %v1113
          %v1115 = vrot.slane %v971, %v1114
          %v1117 = vunpack.c.l.s4 1966171168
          %v1118 = vunpack.c.0.s8 %v1117
          %v1119 = vlaneseq
          %v1120 = vshrl.u32 %v1119, 7
          %v1121 = vsub.s32 %v1118, %v1120
          %v1122 = vrot.slane %v1108, %v1121
          %v1123 = vcombine.high %v1115, %v1115
          %v1124 = vcombine.high %v1122, %v1122
          %v1126 = vunpack.c.l.s4 1966171168
          %v1127 = vunpack.c.0.s8 %v1126
          %v1128 = vlaneseq
          %v1129 = vshrl.u32 %v1128, 7
          %v1130 = vsub.s32 %v1127, %v1129
          %v1131 = vrot.slane %v1115, %v1130
          %v1133 = vunpack.c.l.s4 1966171168
          %v1134 = vunpack.c.0.s8 %v1133
          %v1135 = vlaneseq
          %v1136 = vshrl.u32 %v1135, 7
          %v1137 = vsub.s32 %v1134, %v1136
          %v1138 = vrot.slane %v1122, %v1137
          %v1140 = vunpack.c.l.s4 1966171168
          %v1141 = vunpack.c.0.s8 %v1140
          %v1142 = vlaneseq
          %v1143 = vshrl.u32 %v1142, 7
          %v1144 = vsub.s32 %v1141, %v1143
          %v1145 = vrot.slane %v1123, %v1144
          %v1147 = vunpack.c.l.s4 1966171168
          %v1148 = vunpack.c.0.s8 %v1147
          %v1149 = vlaneseq
          %v1150 = vshrl.u32 %v1149, 7
          %v1151 = vsub.s32 %v1148, %v1150
          %v1152 = vrot.slane %v1124, %v1151
          %v1153 = vcombine.high %v1131, %v1131
          %v1154 = vcombine.high %v1138, %v1138
          %v1155 = vcombine.high %v1145, %v1145
          %v1156 = vcombine.high %v1152, %v1152
          %v1157 = vlaneseq
          %v1158 = vshrl.u32 %v1157, 7
          %v1159 = vsub.s32 0, %v1158
          %v1160 = vrot.slane %v1082, %v1159
          %v1161 = vlaneseq
          %v1162 = vshrl.u32 %v1161, 7
          %v1163 = vsub.s32 0, %v1162
          %v1164 = vrot.slane %v1096, %v1163
          %v1165 = vlaneseq
          %v1166 = vshrl.u32 %v1165, 7
          %v1167 = vsub.s32 0, %v1166
          %v1168 = vrot.slane %v1104, %v1167
          %v1169 = vlaneseq
          %v1170 = vshrl.u32 %v1169, 7
          %v1171 = vsub.s32 0, %v1170
          %v1172 = vrot.slane %v1106, %v1171
          %v1173 = vlaneseq
          %v1174 = vshrl.u32 %v1173, 7
          %v1175 = vsub.s32 0, %v1174
          %v1176 = vrot.slane %v1089, %v1175
          %v1177 = vlaneseq
          %v1178 = vshrl.u32 %v1177, 7
          %v1179 = vsub.s32 0, %v1178
          %v1180 = vrot.slane %v1103, %v1179
          %v1181 = vlaneseq
          %v1182 = vshrl.u32 %v1181, 7
          %v1183 = vsub.s32 0, %v1182
          %v1184 = vrot.slane %v1105, %v1183
          %v1185 = vlaneseq
          %v1186 = vshrl.u32 %v1185, 7
          %v1187 = vsub.s32 0, %v1186
          %v1188 = vrot.slane %v1107, %v1187
          %v1189 = vlaneseq
          %v1190 = vshrl.u32 %v1189, 7
          %v1191 = vsub.s32 0, %v1190
          %v1192 = vrot.slane %v1131, %v1191
          %v1193 = vlaneseq
          %v1194 = vshrl.u32 %v1193, 7
          %v1195 = vsub.s32 0, %v1194
          %v1196 = vrot.slane %v1145, %v1195
          %v1197 = vlaneseq
          %v1198 = vshrl.u32 %v1197, 7
          %v1199 = vsub.s32 0, %v1198
          %v1200 = vrot.slane %v1153, %v1199
          %v1201 = vlaneseq
          %v1202 = vshrl.u32 %v1201, 7
          %v1203 = vsub.s32 0, %v1202
          %v1204 = vrot.slane %v1155, %v1203
          %v1205 = vlaneseq
          %v1206 = vshrl.u32 %v1205, 7
          %v1207 = vsub.s32 0, %v1206
          %v1208 = vrot.slane %v1138, %v1207
          %v1209 = vlaneseq
          %v1210 = vshrl.u32 %v1209, 7
          %v1211 = vsub.s32 0, %v1210
          %v1212 = vrot.slane %v1152, %v1211
          %v1213 = vlaneseq
          %v1214 = vshrl.u32 %v1213, 7
          %v1215 = vsub.s32 0, %v1214
          %v1216 = vrot.slane %v1154, %v1215
          %v1217 = vlaneseq
          %v1218 = vshrl.u32 %v1217, 7
          %v1219 = vsub.s32 0, %v1218
          %v1220 = vrot.slane %v1156, %v1219
          %v1237 = vadd.f32 %v1041, %v1160
          %v1238 = vadd.f32 %v1042, %v1164
          %v1239 = vadd.f32 %v1043, %v1168
          %v1240 = vadd.f32 %v1044, %v1172
          %v1241 = vadd.f32 %v1045, %v1176
          %v1242 = vadd.f32 %v1046, %v1180
          %v1243 = vadd.f32 %v1047, %v1184
          %v1244 = vadd.f32 %v1048, %v1188
          %v1245 = vadd.f32 %v1049, %v1192
          %v1246 = vadd.f32 %v1050, %v1196
          %v1247 = vadd.f32 %v1051, %v1200
          %v1248 = vadd.f32 %v1052, %v1204
          %v1249 = vadd.f32 %v1053, %v1208
          %v1250 = vadd.f32 %v1054, %v1212
          %v1251 = vadd.f32 %v1055, %v1216
          %v1252 = vadd.f32 %v1056, %v1220
          %v1253 = vld [vmem:[#allocation15] sm:$0x1]
          %v1255 = vlaneseq
          %v1256 = vshrl.u32 %v1255, 7
          %v1257 = vsub.s32 0, %v1256
          %v1258 = vrot.slane %v1253, %v1257
          %v1260 = vadd.f32 %v1237, %v1258
          %v1261 = vadd.f32 %v1238, %v1258
          %v1262 = vadd.f32 %v1239, %v1258
          %v1263 = vadd.f32 %v1240, %v1258
          %v1264 = vadd.f32 %v1241, %v1258
          %v1265 = vadd.f32 %v1242, %v1258
          %v1266 = vadd.f32 %v1243, %v1258
          %v1267 = vadd.f32 %v1244, %v1258
          %v1268 = vadd.f32 %v1245, %v1258
          %v1269 = vadd.f32 %v1246, %v1258
          %v1270 = vadd.f32 %v1247, %v1258
          %v1271 = vadd.f32 %v1248, %v1258
          %v1272 = vadd.f32 %v1249, %v1258
          %v1273 = vadd.f32 %v1250, %v1258
          %v1274 = vadd.f32 %v1251, %v1258
          %v1275 = vadd.f32 %v1252, %v1258
          %v1276 = vtanh.pop %v1260
          %v1277 = vtanh.pop %v1261
          %v1278 = vtanh.pop %v1262
          %v1279 = vtanh.pop %v1263
          %v1280 = vtanh.pop %v1264
          %v1281 = vtanh.pop %v1265
          %v1282 = vtanh.pop %v1266
          %v1283 = vtanh.pop %v1267
          %v1284 = vtanh.pop %v1268
          %v1285 = vtanh.pop %v1269
          %v1286 = vtanh.pop %v1270
          %v1287 = vtanh.pop %v1271
          %v1288 = vtanh.pop %v1272
          %v1289 = vtanh.pop %v1273
          %v1290 = vtanh.pop %v1274
          %v1291 = vtanh.pop %v1275
          %v1292 = vld [vmem:[%s8] sm:$0x1]
          %v1294 = vlaneseq
          %v1295 = vshrl.u32 %v1294, 7
          %v1296 = vsub.s32 0, %v1295
          %v1297 = vrot.slane %v1292, %v1296
          %v1299 = vmul.f32 %v1276, %v1297
          %v1300 = vmul.f32 %v1277, %v1297
          %v1301 = vmul.f32 %v1278, %v1297
          %v1302 = vmul.f32 %v1279, %v1297
          %v1303 = vmul.f32 %v1280, %v1297
          %v1304 = vmul.f32 %v1281, %v1297
          %v1305 = vmul.f32 %v1282, %v1297
          %v1306 = vmul.f32 %v1283, %v1297
          %v1307 = vmul.f32 %v1284, %v1297
          %v1308 = vmul.f32 %v1285, %v1297
          %v1309 = vmul.f32 %v1286, %v1297
          %v1310 = vmul.f32 %v1287, %v1297
          %v1311 = vmul.f32 %v1288, %v1297
          %v1312 = vmul.f32 %v1289, %v1297
          %v1313 = vmul.f32 %v1290, %v1297
          %v1314 = vmul.f32 %v1291, %v1297
          %1315 = vadd.xlane.f32.xlu0 %v1299
          %v1316 = vpop.xlane.xlu0 %1315
          %1317 = vadd.xlane.f32.xlu0 %v1300
          %v1318 = vpop.xlane.xlu0 %1317
          %1319 = vadd.xlane.f32.xlu0 %v1301
          %v1320 = vpop.xlane.xlu0 %1319
          %1321 = vadd.xlane.f32.xlu0 %v1302
          %v1322 = vpop.xlane.xlu0 %1321
          %1323 = vadd.xlane.f32.xlu0 %v1303
          %v1324 = vpop.xlane.xlu0 %1323
          %1325 = vadd.xlane.f32.xlu0 %v1304
          %v1326 = vpop.xlane.xlu0 %1325
          %1327 = vadd.xlane.f32.xlu0 %v1305
          %v1328 = vpop.xlane.xlu0 %1327
          %1329 = vadd.xlane.f32.xlu0 %v1306
          %v1330 = vpop.xlane.xlu0 %1329
          %1331 = vadd.xlane.f32.xlu0 %v1307
          %v1332 = vpop.xlane.xlu0 %1331
          %1333 = vadd.xlane.f32.xlu0 %v1308
          %v1334 = vpop.xlane.xlu0 %1333
          %1335 = vadd.xlane.f32.xlu0 %v1309
          %v1336 = vpop.xlane.xlu0 %1335
          %1337 = vadd.xlane.f32.xlu0 %v1310
          %v1338 = vpop.xlane.xlu0 %1337
          %1339 = vadd.xlane.f32.xlu0 %v1311
          %v1340 = vpop.xlane.xlu0 %1339
          %1341 = vadd.xlane.f32.xlu0 %v1312
          %v1342 = vpop.xlane.xlu0 %1341
          %1343 = vadd.xlane.f32.xlu0 %v1313
          %v1344 = vpop.xlane.xlu0 %1343
          %1345 = vadd.xlane.f32.xlu0 %v1314
          %v1346 = vpop.xlane.xlu0 %1345
          %v1363 = vlaneseq
          %v1364 = vshrl.u32 %v1363, 7
          %v1365 = vsub.s32 %v618, %v1364
          %v1366 = vrot.slane %v1316, %v1365
          %v1367 = vlaneseq
          %v1368 = vshrl.u32 %v1367, 7
          %v1369 = vsub.s32 %v618, %v1368
          %v1370 = vrot.slane %v1318, %v1369
          %v1371 = vlaneseq
          %v1372 = vshrl.u32 %v1371, 7
          %v1373 = vsub.s32 %v618, %v1372
          %v1374 = vrot.slane %v1320, %v1373
          %v1375 = vlaneseq
          %v1376 = vshrl.u32 %v1375, 7
          %v1377 = vsub.s32 %v618, %v1376
          %v1378 = vrot.slane %v1322, %v1377
          %v1379 = vlaneseq
          %v1380 = vshrl.u32 %v1379, 7
          %v1381 = vsub.s32 %v618, %v1380
          %v1382 = vrot.slane %v1324, %v1381
          %v1383 = vlaneseq
          %v1384 = vshrl.u32 %v1383, 7
          %v1385 = vsub.s32 %v618, %v1384
          %v1386 = vrot.slane %v1326, %v1385
          %v1387 = vlaneseq
          %v1388 = vshrl.u32 %v1387, 7
          %v1389 = vsub.s32 %v618, %v1388
          %v1390 = vrot.slane %v1328, %v1389
          %v1391 = vlaneseq
          %v1392 = vshrl.u32 %v1391, 7
          %v1393 = vsub.s32 %v618, %v1392
          %v1394 = vrot.slane %v1330, %v1393
          %v1395 = vlaneseq
          %v1396 = vshrl.u32 %v1395, 7
          %v1397 = vsub.s32 %v618, %v1396
          %v1398 = vrot.slane %v1332, %v1397
          %v1399 = vlaneseq
          %v1400 = vshrl.u32 %v1399, 7
          %v1401 = vsub.s32 %v618, %v1400
          %v1402 = vrot.slane %v1334, %v1401
          %v1403 = vlaneseq
          %v1404 = vshrl.u32 %v1403, 7
          %v1405 = vsub.s32 %v618, %v1404
          %v1406 = vrot.slane %v1336, %v1405
          %v1407 = vlaneseq
          %v1408 = vshrl.u32 %v1407, 7
          %v1409 = vsub.s32 %v618, %v1408
          %v1410 = vrot.slane %v1338, %v1409
          %v1411 = vlaneseq
          %v1412 = vshrl.u32 %v1411, 7
          %v1413 = vsub.s32 %v618, %v1412
          %v1414 = vrot.slane %v1340, %v1413
          %v1415 = vlaneseq
          %v1416 = vshrl.u32 %v1415, 7
          %v1417 = vsub.s32 %v618, %v1416
          %v1418 = vrot.slane %v1342, %v1417
          %v1419 = vlaneseq
          %v1420 = vshrl.u32 %v1419, 7
          %v1421 = vsub.s32 %v618, %v1420
          %v1422 = vrot.slane %v1344, %v1421
          %v1423 = vlaneseq
          %v1424 = vshrl.u32 %v1423, 7
          %v1425 = vsub.s32 %v618, %v1424
          %v1426 = vrot.slane %v1346, %v1425
          %vm1427 = vcmask 1041409
          %v1428 = vsel %vm1427, %v1370, %v1366
          %vm1429 = vcmask 1042434
          %v1430 = vsel %vm1429, %v1374, %v1428
          %vm1431 = vcmask 1043459
          %v1432 = vsel %vm1431, %v1378, %v1430
          %vm1433 = vcmask 1044484
          %v1434 = vsel %vm1433, %v1382, %v1432
          %vm1435 = vcmask 1045509
          %v1436 = vsel %vm1435, %v1386, %v1434
          %vm1437 = vcmask 1046534
          %v1438 = vsel %vm1437, %v1390, %v1436
          %vm1439 = vcmask 1047559
          %v1440 = vsel %vm1439, %v1394, %v1438
          %v1441 = vsel %vm1427, %v1402, %v1398
          %v1442 = vsel %vm1429, %v1406, %v1441
          %v1443 = vsel %vm1431, %v1410, %v1442
          %v1444 = vsel %vm1433, %v1414, %v1443
          %v1445 = vsel %vm1435, %v1418, %v1444
          %v1446 = vsel %vm1437, %v1422, %v1445
          %v1447 = vsel %vm1439, %v1426, %v1446
          %vm1450 = vcmask 64512
          %v1451 = vsel %vm1450, %v1440, -inf
          %1452 = vmax.xlane.f32.xlu0 %v1451
          %v1453 = vpop.xlane.xlu0 %1452
          %v1454 = vsel %vm1450, %v1447, -inf
          %1455 = vmax.xlane.f32.xlu0 %v1454
          %v1456 = vpop.xlane.xlu0 %1455
          %v1459 = vlaneseq
          %v1460 = vshrl.u32 %v1459, 7
          %v1461 = vsub.s32 0, %v1460
          %v1462 = vrot.slane %v1453, %v1461
          %v1463 = vlaneseq
          %v1464 = vshrl.u32 %v1463, 7
          %v1465 = vsub.s32 1, %v1464
          %v1466 = vrot.slane %v1453, %v1465
          %v1467 = vlaneseq
          %v1468 = vshrl.u32 %v1467, 7
          %v1469 = vsub.s32 2, %v1468
          %v1470 = vrot.slane %v1453, %v1469
          %v1471 = vlaneseq
          %v1472 = vshrl.u32 %v1471, 7
          %v1473 = vsub.s32 3, %v1472
          %v1474 = vrot.slane %v1453, %v1473
          %v1475 = vlaneseq
          %v1476 = vshrl.u32 %v1475, 7
          %v1477 = vsub.s32 4, %v1476
          %v1478 = vrot.slane %v1453, %v1477
          %v1479 = vlaneseq
          %v1480 = vshrl.u32 %v1479, 7
          %v1481 = vsub.s32 5, %v1480
          %v1482 = vrot.slane %v1453, %v1481
          %v1483 = vlaneseq
          %v1484 = vshrl.u32 %v1483, 7
          %v1485 = vsub.s32 6, %v1484
          %v1486 = vrot.slane %v1453, %v1485
          %v1487 = vlaneseq
          %v1488 = vshrl.u32 %v1487, 7
          %v1489 = vsub.s32 7, %v1488
          %v1490 = vrot.slane %v1453, %v1489
          %v1491 = vlaneseq
          %v1492 = vshrl.u32 %v1491, 7
          %v1493 = vsub.s32 0, %v1492
          %v1494 = vrot.slane %v1456, %v1493
          %v1495 = vlaneseq
          %v1496 = vshrl.u32 %v1495, 7
          %v1497 = vsub.s32 1, %v1496
          %v1498 = vrot.slane %v1456, %v1497
          %v1499 = vlaneseq
          %v1500 = vshrl.u32 %v1499, 7
          %v1501 = vsub.s32 2, %v1500
          %v1502 = vrot.slane %v1456, %v1501
          %v1503 = vlaneseq
          %v1504 = vshrl.u32 %v1503, 7
          %v1505 = vsub.s32 3, %v1504
          %v1506 = vrot.slane %v1456, %v1505
          %v1507 = vlaneseq
          %v1508 = vshrl.u32 %v1507, 7
          %v1509 = vsub.s32 4, %v1508
          %v1510 = vrot.slane %v1456, %v1509
          %v1511 = vlaneseq
          %v1512 = vshrl.u32 %v1511, 7
          %v1513 = vsub.s32 5, %v1512
          %v1514 = vrot.slane %v1456, %v1513
          %v1515 = vlaneseq
          %v1516 = vshrl.u32 %v1515, 7
          %v1517 = vsub.s32 6, %v1516
          %v1518 = vrot.slane %v1456, %v1517
          %v1519 = vlaneseq
          %v1520 = vshrl.u32 %v1519, 7
          %v1521 = vsub.s32 7, %v1520
          %v1522 = vrot.slane %v1456, %v1521
          %v1539 = vsub.f32 %v1316, %v1462
          %v1540 = vsub.f32 %v1318, %v1466
          %v1541 = vsub.f32 %v1320, %v1470
          %v1542 = vsub.f32 %v1322, %v1474
          %v1543 = vsub.f32 %v1324, %v1478
          %v1544 = vsub.f32 %v1326, %v1482
          %v1545 = vsub.f32 %v1328, %v1486
          %v1546 = vsub.f32 %v1330, %v1490
          %v1547 = vsub.f32 %v1332, %v1494
          %v1548 = vsub.f32 %v1334, %v1498
          %v1549 = vsub.f32 %v1336, %v1502
          %v1550 = vsub.f32 %v1338, %v1506
          %v1551 = vsub.f32 %v1340, %v1510
          %v1552 = vsub.f32 %v1342, %v1514
          %v1553 = vsub.f32 %v1344, %v1518
          %v1554 = vsub.f32 %v1346, %v1522
          %v1555 = vmul.f32 %v1539, 1.442695
          %v1556 = vpow.pop %v1555
          %v1557 = vmul.f32 %v1540, 1.442695
          %v1558 = vpow.pop %v1557
          %v1559 = vmul.f32 %v1541, 1.442695
          %v1560 = vpow.pop %v1559
          %v1561 = vmul.f32 %v1542, 1.442695
          %v1562 = vpow.pop %v1561
          %v1563 = vmul.f32 %v1543, 1.442695
          %v1564 = vpow.pop %v1563
          %v1565 = vmul.f32 %v1544, 1.442695
          %v1566 = vpow.pop %v1565
          %v1567 = vmul.f32 %v1545, 1.442695
          %v1568 = vpow.pop %v1567
          %v1569 = vmul.f32 %v1546, 1.442695
          %v1570 = vpow.pop %v1569
          %v1571 = vmul.f32 %v1547, 1.442695
          %v1572 = vpow.pop %v1571
          %v1573 = vmul.f32 %v1548, 1.442695
          %v1574 = vpow.pop %v1573
          %v1575 = vmul.f32 %v1549, 1.442695
          %v1576 = vpow.pop %v1575
          %v1577 = vmul.f32 %v1550, 1.442695
          %v1578 = vpow.pop %v1577
          %v1579 = vmul.f32 %v1551, 1.442695
          %v1580 = vpow.pop %v1579
          %v1581 = vmul.f32 %v1552, 1.442695
          %v1582 = vpow.pop %v1581
          %v1583 = vmul.f32 %v1553, 1.442695
          %v1584 = vpow.pop %v1583
          %v1585 = vmul.f32 %v1554, 1.442695
          %v1586 = vpow.pop %v1585
          %1603 = vset.pattern.permute.xlu0 0
          %1604 = vperm.xlu0 %1603, %v1556
          %v1605 = vpop.permute.xlu0 %1604
          %1606 = vset.pattern.permute.xlu0 0
          %1607 = vperm.xlu0 %1606, %v1558
          %v1608 = vpop.permute.xlu0 %1607
          %1609 = vset.pattern.permute.xlu0 0
          %1610 = vperm.xlu0 %1609, %v1560
          %v1611 = vpop.permute.xlu0 %1610
          %1612 = vset.pattern.permute.xlu0 0
          %1613 = vperm.xlu0 %1612, %v1562
          %v1614 = vpop.permute.xlu0 %1613
          %1615 = vset.pattern.permute.xlu0 0
          %1616 = vperm.xlu0 %1615, %v1564
          %v1617 = vpop.permute.xlu0 %1616
          %1618 = vset.pattern.permute.xlu0 0
          %1619 = vperm.xlu0 %1618, %v1566
          %v1620 = vpop.permute.xlu0 %1619
          %1621 = vset.pattern.permute.xlu0 0
          %1622 = vperm.xlu0 %1621, %v1568
          %v1623 = vpop.permute.xlu0 %1622
          %1624 = vset.pattern.permute.xlu0 0
          %1625 = vperm.xlu0 %1624, %v1570
          %v1626 = vpop.permute.xlu0 %1625
          %1627 = vset.pattern.permute.xlu0 0
          %1628 = vperm.xlu0 %1627, %v1572
          %v1629 = vpop.permute.xlu0 %1628
          %1630 = vset.pattern.permute.xlu0 0
          %1631 = vperm.xlu0 %1630, %v1574
          %v1632 = vpop.permute.xlu0 %1631
          %1633 = vset.pattern.permute.xlu0 0
          %1634 = vperm.xlu0 %1633, %v1576
          %v1635 = vpop.permute.xlu0 %1634
          %1636 = vset.pattern.permute.xlu0 0
          %1637 = vperm.xlu0 %1636, %v1578
          %v1638 = vpop.permute.xlu0 %1637
          %1639 = vset.pattern.permute.xlu0 0
          %1640 = vperm.xlu0 %1639, %v1580
          %v1641 = vpop.permute.xlu0 %1640
          %1642 = vset.pattern.permute.xlu0 0
          %1643 = vperm.xlu0 %1642, %v1582
          %v1644 = vpop.permute.xlu0 %1643
          %1645 = vset.pattern.permute.xlu0 0
          %1646 = vperm.xlu0 %1645, %v1584
          %v1647 = vpop.permute.xlu0 %1646
          %1648 = vset.pattern.permute.xlu0 0
          %1649 = vperm.xlu0 %1648, %v1586
          %v1650 = vpop.permute.xlu0 %1649
          %v1651 = vlaneseq
          %v1652 = vshrl.u32 %v1651, 7
          %v1653 = vsub.s32 %v618, %v1652
          %v1654 = vrot.slane %v1605, %v1653
          %v1655 = vlaneseq
          %v1656 = vshrl.u32 %v1655, 7
          %v1657 = vsub.s32 %v618, %v1656
          %v1658 = vrot.slane %v1608, %v1657
          %v1659 = vlaneseq
          %v1660 = vshrl.u32 %v1659, 7
          %v1661 = vsub.s32 %v618, %v1660
          %v1662 = vrot.slane %v1611, %v1661
          %v1663 = vlaneseq
          %v1664 = vshrl.u32 %v1663, 7
          %v1665 = vsub.s32 %v618, %v1664
          %v1666 = vrot.slane %v1614, %v1665
          %v1667 = vlaneseq
          %v1668 = vshrl.u32 %v1667, 7
          %v1669 = vsub.s32 %v618, %v1668
          %v1670 = vrot.slane %v1617, %v1669
          %v1671 = vlaneseq
          %v1672 = vshrl.u32 %v1671, 7
          %v1673 = vsub.s32 %v618, %v1672
          %v1674 = vrot.slane %v1620, %v1673
          %v1675 = vlaneseq
          %v1676 = vshrl.u32 %v1675, 7
          %v1677 = vsub.s32 %v618, %v1676
          %v1678 = vrot.slane %v1623, %v1677
          %v1679 = vlaneseq
          %v1680 = vshrl.u32 %v1679, 7
          %v1681 = vsub.s32 %v618, %v1680
          %v1682 = vrot.slane %v1626, %v1681
          %v1683 = vlaneseq
          %v1684 = vshrl.u32 %v1683, 7
          %v1685 = vsub.s32 %v618, %v1684
          %v1686 = vrot.slane %v1629, %v1685
          %v1687 = vlaneseq
          %v1688 = vshrl.u32 %v1687, 7
          %v1689 = vsub.s32 %v618, %v1688
          %v1690 = vrot.slane %v1632, %v1689
          %v1691 = vlaneseq
          %v1692 = vshrl.u32 %v1691, 7
          %v1693 = vsub.s32 %v618, %v1692
          %v1694 = vrot.slane %v1635, %v1693
          %v1695 = vlaneseq
          %v1696 = vshrl.u32 %v1695, 7
          %v1697 = vsub.s32 %v618, %v1696
          %v1698 = vrot.slane %v1638, %v1697
          %v1699 = vlaneseq
          %v1700 = vshrl.u32 %v1699, 7
          %v1701 = vsub.s32 %v618, %v1700
          %v1702 = vrot.slane %v1641, %v1701
          %v1703 = vlaneseq
          %v1704 = vshrl.u32 %v1703, 7
          %v1705 = vsub.s32 %v618, %v1704
          %v1706 = vrot.slane %v1644, %v1705
          %v1707 = vlaneseq
          %v1708 = vshrl.u32 %v1707, 7
          %v1709 = vsub.s32 %v618, %v1708
          %v1710 = vrot.slane %v1647, %v1709
          %v1711 = vlaneseq
          %v1712 = vshrl.u32 %v1711, 7
          %v1713 = vsub.s32 %v618, %v1712
          %v1714 = vrot.slane %v1650, %v1713
          %v1715 = vsel %vm1427, %v1658, %v1654
          %v1716 = vsel %vm1429, %v1662, %v1715
          %v1717 = vsel %vm1431, %v1666, %v1716
          %v1718 = vsel %vm1433, %v1670, %v1717
          %v1719 = vsel %vm1435, %v1674, %v1718
          %v1720 = vsel %vm1437, %v1678, %v1719
          %v1721 = vsel %vm1439, %v1682, %v1720
          %v1722 = vsel %vm1427, %v1690, %v1686
          %v1723 = vsel %vm1429, %v1694, %v1722
          %v1724 = vsel %vm1431, %v1698, %v1723
          %v1725 = vsel %vm1433, %v1702, %v1724
          %v1726 = vsel %vm1435, %v1706, %v1725
          %v1727 = vsel %vm1437, %v1710, %v1726
          %v1728 = vsel %vm1439, %v1714, %v1727
          %v1731 = vsel %vm1450, %v1721, 0.0
          %1732 = vadd.xlane.f32.xlu0 %v1731
          %v1733 = vpop.xlane.xlu0 %1732
          %v1734 = vsel %vm1450, %v1728, 0.0
          %1735 = vadd.xlane.f32.xlu0 %v1734
          %v1736 = vpop.xlane.xlu0 %1735
          %v1737 = vrcp.pop %v1733
          %v1738 = vrcp.pop %v1736
          %v1741 = vlaneseq
          %v1742 = vshrl.u32 %v1741, 7
          %v1743 = vsub.s32 0, %v1742
          %v1744 = vrot.slane %v1737, %v1743
          %v1745 = vlaneseq
          %v1746 = vshrl.u32 %v1745, 7
          %v1747 = vsub.s32 1, %v1746
          %v1748 = vrot.slane %v1737, %v1747
          %v1749 = vlaneseq
          %v1750 = vshrl.u32 %v1749, 7
          %v1751 = vsub.s32 2, %v1750
          %v1752 = vrot.slane %v1737, %v1751
          %v1753 = vlaneseq
          %v1754 = vshrl.u32 %v1753, 7
          %v1755 = vsub.s32 3, %v1754
          %v1756 = vrot.slane %v1737, %v1755
          %v1757 = vlaneseq
          %v1758 = vshrl.u32 %v1757, 7
          %v1759 = vsub.s32 4, %v1758
          %v1760 = vrot.slane %v1737, %v1759
          %v1761 = vlaneseq
          %v1762 = vshrl.u32 %v1761, 7
          %v1763 = vsub.s32 5, %v1762
          %v1764 = vrot.slane %v1737, %v1763
          %v1765 = vlaneseq
          %v1766 = vshrl.u32 %v1765, 7
          %v1767 = vsub.s32 6, %v1766
          %v1768 = vrot.slane %v1737, %v1767
          %v1769 = vlaneseq
          %v1770 = vshrl.u32 %v1769, 7
          %v1771 = vsub.s32 7, %v1770
          %v1772 = vrot.slane %v1737, %v1771
          %v1773 = vlaneseq
          %v1774 = vshrl.u32 %v1773, 7
          %v1775 = vsub.s32 0, %v1774
          %v1776 = vrot.slane %v1738, %v1775
          %v1777 = vlaneseq
          %v1778 = vshrl.u32 %v1777, 7
          %v1779 = vsub.s32 1, %v1778
          %v1780 = vrot.slane %v1738, %v1779
          %v1781 = vlaneseq
          %v1782 = vshrl.u32 %v1781, 7
          %v1783 = vsub.s32 2, %v1782
          %v1784 = vrot.slane %v1738, %v1783
          %v1785 = vlaneseq
          %v1786 = vshrl.u32 %v1785, 7
          %v1787 = vsub.s32 3, %v1786
          %v1788 = vrot.slane %v1738, %v1787
          %v1789 = vlaneseq
          %v1790 = vshrl.u32 %v1789, 7
          %v1791 = vsub.s32 4, %v1790
          %v1792 = vrot.slane %v1738, %v1791
          %v1793 = vlaneseq
          %v1794 = vshrl.u32 %v1793, 7
          %v1795 = vsub.s32 5, %v1794
          %v1796 = vrot.slane %v1738, %v1795
          %v1797 = vlaneseq
          %v1798 = vshrl.u32 %v1797, 7
          %v1799 = vsub.s32 6, %v1798
          %v1800 = vrot.slane %v1738, %v1799
          %v1801 = vlaneseq
          %v1802 = vshrl.u32 %v1801, 7
          %v1803 = vsub.s32 7, %v1802
          %v1804 = vrot.slane %v1738, %v1803
          %v1821 = vmul.f32 %v1556, %v1744
          %v1822 = vmul.f32 %v1558, %v1748
          %v1823 = vmul.f32 %v1560, %v1752
          %v1824 = vmul.f32 %v1562, %v1756
          %v1825 = vmul.f32 %v1564, %v1760
          %v1826 = vmul.f32 %v1566, %v1764
          %v1827 = vmul.f32 %v1568, %v1768
          %v1828 = vmul.f32 %v1570, %v1772
          %v1829 = vmul.f32 %v1572, %v1776
          %v1830 = vmul.f32 %v1574, %v1780
          %v1831 = vmul.f32 %v1576, %v1784
          %v1832 = vmul.f32 %v1578, %v1788
          %v1833 = vmul.f32 %v1580, %v1792
          %v1834 = vmul.f32 %v1582, %v1796
          %v1835 = vmul.f32 %v1584, %v1800
          %v1836 = vmul.f32 %v1586, %v1804
          %v1837 = vpack.c.bf16 %v1821, %v1821
          %v1838 = vpack.c.bf16 %v1822, %v1822
          %v1839 = vpack.c.bf16 %v1823, %v1823
          %v1840 = vpack.c.bf16 %v1824, %v1824
          %v1841 = vpack.c.bf16 %v1825, %v1825
          %v1842 = vpack.c.bf16 %v1826, %v1826
          %v1843 = vpack.c.bf16 %v1827, %v1827
          %v1844 = vpack.c.bf16 %v1828, %v1828
          %v1845 = vpack.c.bf16 %v1829, %v1829
          %v1846 = vpack.c.bf16 %v1830, %v1830
          %v1847 = vpack.c.bf16 %v1831, %v1831
          %v1848 = vpack.c.bf16 %v1832, %v1832
          %v1849 = vpack.c.bf16 %v1833, %v1833
          %v1850 = vpack.c.bf16 %v1834, %v1834
          %v1851 = vpack.c.bf16 %v1835, %v1835
          %v1852 = vpack.c.bf16 %v1836, %v1836
          %v1853 = vld [vmem:[%s4] sm:$0xf]
          %v1854 = vld [vmem:[%s4 + $0x4] sm:$0xf]
          %v1855 = vld [vmem:[%s4 + $0x8] sm:$0xf]
          %v1856 = vld [vmem:[%s4 + $0xc] sm:$0xf]
          %v1857 = vld [vmem:[%s4 + $0x10] sm:$0xf]
          %v1858 = vld [vmem:[%s4 + $0x14] sm:$0xf]
          %v1859 = vld [vmem:[%s4 + $0x18] sm:$0xf]
          %v1860 = vld [vmem:[%s4 + $0x1c] sm:$0xf]
          %v1861 = vld [vmem:[%s4 + $0x20] sm:$0xf]
          %v1862 = vld [vmem:[%s4 + $0x24] sm:$0xf]
          %v1863 = vld [vmem:[%s4 + $0x28] sm:$0xf]
          %v1864 = vld [vmem:[%s4 + $0x2c] sm:$0xf]
          %v1865 = vld [vmem:[%s4 + $0x30] sm:$0xf]
          %v1866 = vld [vmem:[%s4 + $0x34] sm:$0xf]
          %v1867 = vld [vmem:[%s4 + $0x38] sm:$0xf]
          %v1868 = vld [vmem:[%s4 + $0x3c] sm:$0xf]
          %1870 = vset.pattern.permute.xlu0 0
          %1871 = vperm.xlu0 %1870, %v1837
          %v1872 = vpop.permute.xlu0 %1871
          %1875 = vset.pattern.permute.xlu0 0
          %1876 = vperm.xlu0 %1875, %v1838
          %v1877 = vpop.permute.xlu0 %1876
          %1880 = vset.pattern.permute.xlu0 0
          %1881 = vperm.xlu0 %1880, %v1839
          %v1882 = vpop.permute.xlu0 %1881
          %1885 = vset.pattern.permute.xlu0 0
          %1886 = vperm.xlu0 %1885, %v1840
          %v1887 = vpop.permute.xlu0 %1886
          %1890 = vset.pattern.permute.xlu0 0
          %1891 = vperm.xlu0 %1890, %v1841
          %v1892 = vpop.permute.xlu0 %1891
          %1895 = vset.pattern.permute.xlu0 0
          %1896 = vperm.xlu0 %1895, %v1842
          %v1897 = vpop.permute.xlu0 %1896
          %1900 = vset.pattern.permute.xlu0 0
          %1901 = vperm.xlu0 %1900, %v1843
          %v1902 = vpop.permute.xlu0 %1901
          %1905 = vset.pattern.permute.xlu0 0
          %1906 = vperm.xlu0 %1905, %v1844
          %v1907 = vpop.permute.xlu0 %1906
          %1910 = vset.pattern.permute.xlu0 0
          %1911 = vperm.xlu0 %1910, %v1845
          %v1912 = vpop.permute.xlu0 %1911
          %1915 = vset.pattern.permute.xlu0 0
          %1916 = vperm.xlu0 %1915, %v1846
          %v1917 = vpop.permute.xlu0 %1916
          %1920 = vset.pattern.permute.xlu0 0
          %1921 = vperm.xlu0 %1920, %v1847
          %v1922 = vpop.permute.xlu0 %1921
          %1925 = vset.pattern.permute.xlu0 0
          %1926 = vperm.xlu0 %1925, %v1848
          %v1927 = vpop.permute.xlu0 %1926
          %1930 = vset.pattern.permute.xlu0 0
          %1931 = vperm.xlu0 %1930, %v1849
          %v1932 = vpop.permute.xlu0 %1931
          %1935 = vset.pattern.permute.xlu0 0
          %1936 = vperm.xlu0 %1935, %v1850
          %v1937 = vpop.permute.xlu0 %1936
          %1940 = vset.pattern.permute.xlu0 0
          %1941 = vperm.xlu0 %1940, %v1851
          %v1942 = vpop.permute.xlu0 %1941
          %1945 = vset.pattern.permute.xlu0 0
          %1946 = vperm.xlu0 %1945, %v1852
          %v1947 = vpop.permute.xlu0 %1946
          %v1949 = vmul.bf16 %v1872, %v1853
          %v1950 = vmul.bf16 %v1877, %v1854
          %v1951 = vmul.bf16 %v1882, %v1855
          %v1952 = vmul.bf16 %v1887, %v1856
          %v1953 = vmul.bf16 %v1892, %v1857
          %v1954 = vmul.bf16 %v1897, %v1858
          %v1955 = vmul.bf16 %v1902, %v1859
          %v1956 = vmul.bf16 %v1907, %v1860
          %v1957 = vmul.bf16 %v1912, %v1861
          %v1958 = vmul.bf16 %v1917, %v1862
          %v1959 = vmul.bf16 %v1922, %v1863
          %v1960 = vmul.bf16 %v1927, %v1864
          %v1961 = vmul.bf16 %v1932, %v1865
          %v1962 = vmul.bf16 %v1937, %v1866
          %v1963 = vmul.bf16 %v1942, %v1867
          %v1964 = vmul.bf16 %v1947, %v1868
          %v1965 = vunpack.c.l.bf16 %v1949
          %v1966 = vunpack.c.l.bf16 %v1950
          %v1967 = vunpack.c.l.bf16 %v1951
          %v1968 = vunpack.c.l.bf16 %v1952
          %v1969 = vunpack.c.l.bf16 %v1953
          %v1970 = vunpack.c.l.bf16 %v1954
          %v1971 = vunpack.c.l.bf16 %v1955
          %v1972 = vunpack.c.l.bf16 %v1956
          %v1973 = vunpack.c.l.bf16 %v1957
          %v1974 = vunpack.c.l.bf16 %v1958
          %v1975 = vunpack.c.l.bf16 %v1959
          %v1976 = vunpack.c.l.bf16 %v1960
          %v1977 = vunpack.c.l.bf16 %v1961
          %v1978 = vunpack.c.l.bf16 %v1962
          %v1979 = vunpack.c.l.bf16 %v1963
          %v1980 = vunpack.c.l.bf16 %v1964
          %v1981 = vrot.slane %v1965, 4
          %v1982 = vadd.f32 %v1965, %v1981
          %v1983 = vrot.slane %v1982, 2
          %v1984 = vadd.f32 %v1982, %v1983
          %v1985 = vrot.slane %v1984, 1
          %v1986 = vadd.f32 %v1984, %v1985
          %v1987 = vrot.slane %v1966, 4
          %v1988 = vadd.f32 %v1966, %v1987
          %v1989 = vrot.slane %v1988, 2
          %v1990 = vadd.f32 %v1988, %v1989
          %v1991 = vrot.slane %v1990, 1
          %v1992 = vadd.f32 %v1990, %v1991
          %v1993 = vrot.slane %v1967, 4
          %v1994 = vadd.f32 %v1967, %v1993
          %v1995 = vrot.slane %v1994, 2
          %v1996 = vadd.f32 %v1994, %v1995
          %v1997 = vrot.slane %v1996, 1
          %v1998 = vadd.f32 %v1996, %v1997
          %v1999 = vrot.slane %v1968, 4
          %v2000 = vadd.f32 %v1968, %v1999
          %v2001 = vrot.slane %v2000, 2
          %v2002 = vadd.f32 %v2000, %v2001
          %v2003 = vrot.slane %v2002, 1
          %v2004 = vadd.f32 %v2002, %v2003
          %v2005 = vrot.slane %v1969, 4
          %v2006 = vadd.f32 %v1969, %v2005
          %v2007 = vrot.slane %v2006, 2
          %v2008 = vadd.f32 %v2006, %v2007
          %v2009 = vrot.slane %v2008, 1
          %v2010 = vadd.f32 %v2008, %v2009
          %v2011 = vrot.slane %v1970, 4
          %v2012 = vadd.f32 %v1970, %v2011
          %v2013 = vrot.slane %v2012, 2
          %v2014 = vadd.f32 %v2012, %v2013
          %v2015 = vrot.slane %v2014, 1
          %v2016 = vadd.f32 %v2014, %v2015
          %v2017 = vrot.slane %v1971, 4
          %v2018 = vadd.f32 %v1971, %v2017
          %v2019 = vrot.slane %v2018, 2
          %v2020 = vadd.f32 %v2018, %v2019
          %v2021 = vrot.slane %v2020, 1
          %v2022 = vadd.f32 %v2020, %v2021
          %v2023 = vrot.slane %v1972, 4
          %v2024 = vadd.f32 %v1972, %v2023
          %v2025 = vrot.slane %v2024, 2
          %v2026 = vadd.f32 %v2024, %v2025
          %v2027 = vrot.slane %v2026, 1
          %v2028 = vadd.f32 %v2026, %v2027
          %v2029 = vrot.slane %v1973, 4
          %v2030 = vadd.f32 %v1973, %v2029
          %v2031 = vrot.slane %v2030, 2
          %v2032 = vadd.f32 %v2030, %v2031
          %v2033 = vrot.slane %v2032, 1
          %v2034 = vadd.f32 %v2032, %v2033
          %v2035 = vrot.slane %v1974, 4
          %v2036 = vadd.f32 %v1974, %v2035
          %v2037 = vrot.slane %v2036, 2
          %v2038 = vadd.f32 %v2036, %v2037
          %v2039 = vrot.slane %v2038, 1
          %v2040 = vadd.f32 %v2038, %v2039
          %v2041 = vrot.slane %v1975, 4
          %v2042 = vadd.f32 %v1975, %v2041
          %v2043 = vrot.slane %v2042, 2
          %v2044 = vadd.f32 %v2042, %v2043
          %v2045 = vrot.slane %v2044, 1
          %v2046 = vadd.f32 %v2044, %v2045
          %v2047 = vrot.slane %v1976, 4
          %v2048 = vadd.f32 %v1976, %v2047
          %v2049 = vrot.slane %v2048, 2
          %v2050 = vadd.f32 %v2048, %v2049
          %v2051 = vrot.slane %v2050, 1
          %v2052 = vadd.f32 %v2050, %v2051
          %v2053 = vrot.slane %v1977, 4
          %v2054 = vadd.f32 %v1977, %v2053
          %v2055 = vrot.slane %v2054, 2
          %v2056 = vadd.f32 %v2054, %v2055
          %v2057 = vrot.slane %v2056, 1
          %v2058 = vadd.f32 %v2056, %v2057
          %v2059 = vrot.slane %v1978, 4
          %v2060 = vadd.f32 %v1978, %v2059
          %v2061 = vrot.slane %v2060, 2
          %v2062 = vadd.f32 %v2060, %v2061
          %v2063 = vrot.slane %v2062, 1
          %v2064 = vadd.f32 %v2062, %v2063
          %v2065 = vrot.slane %v1979, 4
          %v2066 = vadd.f32 %v1979, %v2065
          %v2067 = vrot.slane %v2066, 2
          %v2068 = vadd.f32 %v2066, %v2067
          %v2069 = vrot.slane %v2068, 1
          %v2070 = vadd.f32 %v2068, %v2069
          %v2071 = vrot.slane %v1980, 4
          %v2072 = vadd.f32 %v1980, %v2071
          %v2073 = vrot.slane %v2072, 2
          %v2074 = vadd.f32 %v2072, %v2073
          %v2075 = vrot.slane %v2074, 1
          %v2076 = vadd.f32 %v2074, %v2075
          %v2077 = vpack.c.bf16 %v1986, %v1986
          %v2078 = vpack.c.bf16 %v1992, %v1992
          %v2079 = vpack.c.bf16 %v1998, %v1998
          %v2080 = vpack.c.bf16 %v2004, %v2004
          %v2081 = vpack.c.bf16 %v2010, %v2010
          %v2082 = vpack.c.bf16 %v2016, %v2016
          %v2083 = vpack.c.bf16 %v2022, %v2022
          %v2084 = vpack.c.bf16 %v2028, %v2028
          %v2085 = vpack.c.bf16 %v2034, %v2034
          %v2086 = vpack.c.bf16 %v2040, %v2040
          %v2087 = vpack.c.bf16 %v2046, %v2046
          %v2088 = vpack.c.bf16 %v2052, %v2052
          %v2089 = vpack.c.bf16 %v2058, %v2058
          %v2090 = vpack.c.bf16 %v2064, %v2064
          %v2091 = vpack.c.bf16 %v2070, %v2070
          %v2092 = vpack.c.bf16 %v2076, %v2076
          %v2109 = vunpack.c.l.b16 %v2077
          %v2110 = vunpack.c.l.b16 %v2078
          %v2111 = vunpack.c.l.b16 %v2079
          %v2112 = vunpack.c.l.b16 %v2080
          %v2113 = vunpack.c.l.b16 %v2081
          %v2114 = vunpack.c.l.b16 %v2082
          %v2115 = vunpack.c.l.b16 %v2083
          %v2116 = vunpack.c.l.b16 %v2084
          %v2117 = vunpack.c.l.b16 %v2085
          %v2118 = vunpack.c.l.b16 %v2086
          %v2119 = vunpack.c.l.b16 %v2087
          %v2120 = vunpack.c.l.b16 %v2088
          %v2121 = vunpack.c.l.b16 %v2089
          %v2122 = vunpack.c.l.b16 %v2090
          %v2123 = vunpack.c.l.b16 %v2091
          %v2124 = vunpack.c.l.b16 %v2092
          %v2125 = vsel %vm1427, %v2110, %v2109
          %v2126 = vsel %vm1429, %v2111, %v2125
          %v2127 = vsel %vm1431, %v2112, %v2126
          %v2128 = vsel %vm1433, %v2113, %v2127
          %v2129 = vsel %vm1435, %v2114, %v2128
          %v2130 = vsel %vm1437, %v2115, %v2129
          %v2131 = vsel %vm1439, %v2116, %v2130
          %v2132 = vsel %vm1427, %v2118, %v2117
          %v2133 = vsel %vm1429, %v2119, %v2132
          %v2134 = vsel %vm1431, %v2120, %v2133
          %v2135 = vsel %vm1433, %v2121, %v2134
          %v2136 = vsel %vm1435, %v2122, %v2135
          %v2137 = vsel %vm1437, %v2123, %v2136
          %v2138 = vsel %vm1439, %v2124, %v2137
          %v2139 = vpack.c.b16 %v2138, %v2131
          %v2141 = vld [vmem:[#allocation17] sm:$0xff]
          %v2142 = vld [vmem:[#allocation17 + $0x8] sm:$0xf]
          %v2143 = vld [vmem:[#allocation17 + $0xc] sm:$0xff]
          %v2144 = vld [vmem:[#allocation17 + $0x14] sm:$0xf]
          %v2145 = vld [vmem:[#allocation17 + $0x18] sm:$0xff]
          %v2146 = vld [vmem:[#allocation17 + $0x20] sm:$0xf]
          %v2147 = vld [vmem:[#allocation17 + $0x24] sm:$0xff]
          %v2148 = vld [vmem:[#allocation17 + $0x2c] sm:$0xf]
          %v2149 = vld [vmem:[#allocation17 + $0x30] sm:$0xff]
          %v2150 = vld [vmem:[#allocation17 + $0x38] sm:$0xf]
          %v2151 = vld [vmem:[#allocation17 + $0x3c] sm:$0xff]
          %v2152 = vld [vmem:[#allocation17 + $0x44] sm:$0xf]
          %v2153 = vld [vmem:[#allocation17 + $0x48] sm:$0xff]
          %v2154 = vld [vmem:[#allocation17 + $0x50] sm:$0xf]
          %v2155 = vld [vmem:[#allocation17 + $0x54] sm:$0xff]
          %v2156 = vld [vmem:[#allocation17 + $0x5c] sm:$0xf]
          %v2157 = vld [vmem:[#allocation17 + $0x60] sm:$0xff]
          %v2158 = vld [vmem:[#allocation17 + $0x68] sm:$0xf]
          %v2159 = vld [vmem:[#allocation17 + $0x6c] sm:$0xff]
          %v2160 = vld [vmem:[#allocation17 + $0x74] sm:$0xf]
          %v2161 = vld [vmem:[#allocation17 + $0x78] sm:$0xff]
          %v2162 = vld [vmem:[#allocation17 + $0x80] sm:$0xf]
          %v2163 = vld [vmem:[#allocation17 + $0x84] sm:$0xff]
          %v2164 = vld [vmem:[#allocation17 + $0x8c] sm:$0xf]
          %v2165 = vld [vmem:[#allocation17 + $0x90] sm:$0xff]
          %v2166 = vld [vmem:[#allocation17 + $0x98] sm:$0xf]
          %v2167 = vld [vmem:[#allocation17 + $0x9c] sm:$0xff]
          %v2168 = vld [vmem:[#allocation17 + $0xa4] sm:$0xf]
          %v2169 = vld [vmem:[#allocation17 + $0xa8] sm:$0xff]
          %v2170 = vld [vmem:[#allocation17 + $0xb0] sm:$0xf]
          %v2171 = vld [vmem:[#allocation17 + $0xb4] sm:$0xff]
          %v2172 = vld [vmem:[#allocation17 + $0xbc] sm:$0xf]
          %v2173 = vld [vmem:[#allocation17 + $0xc0] sm:$0xff]
          %v2174 = vld [vmem:[#allocation17 + $0xc8] sm:$0xf]
          %v2175 = vld [vmem:[#allocation17 + $0xcc] sm:$0xff]
          %v2176 = vld [vmem:[#allocation17 + $0xd4] sm:$0xf]
          %v2177 = vld [vmem:[#allocation17 + $0xd8] sm:$0xff]
          %v2178 = vld [vmem:[#allocation17 + $0xe0] sm:$0xf]
          %v2179 = vld [vmem:[#allocation17 + $0xe4] sm:$0xff]
          %v2180 = vld [vmem:[#allocation17 + $0xec] sm:$0xf]
          %v2181 = vld [vmem:[#allocation17 + $0xf0] sm:$0xff]
          %v2182 = vld [vmem:[#allocation17 + $0xf8] sm:$0xf]
          %v2183 = vld [vmem:[#allocation17 + $0xfc] sm:$0xff]
          %v2184 = vld [vmem:[#allocation17 + $0x104] sm:$0xf]
          %v2185 = vld [vmem:[#allocation17 + $0x108] sm:$0xff]
          %v2186 = vld [vmem:[#allocation17 + $0x110] sm:$0xf]
          %v2187 = vld [vmem:[#allocation17 + $0x114] sm:$0xff]
          %v2188 = vld [vmem:[#allocation17 + $0x11c] sm:$0xf]
          %v2189 = vld [vmem:[#allocation17 + $0x120] sm:$0xff]
          %v2190 = vld [vmem:[#allocation17 + $0x128] sm:$0xf]
          %v2191 = vld [vmem:[#allocation17 + $0x12c] sm:$0xff]
          %v2192 = vld [vmem:[#allocation17 + $0x134] sm:$0xf]
          %v2193 = vld [vmem:[#allocation17 + $0x138] sm:$0xff]
          %v2194 = vld [vmem:[#allocation17 + $0x140] sm:$0xf]
          %v2195 = vld [vmem:[#allocation17 + $0x144] sm:$0xff]
          %v2196 = vld [vmem:[#allocation17 + $0x14c] sm:$0xf]
          %v2197 = vld [vmem:[#allocation17 + $0x150] sm:$0xff]
          %v2198 = vld [vmem:[#allocation17 + $0x158] sm:$0xf]
          %v2199 = vld [vmem:[#allocation17 + $0x15c] sm:$0xff]
          %v2200 = vld [vmem:[#allocation17 + $0x164] sm:$0xf]
          %v2201 = vld [vmem:[#allocation17 + $0x168] sm:$0xff]
          %v2202 = vld [vmem:[#allocation17 + $0x170] sm:$0xf]
          %v2203 = vld [vmem:[#allocation17 + $0x174] sm:$0xff]
          %v2204 = vld [vmem:[#allocation17 + $0x17c] sm:$0xf]
          %v2205 = vld [vmem:[#allocation18] sm:$0x7]
          %v2207 = vlaneseq
          %v2208 = vshrl.u32 %v2207, 7
          %v2209 = vsub.s32 0, %v2208
          %v2210 = vrot.slane %v2205, %v2209
          %v2211 = vlaneseq
          %v2212 = vshrl.u32 %v2211, 7
          %v2213 = vsub.s32 1, %v2212
          %v2214 = vrot.slane %v2205, %v2213
          %v2215 = vlaneseq
          %v2216 = vshrl.u32 %v2215, 7
          %v2217 = vsub.s32 2, %v2216
          %v2218 = vrot.slane %v2205, %v2217
          %v2286 = vunpack.c.l.b16 %v2141
          %v2287 = vunpack.c.h.b16 %v2141
          %v2288 = vunpack.c.l.b16 %v2142
          %v2289 = vunpack.c.l.b16 %v2143
          %v2290 = vunpack.c.h.b16 %v2143
          %v2291 = vunpack.c.l.b16 %v2144
          %v2292 = vunpack.c.l.b16 %v2145
          %v2293 = vunpack.c.h.b16 %v2145
          %v2294 = vunpack.c.l.b16 %v2146
          %v2295 = vunpack.c.l.b16 %v2147
          %v2296 = vunpack.c.h.b16 %v2147
          %v2297 = vunpack.c.l.b16 %v2148
          %v2298 = vunpack.c.l.b16 %v2149
          %v2299 = vunpack.c.h.b16 %v2149
          %v2300 = vunpack.c.l.b16 %v2150
          %v2301 = vunpack.c.l.b16 %v2151
          %v2302 = vunpack.c.h.b16 %v2151
          %v2303 = vunpack.c.l.b16 %v2152
          %v2304 = vunpack.c.l.b16 %v2153
          %v2305 = vunpack.c.h.b16 %v2153
          %v2306 = vunpack.c.l.b16 %v2154
          %v2307 = vunpack.c.l.b16 %v2155
          %v2308 = vunpack.c.h.b16 %v2155
          %v2309 = vunpack.c.l.b16 %v2156
          %v2310 = vunpack.c.l.b16 %v2157
          %v2311 = vunpack.c.h.b16 %v2157
          %v2312 = vunpack.c.l.b16 %v2158
          %v2313 = vunpack.c.l.b16 %v2159
          %v2314 = vunpack.c.h.b16 %v2159
          %v2315 = vunpack.c.l.b16 %v2160
          %v2316 = vunpack.c.l.b16 %v2161
          %v2317 = vunpack.c.h.b16 %v2161
          %v2318 = vunpack.c.l.b16 %v2162
          %v2319 = vunpack.c.l.b16 %v2163
          %v2320 = vunpack.c.h.b16 %v2163
          %v2321 = vunpack.c.l.b16 %v2164
          %v2322 = vunpack.c.l.b16 %v2165
          %v2323 = vunpack.c.h.b16 %v2165
          %v2324 = vunpack.c.l.b16 %v2166
          %v2325 = vunpack.c.l.b16 %v2167
          %v2326 = vunpack.c.h.b16 %v2167
          %v2327 = vunpack.c.l.b16 %v2168
          %v2328 = vunpack.c.l.b16 %v2169
          %v2329 = vunpack.c.h.b16 %v2169
          %v2330 = vunpack.c.l.b16 %v2170
          %v2331 = vunpack.c.l.b16 %v2171
          %v2332 = vunpack.c.h.b16 %v2171
          %v2333 = vunpack.c.l.b16 %v2172
          %v2334 = vunpack.c.l.b16 %v2173
          %v2335 = vunpack.c.h.b16 %v2173
          %v2336 = vunpack.c.l.b16 %v2174
          %v2337 = vunpack.c.l.b16 %v2175
          %v2338 = vunpack.c.h.b16 %v2175
          %v2339 = vunpack.c.l.b16 %v2176
          %v2340 = vunpack.c.l.b16 %v2177
          %v2341 = vunpack.c.h.b16 %v2177
          %v2342 = vunpack.c.l.b16 %v2178
          %v2343 = vunpack.c.l.b16 %v2179
          %v2344 = vunpack.c.h.b16 %v2179
          %v2345 = vunpack.c.l.b16 %v2180
          %v2346 = vunpack.c.l.b16 %v2181
          %v2347 = vunpack.c.h.b16 %v2181
          %v2348 = vunpack.c.l.b16 %v2182
          %v2349 = vunpack.c.l.b16 %v2183
          %v2350 = vunpack.c.h.b16 %v2183
          %v2351 = vunpack.c.l.b16 %v2184
          %v2352 = vunpack.c.l.b16 %v2185
          %v2353 = vunpack.c.h.b16 %v2185
          %v2354 = vunpack.c.l.b16 %v2186
          %v2355 = vunpack.c.l.b16 %v2187
          %v2356 = vunpack.c.h.b16 %v2187
          %v2357 = vunpack.c.l.b16 %v2188
          %v2358 = vunpack.c.l.b16 %v2189
          %v2359 = vunpack.c.h.b16 %v2189
          %v2360 = vunpack.c.l.b16 %v2190
          %v2361 = vunpack.c.l.b16 %v2191
          %v2362 = vunpack.c.h.b16 %v2191
          %v2363 = vunpack.c.l.b16 %v2192
          %v2364 = vunpack.c.l.b16 %v2193
          %v2365 = vunpack.c.h.b16 %v2193
          %v2366 = vunpack.c.l.b16 %v2194
          %v2367 = vunpack.c.l.b16 %v2195
          %v2368 = vunpack.c.h.b16 %v2195
          %v2369 = vunpack.c.l.b16 %v2196
          %v2370 = vunpack.c.l.b16 %v2197
          %v2371 = vunpack.c.h.b16 %v2197
          %v2372 = vunpack.c.l.b16 %v2198
          %v2373 = vunpack.c.l.b16 %v2199
          %v2374 = vunpack.c.h.b16 %v2199
          %v2375 = vunpack.c.l.b16 %v2200
          %v2376 = vunpack.c.l.b16 %v2201
          %v2377 = vunpack.c.h.b16 %v2201
          %v2378 = vunpack.c.l.b16 %v2202
          %v2379 = vunpack.c.l.b16 %v2203
          %v2380 = vunpack.c.h.b16 %v2203
          %v2381 = vunpack.c.l.b16 %v2204
          %v2382 = vpack.c.b16 %v2289, %v2286
          %v2383 = vpack.c.b16 %v2290, %v2287
          %v2384 = vpack.c.b16 %v2291, %v2288
          %v2385 = vpack.c.b16 %v2295, %v2292
          %v2386 = vpack.c.b16 %v2296, %v2293
          %v2387 = vpack.c.b16 %v2297, %v2294
          %v2388 = vpack.c.b16 %v2301, %v2298
          %v2389 = vpack.c.b16 %v2302, %v2299
          %v2390 = vpack.c.b16 %v2303, %v2300
          %v2391 = vpack.c.b16 %v2307, %v2304
          %v2392 = vpack.c.b16 %v2308, %v2305
          %v2393 = vpack.c.b16 %v2309, %v2306
          %v2394 = vpack.c.b16 %v2313, %v2310
          %v2395 = vpack.c.b16 %v2314, %v2311
          %v2396 = vpack.c.b16 %v2315, %v2312
          %v2397 = vpack.c.b16 %v2319, %v2316
          %v2398 = vpack.c.b16 %v2320, %v2317
          %v2399 = vpack.c.b16 %v2321, %v2318
          %v2400 = vpack.c.b16 %v2325, %v2322
          %v2401 = vpack.c.b16 %v2326, %v2323
          %v2402 = vpack.c.b16 %v2327, %v2324
          %v2403 = vpack.c.b16 %v2331, %v2328
          %v2404 = vpack.c.b16 %v2332, %v2329
          %v2405 = vpack.c.b16 %v2333, %v2330
          %v2406 = vpack.c.b16 %v2337, %v2334
          %v2407 = vpack.c.b16 %v2338, %v2335
          %v2408 = vpack.c.b16 %v2339, %v2336
          %v2409 = vpack.c.b16 %v2343, %v2340
          %v2410 = vpack.c.b16 %v2344, %v2341
          %v2411 = vpack.c.b16 %v2345, %v2342
          %v2412 = vpack.c.b16 %v2349, %v2346
          %v2413 = vpack.c.b16 %v2350, %v2347
          %v2414 = vpack.c.b16 %v2351, %v2348
          %v2415 = vpack.c.b16 %v2355, %v2352
          %v2416 = vpack.c.b16 %v2356, %v2353
          %v2417 = vpack.c.b16 %v2357, %v2354
          %v2418 = vpack.c.b16 %v2361, %v2358
          %v2419 = vpack.c.b16 %v2362, %v2359
          %v2420 = vpack.c.b16 %v2363, %v2360
          %v2421 = vpack.c.b16 %v2367, %v2364
          %v2422 = vpack.c.b16 %v2368, %v2365
          %v2423 = vpack.c.b16 %v2369, %v2366
          %v2424 = vpack.c.b16 %v2373, %v2370
          %v2425 = vpack.c.b16 %v2374, %v2371
          %v2426 = vpack.c.b16 %v2375, %v2372
          %v2427 = vpack.c.b16 %v2379, %v2376
          %v2428 = vpack.c.b16 %v2380, %v2377
          %v2429 = vpack.c.b16 %v2381, %v2378
          %2478 = vmatprep.subr.bf16.mxu0 %v2383
          %2479 = vmatpush1.bf16.msra.mxu0 %v2382
          %2480 = vmatprep.subr.bf16.mxu0 %v2386
          %2481 = vmatpush1.bf16.msra.mxu0 %v2385
          %2482 = vmatprep.subr.bf16.mxu0 %v2389
          %2483 = vmatpush1.bf16.msra.mxu0 %v2388
          %2484 = vmatprep.subr.bf16.mxu0 %v2392
          %2485 = vmatpush1.bf16.msra.mxu0 %v2391
          %2486 = vmatprep.subr.bf16.mxu0 %v2395
          %2487 = vmatpush1.bf16.msra.mxu0 %v2394
          %2488 = vmatprep.subr.bf16.mxu0 %v2398
          %2489 = vmatpush1.bf16.msra.mxu0 %v2397
          %2490 = vmatprep.subr.bf16.mxu0 %v2401
          %2491 = vmatpush1.bf16.msra.mxu0 %v2400
          %2492 = vmatprep.subr.bf16.mxu0 %v2404
          %2493 = vmatpush1.bf16.msra.mxu0 %v2403
          %2494 = vmatprep.subr.bf16.mxu0 %v2407
          %2495 = vmatpush1.bf16.msra.mxu0 %v2406
          %2496 = vmatprep.subr.bf16.mxu0 %v2410
          %2497 = vmatpush1.bf16.msra.mxu0 %v2409
          %2498 = vmatprep.subr.bf16.mxu0 %v2413
          %2499 = vmatpush1.bf16.msra.mxu0 %v2412
          %2500 = vmatprep.subr.bf16.mxu0 %v2416
          %2501 = vmatpush1.bf16.msra.mxu0 %v2415
          %2502 = vmatprep.subr.bf16.mxu0 %v2419
          %2503 = vmatpush1.bf16.msra.mxu0 %v2418
          %2504 = vmatprep.subr.bf16.mxu0 %v2422
          %2505 = vmatpush1.bf16.msra.mxu0 %v2421
          %2506 = vmatprep.subr.bf16.mxu0 %v2425
          %2507 = vmatpush1.bf16.msra.mxu0 %v2424
          %2508 = vmatprep.subr.bf16.mxu0 %v2428
          %2509 = vmatpush1.bf16.msra.mxu0 %v2427
          %2510 = vmatprep.mubr.bf16.mxu0 %v2139
          %2511 = vmatmul.mubr.bf16.gmra.mrb[0].mxu0 %v739
          %v2512 = vpop.f32.mrb[0].mxu0
          %v2513 = vadd.f32 %v2210, %v2512
          %v2514 = vpop.f32.mrb[0].mxu0
          %v2515 = vadd.f32 %v2214, %v2514
          %v2516 = vpop.f32.mrb[0].mxu0
          %v2517 = vadd.f32 %v2210, %v2516
          %v2518 = vpop.f32.mrb[0].mxu0
          %v2519 = vadd.f32 %v2214, %v2518
          %2520 = vdwg.mxu0
          %2521 = vmatprep.subr.bf16.mxu0 0
          %2522 = vmatpush1.bf16.msra.mxu0 %v2384
          %2523 = vmatprep.subr.bf16.mxu0 0
          %2524 = vmatpush1.bf16.msra.mxu0 %v2387
          %2525 = vmatprep.subr.bf16.mxu0 0
          %2526 = vmatpush1.bf16.msra.mxu0 %v2390
          %2527 = vmatprep.subr.bf16.mxu0 0
          %2528 = vmatpush1.bf16.msra.mxu0 %v2393
          %2529 = vmatprep.subr.bf16.mxu0 0
          %2530 = vmatpush1.bf16.msra.mxu0 %v2396
          %2531 = vmatprep.subr.bf16.mxu0 0
          %2532 = vmatpush1.bf16.msra.mxu0 %v2399
          %2533 = vmatprep.subr.bf16.mxu0 0
          %2534 = vmatpush1.bf16.msra.mxu0 %v2402
          %2535 = vmatprep.subr.bf16.mxu0 0
          %2536 = vmatpush1.bf16.msra.mxu0 %v2405
          %2537 = vmatprep.subr.bf16.mxu0 0
          %2538 = vmatpush1.bf16.msra.mxu0 %v2408
          %2539 = vmatprep.subr.bf16.mxu0 0
          %2540 = vmatpush1.bf16.msra.mxu0 %v2411
          %2541 = vmatprep.subr.bf16.mxu0 0
          %2542 = vmatpush1.bf16.msra.mxu0 %v2414
          %2543 = vmatprep.subr.bf16.mxu0 0
          %2544 = vmatpush1.bf16.msra.mxu0 %v2417
          %2545 = vmatprep.subr.bf16.mxu0 0
          %2546 = vmatpush1.bf16.msra.mxu0 %v2420
          %2547 = vmatprep.subr.bf16.mxu0 0
          %2548 = vmatpush1.bf16.msra.mxu0 %v2423
          %2549 = vmatprep.subr.bf16.mxu0 0
          %2550 = vmatpush1.bf16.msra.mxu0 %v2426
          %2551 = vmatprep.subr.bf16.mxu0 0
          %2552 = vmatpush1.bf16.msra.mxu0 %v2429
          %2553 = vmatprep.mubr.bf16.mxu0 %v2139
          %2554 = vmatmul.mubr.bf16.gmra.mrb[0].mxu0 %v739
          %v2555 = vpop.f32.mrb[0].mxu0
          %v2556 = vadd.f32 %v2218, %v2555
          %v2557 = vpop.f32.mrb[0].mxu0
          %v2558 = vpop.f32.mrb[0].mxu0
          %v2559 = vadd.f32 %v2218, %v2558
          %v2560 = vpop.f32.mrb[0].mxu0
          %2561 = vdwg.mxu0
          %v2562 = vadd.f32 %v2513, %v1035
          %v2563 = vadd.f32 %v2517, %v1038
          %v2564 = vxor.u32 %v2562, 2147483648
          %v2565 = vxor.u32 %v2563, 2147483648
          %v2566 = vmul.f32 %v2564, 1.442695
          %v2567 = vpow.pop %v2566
          %v2568 = vmul.f32 %v2565, 1.442695
          %v2569 = vpow.pop %v2568
          %v2570 = vadd.f32 %v2567, 1.0
          %v2571 = vadd.f32 %v2569, 1.0
          %v2572 = vrcp.pop %v2570
          %v2573 = vmul.f32 1.0, %v2572
          %v2574 = vrcp.pop %v2571
          %v2575 = vmul.f32 1.0, %v2574
          %v2576 = vadd.f32 %v2515, %v1036
          %v2577 = vadd.f32 %v2519, %v1039
          %v2578 = vxor.u32 %v2576, 2147483648
          %v2579 = vxor.u32 %v2577, 2147483648
          %v2580 = vmul.f32 %v2578, 1.442695
          %v2581 = vpow.pop %v2580
          %v2582 = vmul.f32 %v2579, 1.442695
          %v2583 = vpow.pop %v2582
          %v2584 = vadd.f32 %v2581, 1.0
          %v2585 = vadd.f32 %v2583, 1.0
          %v2586 = vrcp.pop %v2584
          %v2587 = vmul.f32 1.0, %v2586
          %v2588 = vrcp.pop %v2585
          %v2589 = vmul.f32 1.0, %v2588
          %v2590 = vmul.f32 %v2573, %v1037
          %v2591 = vmul.f32 %v2575, %v1040
          %v2592 = vadd.f32 %v2556, %v2590
          %v2593 = vadd.f32 %v2559, %v2591
          %v2594 = vtanh.pop %v2592
          %v2595 = vtanh.pop %v2593
          %v2596 = vsub.f32 1.0, %v2587
          %v2597 = vsub.f32 1.0, %v2589
          %v2598 = vmul.f32 %v2596, %v2594
          %v2599 = vmul.f32 %v2597, %v2595
          %v2600 = vmul.f32 %v2587, %v614
          %v2601 = vmul.f32 %v2589, %v615
          %v2602 = vadd.f32 %v2598, %v2600
          %v2603 = vadd.f32 %v2599, %v2601
          %2604 = vst [vmem:[#allocation2] sm:$0xff] %v2602
          %2605 = vst [vmem:[#allocation2 + $0x8] sm:$0xff] %v2603
          %2606 = vst [vmem:[#allocation24] sm:$0xff] %v2602
          %2607 = vst [vmem:[#allocation24 + $0x8] sm:$0xff] %v2603
          %v2608 = vpack.c.bf16 %v2603, %v2602
          %2609 = vst [vmem:[#allocation3] sm:$0xff] %v2608
          %2610 = vst [vmem:[#allocation3 + $0x8] sm:$0xff] %v2139
          %2611 = vst [vmem:[#allocation3 + $0x10] sm:$0xff] %v739
          %vm2612 = vcmask 7168
          %2613 = vst.msk [vmem:[#allocation4] sm:$0xff] %vm2612, -inf
          %2614 = vst.msk [vmem:[#allocation4 + $0x8] sm:$0xff] %vm2612, -inf
          %2615 = vst.msk [vmem:[#allocation5] sm:$0xff] %vm2612, 0
          %2616 = vst.msk [vmem:[#allocation5 + $0x8] sm:$0xff] %vm2612, 0
        $region108: #{decode_sequence.1} parent=71 // pred_fallthru
          _
        %v2617 = vld [vmem:[#allocation3] sm:$0xff]
        %v2618 = vld [vmem:[#allocation3 + $0x8] sm:$0xff]
        %v2619 = vld [vmem:[#allocation3 + $0x10] sm:$0xff]
        %v2620 = vld [vmem:[#allocation21] sm:$0xf]
        %v2621 = vld [vmem:[#allocation21 + $0x4] sm:$0xf]
        %v2622 = vld [vmem:[#allocation21 + $0x8] sm:$0xf]
        %v2623 = vld [vmem:[#allocation21 + $0xc] sm:$0xf]
        %v2624 = vld [vmem:[#allocation21 + $0x10] sm:$0xf]
        %v2625 = vld [vmem:[#allocation21 + $0x14] sm:$0xf]
        %v2626 = vld [vmem:[#allocation21 + $0x18] sm:$0xf]
        %v2627 = vld [vmem:[#allocation21 + $0x1c] sm:$0xf]
        %v2628 = vld [vmem:[#allocation21 + $0x20] sm:$0xf]
        %v2629 = vld [vmem:[#allocation21 + $0x24] sm:$0xf]
        %v2630 = vld [vmem:[#allocation21 + $0x28] sm:$0xf]
        %v2631 = vld [vmem:[#allocation21 + $0x2c] sm:$0xf]
        %v2632 = vld [vmem:[#allocation21 + $0x30] sm:$0xf]
        %v2633 = vld [vmem:[#allocation21 + $0x34] sm:$0xf]
        %v2634 = vld [vmem:[#allocation21 + $0x38] sm:$0xf]
        %v2635 = vld [vmem:[#allocation21 + $0x3c] sm:$0xf]
        %v2636 = vld [vmem:[#allocation21 + $0x40] sm:$0xf]
        %v2637 = vld [vmem:[#allocation21 + $0x44] sm:$0xf]
        %v2638 = vld [vmem:[#allocation21 + $0x48] sm:$0xf]
        %v2639 = vld [vmem:[#allocation21 + $0x4c] sm:$0xf]
        %v2640 = vld [vmem:[#allocation21 + $0x50] sm:$0xf]
        %v2641 = vld [vmem:[#allocation21 + $0x54] sm:$0xf]
        %v2642 = vld [vmem:[#allocation21 + $0x58] sm:$0xf]
        %v2643 = vld [vmem:[#allocation21 + $0x5c] sm:$0xf]
        %v2644 = vld [vmem:[#allocation21 + $0x60] sm:$0xf]
        %v2645 = vld [vmem:[#allocation21 + $0x64] sm:$0xf]
        %v2646 = vld [vmem:[#allocation21 + $0x68] sm:$0xf]
        %v2647 = vld [vmem:[#allocation21 + $0x6c] sm:$0xf]
        %v2648 = vld [vmem:[#allocation21 + $0x70] sm:$0xf]
        %v2649 = vld [vmem:[#allocation21 + $0x74] sm:$0xf]
        %v2650 = vld [vmem:[#allocation21 + $0x78] sm:$0xf]
        %v2651 = vld [vmem:[#allocation21 + $0x7c] sm:$0xf]
        %v2652 = vld [vmem:[#allocation21 + $0x80] sm:$0xf]
        %v2653 = vld [vmem:[#allocation21 + $0x84] sm:$0xf]
        %v2654 = vld [vmem:[#allocation21 + $0x88] sm:$0xf]
        %v2655 = vld [vmem:[#allocation21 + $0x8c] sm:$0xf]
        %v2656 = vld [vmem:[#allocation21 + $0x90] sm:$0xf]
        %v2657 = vld [vmem:[#allocation21 + $0x94] sm:$0xf]
        %v2658 = vld [vmem:[#allocation21 + $0x98] sm:$0xf]
        %v2659 = vld [vmem:[#allocation21 + $0x9c] sm:$0xf]
        %v2660 = vld [vmem:[#allocation21 + $0xa0] sm:$0xf]
        %v2661 = vld [vmem:[#allocation21 + $0xa4] sm:$0xf]
        %v2662 = vld [vmem:[#allocation21 + $0xa8] sm:$0xf]
        %v2663 = vld [vmem:[#allocation21 + $0xac] sm:$0xf]
        %v2664 = vld [vmem:[#allocation21 + $0xb0] sm:$0xf]
        %v2665 = vld [vmem:[#allocation21 + $0xb4] sm:$0xf]
        %v2666 = vld [vmem:[#allocation21 + $0xb8] sm:$0xf]
        %v2667 = vld [vmem:[#allocation21 + $0xbc] sm:$0xf]
        %v2668 = vld [vmem:[%s595] sm:$0x1]
        %v2670 = vlaneseq
        %v2671 = vshrl.u32 %v2670, 7
        %v2672 = vsub.s32 0, %v2671
        %v2673 = vrot.slane %v2668, %v2672
        %v2723 = vunpack.c.l.b16 %v2620
        %v2724 = vunpack.c.l.b16 %v2621
        %v2725 = vunpack.c.l.b16 %v2622
        %v2726 = vunpack.c.l.b16 %v2623
        %v2727 = vunpack.c.l.b16 %v2624
        %v2728 = vunpack.c.l.b16 %v2625
        %v2729 = vunpack.c.l.b16 %v2626
        %v2730 = vunpack.c.l.b16 %v2627
        %v2731 = vunpack.c.l.b16 %v2628
        %v2732 = vunpack.c.l.b16 %v2629
        %v2733 = vunpack.c.l.b16 %v2630
        %v2734 = vunpack.c.l.b16 %v2631
        %v2735 = vunpack.c.l.b16 %v2632
        %v2736 = vunpack.c.l.b16 %v2633
        %v2737 = vunpack.c.l.b16 %v2634
        %v2738 = vunpack.c.l.b16 %v2635
        %v2739 = vunpack.c.l.b16 %v2636
        %v2740 = vunpack.c.l.b16 %v2637
        %v2741 = vunpack.c.l.b16 %v2638
        %v2742 = vunpack.c.l.b16 %v2639
        %v2743 = vunpack.c.l.b16 %v2640
        %v2744 = vunpack.c.l.b16 %v2641
        %v2745 = vunpack.c.l.b16 %v2642
        %v2746 = vunpack.c.l.b16 %v2643
        %v2747 = vunpack.c.l.b16 %v2644
        %v2748 = vunpack.c.l.b16 %v2645
        %v2749 = vunpack.c.l.b16 %v2646
        %v2750 = vunpack.c.l.b16 %v2647
        %v2751 = vunpack.c.l.b16 %v2648
        %v2752 = vunpack.c.l.b16 %v2649
        %v2753 = vunpack.c.l.b16 %v2650
        %v2754 = vunpack.c.l.b16 %v2651
        %v2755 = vunpack.c.l.b16 %v2652
        %v2756 = vunpack.c.l.b16 %v2653
        %v2757 = vunpack.c.l.b16 %v2654
        %v2758 = vunpack.c.l.b16 %v2655
        %v2759 = vunpack.c.l.b16 %v2656
        %v2760 = vunpack.c.l.b16 %v2657
        %v2761 = vunpack.c.l.b16 %v2658
        %v2762 = vunpack.c.l.b16 %v2659
        %v2763 = vunpack.c.l.b16 %v2660
        %v2764 = vunpack.c.l.b16 %v2661
        %v2765 = vunpack.c.l.b16 %v2662
        %v2766 = vunpack.c.l.b16 %v2663
        %v2767 = vunpack.c.l.b16 %v2664
        %v2768 = vunpack.c.l.b16 %v2665
        %v2769 = vunpack.c.l.b16 %v2666
        %v2770 = vunpack.c.l.b16 %v2667
        %v2771 = vpack.c.b16 %v2724, %v2723
        %v2772 = vpack.c.b16 %v2726, %v2725
        %v2773 = vpack.c.b16 %v2728, %v2727
        %v2774 = vpack.c.b16 %v2730, %v2729
        %v2775 = vpack.c.b16 %v2732, %v2731
        %v2776 = vpack.c.b16 %v2734, %v2733
        %v2777 = vpack.c.b16 %v2736, %v2735
        %v2778 = vpack.c.b16 %v2738, %v2737
        %v2779 = vpack.c.b16 %v2740, %v2739
        %v2780 = vpack.c.b16 %v2742, %v2741
        %v2781 = vpack.c.b16 %v2744, %v2743
        %v2782 = vpack.c.b16 %v2746, %v2745
        %v2783 = vpack.c.b16 %v2748, %v2747
        %v2784 = vpack.c.b16 %v2750, %v2749
        %v2785 = vpack.c.b16 %v2752, %v2751
        %v2786 = vpack.c.b16 %v2754, %v2753
        %v2787 = vpack.c.b16 %v2756, %v2755
        %v2788 = vpack.c.b16 %v2758, %v2757
        %v2789 = vpack.c.b16 %v2760, %v2759
        %v2790 = vpack.c.b16 %v2762, %v2761
        %v2791 = vpack.c.b16 %v2764, %v2763
        %v2792 = vpack.c.b16 %v2766, %v2765
        %v2793 = vpack.c.b16 %v2768, %v2767
        %v2794 = vpack.c.b16 %v2770, %v2769
        %2819 = vmatprep.subr.bf16.mxu0 0
        %2820 = vmatpush1.bf16.msra.mxu0 %v2771
        %2821 = vmatprep.subr.bf16.mxu0 0
        %2822 = vmatpush1.bf16.msra.mxu0 %v2772
        %2823 = vmatprep.subr.bf16.mxu0 0
        %2824 = vmatpush1.bf16.msra.mxu0 %v2773
        %2825 = vmatprep.subr.bf16.mxu0 0
        %2826 = vmatpush1.bf16.msra.mxu0 %v2774
        %2827 = vmatprep.subr.bf16.mxu0 0
        %2828 = vmatpush1.bf16.msra.mxu0 %v2775
        %2829 = vmatprep.subr.bf16.mxu0 0
        %2830 = vmatpush1.bf16.msra.mxu0 %v2776
        %2831 = vmatprep.subr.bf16.mxu0 0
        %2832 = vmatpush1.bf16.msra.mxu0 %v2777
        %2833 = vmatprep.subr.bf16.mxu0 0
        %2834 = vmatpush1.bf16.msra.mxu0 %v2778
        %2835 = vmatprep.subr.bf16.mxu0 0
        %2836 = vmatpush1.bf16.msra.mxu0 %v2779
        %2837 = vmatprep.subr.bf16.mxu0 0
        %2838 = vmatpush1.bf16.msra.mxu0 %v2780
        %2839 = vmatprep.subr.bf16.mxu0 0
        %2840 = vmatpush1.bf16.msra.mxu0 %v2781
        %2841 = vmatprep.subr.bf16.mxu0 0
        %2842 = vmatpush1.bf16.msra.mxu0 %v2782
        %2843 = vmatprep.subr.bf16.mxu0 0
        %2844 = vmatpush1.bf16.msra.mxu0 %v2783
        %2845 = vmatprep.subr.bf16.mxu0 0
        %2846 = vmatpush1.bf16.msra.mxu0 %v2784
        %2847 = vmatprep.subr.bf16.mxu0 0
        %2848 = vmatpush1.bf16.msra.mxu0 %v2785
        %2849 = vmatprep.subr.bf16.mxu0 0
        %2850 = vmatpush1.bf16.msra.mxu0 %v2786
        %2851 = vmatprep.mubr.bf16.mxu0 %v2618
        %2852 = vmatmul.mubr.bf16.gmra.mrb[0].mxu0 %v2617
        %v2853 = vpop.f32.mrb[0].mxu0
        %v2854 = vadd.f32 %v2673, %v2853
        %v2855 = vpop.f32.mrb[0].mxu0
        %v2856 = vpop.f32.mrb[0].mxu0
        %v2857 = vadd.f32 %v2673, %v2856
        %v2858 = vpop.f32.mrb[0].mxu0
        %2859 = vdwg.mxu0
        %2860 = vmatprep.subr.bf16.mxu0 0
        %2861 = vmatpush1.bf16.msra.mxu0 %v2787
        %2862 = vmatprep.subr.bf16.mxu0 0
        %2863 = vmatpush1.bf16.msra.mxu0 %v2788
        %2864 = vmatprep.subr.bf16.mxu0 0
        %2865 = vmatpush1.bf16.msra.mxu0 %v2789
        %2866 = vmatprep.subr.bf16.mxu0 0
        %2867 = vmatpush1.bf16.msra.mxu0 %v2790
        %2868 = vmatprep.subr.bf16.mxu0 0
        %2869 = vmatpush1.bf16.msra.mxu0 %v2791
        %2870 = vmatprep.subr.bf16.mxu0 0
        %2871 = vmatpush1.bf16.msra.mxu0 %v2792
        %2872 = vmatprep.subr.bf16.mxu0 0
        %2873 = vmatpush1.bf16.msra.mxu0 %v2793
        %2874 = vmatprep.subr.bf16.mxu0 0
        %2875 = vmatpush1.bf16.msra.mxu0 %v2794
        %2876 = vmatprep.subr.bf16.mxu0 0
        %2877 = vmatpush1.bf16.msra.mxu0 0
        %2878 = vmatprep.subr.bf16.mxu0 0
        %2879 = vmatpush1.bf16.msra.mxu0 0
        %2880 = vmatprep.subr.bf16.mxu0 0
        %2881 = vmatpush1.bf16.msra.mxu0 0
        %2882 = vmatprep.subr.bf16.mxu0 0
        %2883 = vmatpush1.bf16.msra.mxu0 0
        %2884 = vmatprep.subr.bf16.mxu0 0
        %2885 = vmatpush1.bf16.msra.mxu0 0
        %2886 = vmatprep.subr.bf16.mxu0 0
        %2887 = vmatpush1.bf16.msra.mxu0 0
        %2888 = vmatprep.subr.bf16.mxu0 0
        %2889 = vmatpush1.bf16.msra.mxu0 0
        %2890 = vmatprep.subr.bf16.mxu0 0
        %2891 = vmatpush1.bf16.msra.mxu0 0
        %2892 = vmatprep.mubr.bf16.mxu0 0
        %2893 = vmatmul.mubr.bf16.gmra.mrb[0].mxu0 %v2619
        %v2894 = vpop.f32.mrb[0].mxu0
        %v2895 = vadd.f32 %v2854, %v2894
        %v2896 = vpop.f32.mrb[0].mxu0
        %v2897 = vpop.f32.mrb[0].mxu0
        %v2898 = vadd.f32 %v2857, %v2897
        %v2899 = vpop.f32.mrb[0].mxu0
        %2900 = vdwg.mxu0
        %2901 = vst [vmem:[%s590] sm:$0xff] %v2895
        %2902 = vst [vmem:[%s590 + $0x8] sm:$0xff] %v2898
        %v2903 = vlaneseq
        %v2904 = vand.u32 %v2903, 127
        %2905 = vmax.xlane.f32.xlu0 %v2895
        %v2906 = vpop.xlane.xlu0 %2905
        %2907 = vmax.xlane.f32.xlu0 %v2898
        %v2908 = vpop.xlane.xlu0 %2907
        %vm2909 = vcmp.ge.f32.partialorder %v2895, %v2906
        %vm2910 = vcmp.ge.f32.partialorder %v2898, %v2908
        %v2911 = vsel %vm2909, %v2904, 128
        %v2912 = vsel %vm2910, %v2904, 128
        %v2913 = vand.u32 %v2911, 65535
        %v2914 = vshra.s32 %v2911, 16
        %v2915 = vcvt.s32.f32 %v2913
        %v2916 = vcvt.s32.f32 %v2914
        %2917 = vmin.xlane.f32.xlu0 %v2916
        %v2918 = vpop.xlane.xlu0 %2917
        %vm2919 = vcmp.eq.f32.partialorder %v2916, %v2918
        %v2920 = vsel %vm2919, %v2915, inf
        %2921 = vmin.xlane.f32.xlu0 %v2920
        %v2922 = vpop.xlane.xlu0 %2921
        %v2923 = vcvt.f32.s32 %v2922
        %v2924 = vcvt.f32.s32 %v2918
        %v2925 = vshll.u32 %v2924, 16
        %v2926 = vadd.s32 %v2925, %v2923
        %v2927 = vand.u32 %v2912, 65535
        %v2928 = vshra.s32 %v2912, 16
        %v2929 = vcvt.s32.f32 %v2927
        %v2930 = vcvt.s32.f32 %v2928
        %2931 = vmin.xlane.f32.xlu0 %v2930
        %v2932 = vpop.xlane.xlu0 %2931
        %vm2933 = vcmp.eq.f32.partialorder %v2930, %v2932
        %v2934 = vsel %vm2933, %v2929, inf
        %2935 = vmin.xlane.f32.xlu0 %v2934
        %v2936 = vpop.xlane.xlu0 %2935
        %v2937 = vcvt.f32.s32 %v2936
        %v2938 = vcvt.f32.s32 %v2932
        %v2939 = vshll.u32 %v2938, 16
        %v2940 = vadd.s32 %v2939, %v2937
        %s2941 = smul.u32 %s45, 128
        %v2942 = vstv %s2941
        %v2943 = vadd.s32 %v2926, %v2942
        %v2944 = vadd.s32 %v2940, %v2942
        %v2945 = vld [vmem:[#allocation4] sm:$0xff]
        %v2946 = vld [vmem:[#allocation4 + $0x8] sm:$0xff]
        %vm2947 = vcmp.gt.f32.partialorder %v2906, %v2945
        %vm2948 = vcmp.gt.f32.partialorder %v2908, %v2946
        %v2949 = vld [vmem:[#allocation5] sm:$0xff]
        %v2950 = vld [vmem:[#allocation5 + $0x8] sm:$0xff]
        %v2951 = vsel %vm2947, %v2943, %v2949
        %v2952 = vsel %vm2948, %v2944, %v2950
        %vm2953 = vcmask 7168
        %2954 = vst.msk [vmem:[#allocation5] sm:$0xff] %vm2953, %v2951
        %2955 = vst.msk [vmem:[#allocation5 + $0x8] sm:$0xff] %vm2953, %v2952
        %v2956 = vld [vmem:[#allocation4] sm:$0xff]
        %v2957 = vld [vmem:[#allocation4 + $0x8] sm:$0xff]
        %v2958 = vsel %vm2947, %v2906, %v2956
        %v2959 = vsel %vm2948, %v2908, %v2957
        %2960 = vst.msk [vmem:[#allocation4] sm:$0xff] %vm2953, %v2958
        %2961 = vst.msk [vmem:[#allocation4 + $0x8] sm:$0xff] %vm2953, %v2959
        // Predicated region
        $region113: #{decode_sequence.1} parent=71 // pred_check
          %p2962 = pneg %p597
        $region114: #{decode_sequence.1} parent=71 // pred_check_branch
          %2964 = sbr.rel (%p2962) target = $region116
        $region115: #{decode_sequence.1} parent=71 // pred_region
          %s2965 = sadd.s32 %s44, 1
          %s2966 = sld [smem:[#allocation8 + %s2965]]
          %s2967 = smul.u32 %s2965, 16
          %s2968 = scalar_lea.vmem %s1, %s2967
          %v2969 = vld [vmem:[%s2968] sm:$0xff]
          %v2970 = vld [vmem:[%s2968 + $0x8] sm:$0xff]
          %v2971 = vstv %s2966
          %v2972 = vmul.u32 %v2969, %v2971
          %v2973 = vmul.u32 %v2970, %v2971
          %v2974 = vld [vmem:[#allocation5] sm:$0xff]
          %v2975 = vld [vmem:[#allocation5 + $0x8] sm:$0xff]
          %s2976 = ssub.s32 1, %s2966
          %v2977 = vstv %s2976
          %v2978 = vmul.u32 %v2974, %v2977
          %v2979 = vmul.u32 %v2975, %v2977
          %v2980 = vadd.s32 %v2972, %v2978
          %v2981 = vadd.s32 %v2973, %v2979
          %2982 = vst.msk [vmem:[#allocation6] sm:$0xff] %vm2953, %v2980
          %2983 = vst.msk [vmem:[#allocation6 + $0x8] sm:$0xff] %vm2953, %v2981
        $region116: #{decode_sequence.1} parent=71 // pred_fallthru
          _
        %s2984 = sand.u32 %s345, 1
        %s2985 = scalar_lea.sflag [#allocation11], %s2984
        %s2986 = sand.u32 %s345, 1
        %s2987 = smul.addr %s2986, 16
        %s2988 = scalar_lea.vmem [#allocation23], %s2987
        // Predicated region
        $region117: #{decode_sequence.1} parent=71 // pred_check
          %p2989 = pneg %p355
        $region118: #{decode_sequence.1} parent=71 // pred_check_branch
          %2991 = sbr.rel (%p2989) target = $region120
        $region119: #{decode_sequence.1} parent=71 // pred_region
          %s2993 = ssub.s32 256, 256
          %2994 = vsyncadd %s2985, %s2993
          %s2995 = smul.addr %s44, 2
          %s2996 = sadd.s32 %s45, %s2995
          %s2997 = smul.addr %s2996, 128
          %s2998 = scalar_lea.hbm %s14, %s2997
          %s2999 = sshll.u32 %s2988, 4
          %s3000 = int_to_ptr.vmem [resolvable:$true] %s2999
          %3005 = dma.vmem_to_hbm [thread:$0]  %s3000, 256, %s2998, %s2985, 128, 128, 8
        $region120: #{decode_sequence.1} parent=71 // pred_fallthru
          _
        // Predicated region
        $region121: #{decode_sequence.1} parent=71 // pred_check
          %p3006 = pneg %p376
        $region122: #{decode_sequence.1} parent=71 // pred_check_branch
          %3008 = sbr.rel (%p3006) target = $region124
        $region123: #{decode_sequence.1} parent=71 // pred_region
          %s3010 = ssub.s32 256, 256
          %3011 = vsyncadd [#allocation25], %s3010
          %s3012 = sshll.u32 [#allocation24], 4
          %s3013 = int_to_ptr.vmem [resolvable:$true] %s3012
          %3018 = dma.vmem_to_hbm [thread:$0]  %s3013, 256, %s15, [#allocation25], 128, 128, 8
        $region124: #{decode_sequence.1} parent=71 // pred_fallthru
          _
        // Predicated region
        $region125: #{decode_sequence.1} parent=71 // pred_check
          %p3019 = pneg %p376
        $region126: #{decode_sequence.1} parent=71 // pred_check_branch
          %3021 = sbr.rel (%p3019) target = $region128
        $region127: #{decode_sequence.1} parent=71 // pred_region
          %3022 = dma.done [#allocation25], 256
        $region128: #{decode_sequence.1} parent=71 // pred_fallthru
          _
      $region72: #{decode_sequence.1} parent=5 // pred_fallthru
        _
      %p3023 = scmp.le.s32.totalorder 2, %s35
      // Predicated region
      $region129: #{decode_sequence.1} parent=5 // pred_check
        %p3024 = pneg %p3023
      $region130: #{decode_sequence.1} parent=5 // pred_check_branch
        %3026 = sbr.rel (%p3024) target = $region132
      $region131: #{decode_sequence.1} parent=5 // pred_region
        %s3027 = ssub.s32 %s35, 2
        // Predicated region
        $region133: #{decode_sequence.1} parent=131 // pred_check
          %p3028 = pneg %p361
        $region134: #{decode_sequence.1} parent=131 // pred_check_branch
          %3030 = sbr.rel (%p3028) target = $region136
        $region135: #{decode_sequence.1} parent=131 // pred_region
          %s3031 = sand.u32 %s346, 1
          %s3032 = scalar_lea.sflag [#allocation11], %s3031
          %s3033 = sand.u32 %s346, 1
          %s3034 = smul.addr %s3033, 16
          %s3035 = scalar_lea.vmem [#allocation23], %s3034
          %3036 = dma.done %s3032, 256
        $region136: #{decode_sequence.1} parent=131 // pred_fallthru
          _
      $region132: #{decode_sequence.1} parent=5 // pred_fallthru
        _
    $region6: #{decode_sequence.1} parent=1 // loop_footer
      %s39 = sadd.s32 1, %s35
    $region7: #{decode_sequence.1} parent=1 // loop_footer_branch
      %34 = sbr.rel target = $region3
    $region8: #{decode_sequence.1} parent=1 // loop_exit
      _
    %3037 = vsyncpa [#allocation10], 1
    %s3038 = scalar_lea.sflag [#allocation10], 1
    %3039 = vsyncpa %s3038, 1
    %3040 = vsyncpa [#allocation13], 1
    %3041 = vsyncpa [#allocation16], 1
    %3042 = vsyncpa [#allocation19], 1
    %3043 = vsyncpa [#allocation22], 1
    %3044 = vsyncpa [#allocation11], 1
    %s3045 = scalar_lea.sflag [#allocation11], 1
    %3046 = vsyncpa %s3045, 1
    %3047 = vsyncpa [#allocation25], 1

</llo_original>
